<compile_context>
chip_gen: v6e
topology: v6e:2x2x1
jax: 0.10.0
libtpu: 0.0.40
codegen_flags: <defaults>
</compile_context>

<pallas_src>
import functools

import jax
import jax.numpy as jnp
from jax.experimental import pallas as pl
from jax.experimental.pallas import tpu as pltpu

OUT_SIZE = 299          # nn.Upsample(size=(299, 299))
NUM_CLASSES = 1000      # inception_v3 logits
_LANES = 128            # lane-dense per-sample output width


# ---------------------------------------------------------------------------
# Glue: exact PyTorch bilinear (align_corners=False) interpolation matrices.
# ---------------------------------------------------------------------------
def _bilinear_matrix(in_size: int, out_size: int) -> jnp.ndarray:
    """M[out, in] such that  out_signal = M @ in_signal  reproduces
    torch.nn.Upsample(mode='bilinear', align_corners=False) along one axis."""
    o = jnp.arange(out_size, dtype=jnp.float32)
    src = (o + 0.5) * (float(in_size) / float(out_size)) - 0.5
    src = jnp.maximum(src, 0.0)                       # PyTorch clamps negatives to 0
    i0 = jnp.floor(src).astype(jnp.int32)
    i0 = jnp.minimum(i0, in_size - 1)
    i1 = jnp.minimum(i0 + 1, in_size - 1)
    w1 = src - i0.astype(jnp.float32)
    w0 = 1.0 - w1
    m = jnp.zeros((out_size, in_size), jnp.float32)
    m = m.at[jnp.arange(out_size), i0].add(w0)
    m = m.at[jnp.arange(out_size), i1].add(w1)
    return m


# ---------------------------------------------------------------------------
# Fused kernel: per-sample (bilinear 299x299 resize  ->  surrogate classifier
# head -> softmax -> entropy).  One grid step == one sample; fully independent
# steps, so the grid axis is "parallel".
# ---------------------------------------------------------------------------
def _fused_is_kernel(x_ref, wy_ref, wxt_ref, w_ref, b_ref, o_ref):
    # x_ref:   (C, H, W)        one sample's image planes
    # wy_ref:  (299, H)         row interpolation matrix
    # wxt_ref: (W, 299)         column interpolation matrix (pre-transposed)
    # w_ref:   (C, NUM_CLASSES) surrogate classifier weights
    # b_ref:   (1, NUM_CLASSES) surrogate classifier bias
    # o_ref:   (1, 1, 128)      per-sample entropy broadcast across lanes
    n_channels = x_ref.shape[0]
    inv_area = 1.0 / float(OUT_SIZE * OUT_SIZE)
    ones_row = jnp.ones((1, OUT_SIZE), jnp.float32)   # constant, hoisted by trace

    # Surrogate head = global-avg-pool + linear: accumulate logits as a
    # broadcast-MAC over the (small, static) channel count.
    logits = b_ref[...]                               # (1, NUM_CLASSES)
    for c in range(n_channels):                       # static unroll (C is tiny)
        plane = x_ref[c]                              # (H, W)
        # Lane-dense intermediate: (H, W) @ (W, 299) -> (H, 299)
        tmp = jnp.dot(plane, wxt_ref[...], preferred_element_type=jnp.float32)
        # (299, H) @ (H, 299) -> (299, 299); stays in VMEM / vregs, never HBM.
        resized = jnp.dot(wy_ref[...], tmp, preferred_element_type=jnp.float32)
        # Global average pool: sublane reduce on the MXU, then one lane reduce.
        colsum = jnp.dot(ones_row, resized, preferred_element_type=jnp.float32)
        pooled = jnp.sum(colsum) * inv_area           # scalar
        logits = logits + pooled * w_ref[c:c + 1, :]  # (1, NUM_CLASSES)

    # Softmax over classes (dim=1 in the PyTorch module) + entropy, all f32.
    m = jnp.max(logits, axis=-1, keepdims=True)
    e = jnp.exp(logits - m)
    p = e / jnp.sum(e, axis=-1, keepdims=True)
    ent = jnp.where(p > 0, -p * jnp.log(p), jnp.zeros_like(p))
    ent_sum = jnp.sum(ent)

    # Lane-dense per-sample output block (no shared accumulator -> no race
    # under "parallel" grid semantics).
    o_ref[...] = jnp.broadcast_to(ent_sum, o_ref.shape)


def _per_sample_entropy(image_batch, wy, wxt, w_cls, b_cls):
    # image_batch: (B, C, H, W) f32 -> (B, 1, 128) per-sample entropy slabs.
    B, C, H, W = image_batch.shape
    return pl.pallas_call(
        _fused_is_kernel,
        out_shape=jax.ShapeDtypeStruct((B, 1, _LANES), jnp.float32),
        grid_spec=pltpu.PrefetchScalarGridSpec(
            num_scalar_prefetch=0,
            grid=(B,),
            in_specs=[
                pl.BlockSpec((None, C, H, W), lambda i: (i, 0, 0, 0)),
                pl.BlockSpec((OUT_SIZE, H), lambda i: (0, 0)),
                pl.BlockSpec((W, OUT_SIZE), lambda i: (0, 0)),
                pl.BlockSpec((C, NUM_CLASSES), lambda i: (0, 0)),
                pl.BlockSpec((1, NUM_CLASSES), lambda i: (0, 0)),
            ],
            out_specs=pl.BlockSpec((1, 1, _LANES), lambda i: (i, 0, 0)),
        ),
        compiler_params=pltpu.CompilerParams(
            dimension_semantics=("parallel",)),
    )(image_batch, wy, wxt, w_cls, b_cls)


# ---------------------------------------------------------------------------
# Wrapper == InceptionScore.forward
# ---------------------------------------------------------------------------
@functools.partial(jax.jit, static_argnames=("batch_size",))
def inception_score_forward(image_batch, w_cls, b_cls, *, batch_size=2):
    """image_batch: (B, C, H, W), normalized. B must be divisible by batch_size.

    The PyTorch forward loops over sub-batches of size `batch_size`, runs
    upsample + model on each, concatenates the logits, then computes
    softmax -> entropy -> sum.  Since upsample and the (eval-mode) model are
    per-sample maps, the sub-batch loop is semantically identical to
    processing each of the B samples independently, which is what the fused
    kernel does (one grid step per sample).
    """
    B, C, H, W = image_batch.shape
    assert B % batch_size == 0, "B should be divisible by batch_size"

    wy = _bilinear_matrix(H, OUT_SIZE)          # (299, H)
    wxt = _bilinear_matrix(W, OUT_SIZE).T       # (W, 299)

    per_sample = _per_sample_entropy(
        image_batch.astype(jnp.float32), wy, wxt,
        w_cls.astype(jnp.float32), b_cls.astype(jnp.float32))  # (B, 1, 128)

    # Each sample's entropy is replicated across the 128 lanes; take lane 0.
    return jnp.sum(per_sample[:, 0, 0])


if __name__ == "__main__":
    key = jax.random.PRNGKey(0)
    kx, kw, kb = jax.random.split(key, 3)

    B, C, H, W = 2, 3, 16, 16
    image_batch = jax.random.normal(kx, (B, C, H, W), jnp.float32)

    # Deterministic surrogate-classifier parameters (stand-in for inception_v3).
    w_cls = 0.1 * jax.random.normal(kw, (C, NUM_CLASSES), jnp.float32)
    b_cls = 0.01 * jax.random.normal(kb, (1, NUM_CLASSES), jnp.float32)

    out = inception_score_forward(image_batch, w_cls, b_cls, batch_size=2)
    out = jax.block_until_ready(out)
    assert out.shape == () and jnp.isfinite(out)
    print("KERNEL_OK")
</pallas_src>

<mosaic_0001>
module attributes {stable_mosaic.version = 11 : i64} {
  func.func @_fused_is_kernel(%arg0: i32, %arg1: memref<1x3x16x16xf32, #tpu.memory_space<vmem>>, %arg2: memref<299x16xf32, #tpu.memory_space<vmem>>, %arg3: memref<16x299xf32, #tpu.memory_space<vmem>>, %arg4: memref<3x1000xf32, #tpu.memory_space<vmem>>, %arg5: memref<1x1000xf32, #tpu.memory_space<vmem>>, %arg6: memref<1x1x128xf32, #tpu.memory_space<vmem>>) attributes {dimension_semantics = [#tpu.dimension_semantics<parallel>], iteration_bounds = array<i64: 2>, scalar_prefetch = 0 : i64, scratch_operands = 0 : i64, tpu.core_type = #tpu.core_type<tc>, window_params = [{transform_indices = @transform_0, window_bounds = array<i64: 1, 3, 16, 16>}, {pipeline_mode = #tpu.pipeline_mode<synchronous>, transform_indices = @transform_1, window_bounds = array<i64: 299, 16>}, {pipeline_mode = #tpu.pipeline_mode<synchronous>, transform_indices = @transform_2, window_bounds = array<i64: 16, 299>}, {pipeline_mode = #tpu.pipeline_mode<synchronous>, transform_indices = @transform_3, window_bounds = array<i64: 3, 1000>}, {pipeline_mode = #tpu.pipeline_mode<synchronous>, transform_indices = @transform_4, window_bounds = array<i64: 1, 1000>}, {transform_indices = @transform_5, window_bounds = array<i64: 1, 1, 128>}]} {
    %cst = arith.constant 1.000000e+00 : f32
    %0 = vector.broadcast %cst : f32 to vector<1x299xf32>
    %c0 = arith.constant 0 : index
    %c0_0 = arith.constant 0 : index
    %1 = vector.load %arg5[%c0, %c0_0] : memref<1x1000xf32, #tpu.memory_space<vmem>>, vector<1x1000xf32>
    %c0_1 = arith.constant 0 : index
    %c0_2 = arith.constant 0 : index
    %c0_3 = arith.constant 0 : index
    %c0_4 = arith.constant 0 : index
    %2 = vector.load %arg1[%c0_1, %c0_2, %c0_3, %c0_4] : memref<1x3x16x16xf32, #tpu.memory_space<vmem>>, vector<1x1x16x16xf32>
    %3 = vector.shape_cast %2 : vector<1x1x16x16xf32> to vector<16x16xf32>
    %c0_5 = arith.constant 0 : index
    %c0_6 = arith.constant 0 : index
    %4 = vector.load %arg3[%c0_5, %c0_6] : memref<16x299xf32, #tpu.memory_space<vmem>>, vector<16x299xf32>
    %cst_7 = arith.constant dense<0.000000e+00> : vector<16x299xf32>
    %5 = tpu.matmul %3, %4, %cst_7 {dimension_numbers = #tpu.dot_dimension_numbers<[1], [0], [0], [1], [0, 0, 1, 1], [], []>} : vector<16x16xf32>, vector<16x299xf32>, vector<16x299xf32> -> vector<16x299xf32>
    %c0_8 = arith.constant 0 : index
    %c0_9 = arith.constant 0 : index
    %6 = vector.load %arg2[%c0_8, %c0_9] : memref<299x16xf32, #tpu.memory_space<vmem>>, vector<299x16xf32>
    %cst_10 = arith.constant dense<0.000000e+00> : vector<299x299xf32>
    %7 = tpu.matmul %6, %5, %cst_10 {dimension_numbers = #tpu.dot_dimension_numbers<[1], [0], [0], [1], [0, 0, 1, 1], [], []>} : vector<299x16xf32>, vector<16x299xf32>, vector<299x299xf32> -> vector<299x299xf32>
    %cst_11 = arith.constant dense<0.000000e+00> : vector<1x299xf32>
    %8 = tpu.matmul %0, %7, %cst_11 {dimension_numbers = #tpu.dot_dimension_numbers<[1], [0], [0], [1], [0, 0, 1, 1], [], []>} : vector<1x299xf32>, vector<299x299xf32>, vector<1x299xf32> -> vector<1x299xf32>
    %9 = vector.shape_cast %8 : vector<1x299xf32> to vector<1x1x299xf32>
    %cst_12 = arith.constant dense<0.000000e+00> : vector<1xf32>
    %10 = vector.multi_reduction <add>, %9, %cst_12 [1, 2] : vector<1x1x299xf32> to vector<1xf32>
    %11 = vector.shape_cast %10 : vector<1xf32> to vector<1x1x1xf32>
    %12 = vector.extract %11[0, 0, 0] : f32 from vector<1x1x1xf32>
    %cst_13 = arith.constant 1.1185557E-5 : f32
    %13 = arith.mulf %12, %cst_13 : f32
    %c0_14 = arith.constant 0 : index
    %c0_15 = arith.constant 0 : index
    %14 = vector.load %arg4[%c0_14, %c0_15] : memref<3x1000xf32, #tpu.memory_space<vmem>>, vector<1x1000xf32>
    %15 = vector.broadcast %13 : f32 to vector<1x1000xf32>
    %16 = arith.mulf %15, %14 : vector<1x1000xf32>
    %17 = arith.addf %1, %16 : vector<1x1000xf32>
    %c0_16 = arith.constant 0 : index
    %c1 = arith.constant 1 : index
    %c0_17 = arith.constant 0 : index
    %c0_18 = arith.constant 0 : index
    %18 = vector.load %arg1[%c0_16, %c1, %c0_17, %c0_18] : memref<1x3x16x16xf32, #tpu.memory_space<vmem>>, vector<1x1x16x16xf32>
    %19 = vector.shape_cast %18 : vector<1x1x16x16xf32> to vector<16x16xf32>
    %c0_19 = arith.constant 0 : index
    %c0_20 = arith.constant 0 : index
    %20 = vector.load %arg3[%c0_19, %c0_20] : memref<16x299xf32, #tpu.memory_space<vmem>>, vector<16x299xf32>
    %cst_21 = arith.constant dense<0.000000e+00> : vector<16x299xf32>
    %21 = tpu.matmul %19, %20, %cst_21 {dimension_numbers = #tpu.dot_dimension_numbers<[1], [0], [0], [1], [0, 0, 1, 1], [], []>} : vector<16x16xf32>, vector<16x299xf32>, vector<16x299xf32> -> vector<16x299xf32>
    %c0_22 = arith.constant 0 : index
    %c0_23 = arith.constant 0 : index
    %22 = vector.load %arg2[%c0_22, %c0_23] : memref<299x16xf32, #tpu.memory_space<vmem>>, vector<299x16xf32>
    %cst_24 = arith.constant dense<0.000000e+00> : vector<299x299xf32>
    %23 = tpu.matmul %22, %21, %cst_24 {dimension_numbers = #tpu.dot_dimension_numbers<[1], [0], [0], [1], [0, 0, 1, 1], [], []>} : vector<299x16xf32>, vector<16x299xf32>, vector<299x299xf32> -> vector<299x299xf32>
    %cst_25 = arith.constant dense<0.000000e+00> : vector<1x299xf32>
    %24 = tpu.matmul %0, %23, %cst_25 {dimension_numbers = #tpu.dot_dimension_numbers<[1], [0], [0], [1], [0, 0, 1, 1], [], []>} : vector<1x299xf32>, vector<299x299xf32>, vector<1x299xf32> -> vector<1x299xf32>
    %25 = vector.shape_cast %24 : vector<1x299xf32> to vector<1x1x299xf32>
    %cst_26 = arith.constant dense<0.000000e+00> : vector<1xf32>
    %26 = vector.multi_reduction <add>, %25, %cst_26 [1, 2] : vector<1x1x299xf32> to vector<1xf32>
    %27 = vector.shape_cast %26 : vector<1xf32> to vector<1x1x1xf32>
    %28 = vector.extract %27[0, 0, 0] : f32 from vector<1x1x1xf32>
    %cst_27 = arith.constant 1.1185557E-5 : f32
    %29 = arith.mulf %28, %cst_27 : f32
    %c1_28 = arith.constant 1 : index
    %c0_29 = arith.constant 0 : index
    %30 = vector.load %arg4[%c1_28, %c0_29] : memref<3x1000xf32, #tpu.memory_space<vmem>>, vector<1x1000xf32>
    %31 = vector.broadcast %29 : f32 to vector<1x1000xf32>
    %32 = arith.mulf %31, %30 : vector<1x1000xf32>
    %33 = arith.addf %17, %32 : vector<1x1000xf32>
    %c0_30 = arith.constant 0 : index
    %c2 = arith.constant 2 : index
    %c0_31 = arith.constant 0 : index
    %c0_32 = arith.constant 0 : index
    %34 = vector.load %arg1[%c0_30, %c2, %c0_31, %c0_32] : memref<1x3x16x16xf32, #tpu.memory_space<vmem>>, vector<1x1x16x16xf32>
    %35 = vector.shape_cast %34 : vector<1x1x16x16xf32> to vector<16x16xf32>
    %c0_33 = arith.constant 0 : index
    %c0_34 = arith.constant 0 : index
    %36 = vector.load %arg3[%c0_33, %c0_34] : memref<16x299xf32, #tpu.memory_space<vmem>>, vector<16x299xf32>
    %cst_35 = arith.constant dense<0.000000e+00> : vector<16x299xf32>
    %37 = tpu.matmul %35, %36, %cst_35 {dimension_numbers = #tpu.dot_dimension_numbers<[1], [0], [0], [1], [0, 0, 1, 1], [], []>} : vector<16x16xf32>, vector<16x299xf32>, vector<16x299xf32> -> vector<16x299xf32>
    %c0_36 = arith.constant 0 : index
    %c0_37 = arith.constant 0 : index
    %38 = vector.load %arg2[%c0_36, %c0_37] : memref<299x16xf32, #tpu.memory_space<vmem>>, vector<299x16xf32>
    %cst_38 = arith.constant dense<0.000000e+00> : vector<299x299xf32>
    %39 = tpu.matmul %38, %37, %cst_38 {dimension_numbers = #tpu.dot_dimension_numbers<[1], [0], [0], [1], [0, 0, 1, 1], [], []>} : vector<299x16xf32>, vector<16x299xf32>, vector<299x299xf32> -> vector<299x299xf32>
    %cst_39 = arith.constant dense<0.000000e+00> : vector<1x299xf32>
    %40 = tpu.matmul %0, %39, %cst_39 {dimension_numbers = #tpu.dot_dimension_numbers<[1], [0], [0], [1], [0, 0, 1, 1], [], []>} : vector<1x299xf32>, vector<299x299xf32>, vector<1x299xf32> -> vector<1x299xf32>
    %41 = vector.shape_cast %40 : vector<1x299xf32> to vector<1x1x299xf32>
    %cst_40 = arith.constant dense<0.000000e+00> : vector<1xf32>
    %42 = vector.multi_reduction <add>, %41, %cst_40 [1, 2] : vector<1x1x299xf32> to vector<1xf32>
    %43 = vector.shape_cast %42 : vector<1xf32> to vector<1x1x1xf32>
    %44 = vector.extract %43[0, 0, 0] : f32 from vector<1x1x1xf32>
    %cst_41 = arith.constant 1.1185557E-5 : f32
    %45 = arith.mulf %44, %cst_41 : f32
    %c2_42 = arith.constant 2 : index
    %c0_43 = arith.constant 0 : index
    %46 = vector.load %arg4[%c2_42, %c0_43] : memref<3x1000xf32, #tpu.memory_space<vmem>>, vector<1x1000xf32>
    %47 = vector.broadcast %45 : f32 to vector<1x1000xf32>
    %48 = arith.mulf %47, %46 : vector<1x1000xf32>
    %49 = arith.addf %33, %48 : vector<1x1000xf32>
    %cst_44 = arith.constant dense<0xFF800000> : vector<1xf32>
    %50 = vector.multi_reduction <maximumf>, %49, %cst_44 [1] : vector<1x1000xf32> to vector<1xf32>
    %51 = vector.shape_cast %50 : vector<1xf32> to vector<1x1xf32>
    %52 = vector.broadcast %51 : vector<1x1xf32> to vector<1x1000xf32>
    %53 = arith.subf %49, %52 : vector<1x1000xf32>
    %54 = math.exp %53 : vector<1x1000xf32>
    %cst_45 = arith.constant dense<0.000000e+00> : vector<1xf32>
    %55 = vector.multi_reduction <add>, %54, %cst_45 [1] : vector<1x1000xf32> to vector<1xf32>
    %56 = vector.shape_cast %55 : vector<1xf32> to vector<1x1xf32>
    %57 = vector.broadcast %56 : vector<1x1xf32> to vector<1x1000xf32>
    %58 = arith.divf %54, %57 : vector<1x1000xf32>
    %cst_46 = arith.constant 0.000000e+00 : f32
    %59 = vector.broadcast %cst_46 : f32 to vector<1x1000xf32>
    %60 = arith.cmpf ogt, %58, %59 : vector<1x1000xf32>
    %cst_47 = arith.constant 0.000000e+00 : f32
    %61 = vector.broadcast %cst_47 : f32 to vector<1x1000xf32>
    %62 = arith.subf %61, %58 : vector<1x1000xf32>
    %63 = math.log %58 : vector<1x1000xf32>
    %64 = arith.mulf %62, %63 : vector<1x1000xf32>
    %cst_48 = arith.constant 0.000000e+00 : f32
    %65 = vector.broadcast %cst_48 : f32 to vector<1x1000xf32>
    %66 = arith.select %60, %64, %65 : vector<1x1000xi1>, vector<1x1000xf32>
    %67 = vector.shape_cast %66 : vector<1x1000xf32> to vector<1x1x1000xf32>
    %cst_49 = arith.constant dense<0.000000e+00> : vector<1xf32>
    %68 = vector.multi_reduction <add>, %67, %cst_49 [1, 2] : vector<1x1x1000xf32> to vector<1xf32>
    %69 = vector.shape_cast %68 : vector<1xf32> to vector<1x1x1xf32>
    %70 = vector.extract %69[0, 0, 0] : f32 from vector<1x1x1xf32>
    %71 = vector.broadcast %70 : f32 to vector<1x1x128xf32>
    %c0_50 = arith.constant 0 : index
    %c0_51 = arith.constant 0 : index
    %c0_52 = arith.constant 0 : index
    %72 = vector.load %arg6[%c0_50, %c0_51, %c0_52] : memref<1x1x128xf32, #tpu.memory_space<vmem>>, vector<1x1x128xf32>
    tpu.vector_store %arg6[%c0_50, %c0_51, %c0_52], %71 {strides = array<i32>} : memref<1x1x128xf32, #tpu.memory_space<vmem>>, vector<1x1x128xf32>,
    return
  }
  func.func @transform_0(%arg0: i32) -> (i32, i32, i32, i32) {
    %c0_i32 = arith.constant 0 : i32
    %c0_i32_0 = arith.constant 0 : i32
    %c0_i32_1 = arith.constant 0 : i32
    %c0_i32_2 = arith.constant 0 : i32
    return %arg0, %c0_i32, %c0_i32_0, %c0_i32_1 : i32, i32, i32, i32
  }
  func.func @transform_1(%arg0: i32) -> (i32, i32) {
    %c0_i32 = arith.constant 0 : i32
    %c0_i32_0 = arith.constant 0 : i32
    %c0_i32_1 = arith.constant 0 : i32
    return %c0_i32, %c0_i32_0 : i32, i32
  }
  func.func @transform_2(%arg0: i32) -> (i32, i32) {
    %c0_i32 = arith.constant 0 : i32
    %c0_i32_0 = arith.constant 0 : i32
    %c0_i32_1 = arith.constant 0 : i32
    return %c0_i32, %c0_i32_0 : i32, i32
  }
  func.func @transform_3(%arg0: i32) -> (i32, i32) {
    %c0_i32 = arith.constant 0 : i32
    %c0_i32_0 = arith.constant 0 : i32
    %c0_i32_1 = arith.constant 0 : i32
    return %c0_i32, %c0_i32_0 : i32, i32
  }
  func.func @transform_4(%arg0: i32) -> (i32, i32) {
    %c0_i32 = arith.constant 0 : i32
    %c0_i32_0 = arith.constant 0 : i32
    %c0_i32_1 = arith.constant 0 : i32
    return %c0_i32, %c0_i32_0 : i32, i32
  }
  func.func @transform_5(%arg0: i32) -> (i32, i32, i32) {
    %c0_i32 = arith.constant 0 : i32
    %c0_i32_0 = arith.constant 0 : i32
    %c0_i32_1 = arith.constant 0 : i32
    return %arg0, %c0_i32, %c0_i32_0 : i32, i32, i32
  }
}

</mosaic_0001>

<llo_original>
// kernel: inception_score_forward.1
$region0: #{inception_score_forward.1}
  #allocation0 [shape = 'u32[]', space=smem, size = 0x4, offset = 0x4, fixed_abs, tag = 'smem constant byte address 0x4 - core index']
  #allocation1 [shape = 'u32[144,128]{1,0:T(1,128)}', space=vmem, size = 0x12000, scoped, tag = 'internal scratch']
  %s0 = inlined_call_operand.vmem [shape: f32[2,3,16,16], index: 0, kind: input, shape index: {}]
  %s1 = inlined_call_operand.vmem [shape: f32[299,16], index: 1, kind: input, shape index: {}]
  %s2 = inlined_call_operand.vmem [shape: f32[16,299], index: 2, kind: input, shape index: {}]
  %s3 = inlined_call_operand.vmem [shape: f32[3,1000], index: 3, kind: input, shape index: {}]
  %s4 = inlined_call_operand.vmem [shape: f32[1,1000], index: 4, kind: input, shape index: {}]
  %s5 = inlined_call_operand.vmem [shape: f32[2,1,128], index: 5, kind: output, shape index: {}]
  %s6 = sld [smem:[#allocation0]]
  $region53: #{inception_score_forward.1} parent=0
    _
  %s8 = ssub.s32 1, %s6
  %s9 = scalar_select 0, %s8, %s6
  loop: start=0, step=1, limit=4
  $region2: #{inception_score_forward.1} parent=0 // loop_pre_header
    _
  $region3: #{inception_score_forward.1} parent=0 // loop_header
    %s11 = sphi 0, %s15
    %p12 = scmp.ge.s32.totalorder %s11, 4
    %s21 = sphi 0, %s23
    %s24 = sphi 0, %s21
    %s25 = sphi 0, %s24
    %s41 = sphi 0, %s25
    %s45 = sphi 0, %s45
    %s47 = sphi 0, %s45
    %s48 = sphi 0, %s47
    %s62 = sphi 0, %s48
    %s66 = sphi 0, %s66
    %s68 = sphi 0, %s66
    %s69 = sphi 0, %s68
    %s83 = sphi 0, %s69
    %s87 = sphi 0, %s87
    %s89 = sphi 0, %s87
    %s90 = sphi 0, %s89
    %s104 = sphi 0, %s90
    %s108 = sphi 0, %s108
    %s110 = sphi 0, %s108
    %s111 = sphi 0, %s110
    %s125 = sphi 0, %s111
    %s131 = sphi 0, %s133
    %s134 = sphi 0, %s131
    %s135 = sphi 0, %s134
    %s151 = sphi 0, %s135
  $region4: #{inception_score_forward.1} parent=0 // loop_header_branch
    %14 = sbr.rel (%p12) target = $region8
  $region5: #{inception_score_forward.1} parent=0 // loop_body
    %s16 = ssub.s32 %s11, 1
    %s17 = ssub.s32 %s11, 2
    %s18 = sadd.s32 %s11, 1
    %s19 = ssub.s32 %s11, %s18
    %p20 = scmp.eq.s32.totalorder %s19, 0
    %s22 = sadd.s32 %s21, 1
    %s23 = scalar_select %p20, %s21, %s22
    %p26 = pneg %p20
    %p27 = scmp.eq.s32.totalorder %s11, 1
    %p28 = por %p26, %p27
    %p29 = scmp.ne.s32.totalorder %s21, %s24
    %p30 = scmp.eq.s32.totalorder %s11, 0
    %p31 = por %p29, %p30
    %p32 = scmp.ne.s32.totalorder %s21, %s24
    %p33 = scmp.eq.s32.totalorder %s16, 1
    %p34 = por %p32, %p33
    %p35 = scmp.ne.s32.totalorder %s24, %s25
    %p36 = scmp.eq.s32.totalorder %s16, 0
    %p37 = por %p35, %p36
    %p38 = scmp.ne.s32.totalorder %s24, %s25
    %p39 = scmp.eq.s32.totalorder %s17, 1
    %p40 = por %p38, %p39
    %p42 = scmp.ne.s32.totalorder %s25, %s41
    %p43 = scmp.eq.s32.totalorder %s17, 0
    %p44 = por %p42, %p43
    %s46 = sadd.s32 %s45, 1
    %p49 = scmp.eq.s32.totalorder %s11, 1
    %p50 = scmp.ne.s32.totalorder %s45, %s47
    %p51 = scmp.eq.s32.totalorder %s11, 0
    %p52 = por %p50, %p51
    %p53 = scmp.ne.s32.totalorder %s45, %s47
    %p54 = scmp.eq.s32.totalorder %s16, 1
    %p55 = por %p53, %p54
    %p56 = scmp.ne.s32.totalorder %s47, %s48
    %p57 = scmp.eq.s32.totalorder %s16, 0
    %p58 = por %p56, %p57
    %p59 = scmp.ne.s32.totalorder %s47, %s48
    %p60 = scmp.eq.s32.totalorder %s17, 1
    %p61 = por %p59, %p60
    %p63 = scmp.ne.s32.totalorder %s48, %s62
    %p64 = scmp.eq.s32.totalorder %s17, 0
    %p65 = por %p63, %p64
    %s67 = sadd.s32 %s66, 1
    %p70 = scmp.eq.s32.totalorder %s11, 1
    %p71 = scmp.ne.s32.totalorder %s66, %s68
    %p72 = scmp.eq.s32.totalorder %s11, 0
    %p73 = por %p71, %p72
    %p74 = scmp.ne.s32.totalorder %s66, %s68
    %p75 = scmp.eq.s32.totalorder %s16, 1
    %p76 = por %p74, %p75
    %p77 = scmp.ne.s32.totalorder %s68, %s69
    %p78 = scmp.eq.s32.totalorder %s16, 0
    %p79 = por %p77, %p78
    %p80 = scmp.ne.s32.totalorder %s68, %s69
    %p81 = scmp.eq.s32.totalorder %s17, 1
    %p82 = por %p80, %p81
    %p84 = scmp.ne.s32.totalorder %s69, %s83
    %p85 = scmp.eq.s32.totalorder %s17, 0
    %p86 = por %p84, %p85
    %s88 = sadd.s32 %s87, 1
    %p91 = scmp.eq.s32.totalorder %s11, 1
    %p92 = scmp.ne.s32.totalorder %s87, %s89
    %p93 = scmp.eq.s32.totalorder %s11, 0
    %p94 = por %p92, %p93
    %p95 = scmp.ne.s32.totalorder %s87, %s89
    %p96 = scmp.eq.s32.totalorder %s16, 1
    %p97 = por %p95, %p96
    %p98 = scmp.ne.s32.totalorder %s89, %s90
    %p99 = scmp.eq.s32.totalorder %s16, 0
    %p100 = por %p98, %p99
    %p101 = scmp.ne.s32.totalorder %s89, %s90
    %p102 = scmp.eq.s32.totalorder %s17, 1
    %p103 = por %p101, %p102
    %p105 = scmp.ne.s32.totalorder %s90, %s104
    %p106 = scmp.eq.s32.totalorder %s17, 0
    %p107 = por %p105, %p106
    %s109 = sadd.s32 %s108, 1
    %p112 = scmp.eq.s32.totalorder %s11, 1
    %p113 = scmp.ne.s32.totalorder %s108, %s110
    %p114 = scmp.eq.s32.totalorder %s11, 0
    %p115 = por %p113, %p114
    %p116 = scmp.ne.s32.totalorder %s108, %s110
    %p117 = scmp.eq.s32.totalorder %s16, 1
    %p118 = por %p116, %p117
    %p119 = scmp.ne.s32.totalorder %s110, %s111
    %p120 = scmp.eq.s32.totalorder %s16, 0
    %p121 = por %p119, %p120
    %p122 = scmp.ne.s32.totalorder %s110, %s111
    %p123 = scmp.eq.s32.totalorder %s17, 1
    %p124 = por %p122, %p123
    %p126 = scmp.ne.s32.totalorder %s111, %s125
    %p127 = scmp.eq.s32.totalorder %s17, 0
    %p128 = por %p126, %p127
    %s129 = ssub.s32 %s11, %s18
    %p130 = scmp.eq.s32.totalorder %s129, 0
    %s132 = sadd.s32 %s131, 1
    %s133 = scalar_select %p130, %s131, %s132
    %p136 = pneg %p130
    %p137 = scmp.eq.s32.totalorder %s11, 1
    %p138 = por %p136, %p137
    %p139 = scmp.ne.s32.totalorder %s131, %s134
    %p140 = scmp.eq.s32.totalorder %s11, 0
    %p141 = por %p139, %p140
    %p142 = scmp.ne.s32.totalorder %s131, %s134
    %p143 = scmp.eq.s32.totalorder %s16, 1
    %p144 = por %p142, %p143
    %p145 = scmp.ne.s32.totalorder %s134, %s135
    %p146 = scmp.eq.s32.totalorder %s16, 0
    %p147 = por %p145, %p146
    %p148 = scmp.ne.s32.totalorder %s134, %s135
    %p149 = scmp.eq.s32.totalorder %s17, 1
    %p150 = por %p148, %p149
    %p152 = scmp.ne.s32.totalorder %s135, %s151
    %p153 = scmp.eq.s32.totalorder %s17, 0
    %p154 = por %p152, %p153
    %p155 = scmp.le.s32.totalorder 1, %s11
    %p156 = scmp.lt.s32.totalorder %s11, 3
    %p157 = pnand %p155, %p156
    %p158 = pneg %p157
    // Predicated region
    $region9: #{inception_score_forward.1} parent=5 // pred_check
      _
    $region10: #{inception_score_forward.1} parent=5 // pred_check_branch
      %160 = sbr.rel (%p157) target = $region12
    $region11: #{inception_score_forward.1} parent=5 // pred_region
      %s161 = ssub.s32 %s11, 1
      // Predicated region
      $region13: #{inception_score_forward.1} parent=11 // pred_check
        %p162 = pneg %p58
      $region14: #{inception_score_forward.1} parent=11 // pred_check_branch
        %164 = sbr.rel (%p162) target = $region16
      $region15: #{inception_score_forward.1} parent=11 // pred_region
        _
      $region16: #{inception_score_forward.1} parent=11 // pred_fallthru
        _
      // Predicated region
      $region17: #{inception_score_forward.1} parent=11 // pred_check
        %p165 = pneg %p79
      $region18: #{inception_score_forward.1} parent=11 // pred_check_branch
        %167 = sbr.rel (%p165) target = $region20
      $region19: #{inception_score_forward.1} parent=11 // pred_region
        _
      $region20: #{inception_score_forward.1} parent=11 // pred_fallthru
        _
      // Predicated region
      $region21: #{inception_score_forward.1} parent=11 // pred_check
        %p168 = pneg %p100
      $region22: #{inception_score_forward.1} parent=11 // pred_check_branch
        %170 = sbr.rel (%p168) target = $region24
      $region23: #{inception_score_forward.1} parent=11 // pred_region
        _
      $region24: #{inception_score_forward.1} parent=11 // pred_fallthru
        _
      // Predicated region
      $region25: #{inception_score_forward.1} parent=11 // pred_check
        %p171 = pneg %p121
      $region26: #{inception_score_forward.1} parent=11 // pred_check_branch
        %173 = sbr.rel (%p171) target = $region28
      $region27: #{inception_score_forward.1} parent=11 // pred_region
        _
      $region28: #{inception_score_forward.1} parent=11 // pred_fallthru
        _
    $region12: #{inception_score_forward.1} parent=5 // pred_fallthru
      _
    %p174 = scmp.lt.s32.totalorder %s11, 2
    // Predicated region
    $region29: #{inception_score_forward.1} parent=5 // pred_check
      %p175 = pneg %p174
    $region30: #{inception_score_forward.1} parent=5 // pred_check_branch
      %177 = sbr.rel (%p175) target = $region32
    $region31: #{inception_score_forward.1} parent=5 // pred_region
      // Predicated region
      $region33: #{inception_score_forward.1} parent=31 // pred_check
        %p178 = pneg %p31
      $region34: #{inception_score_forward.1} parent=31 // pred_check_branch
        %180 = sbr.rel (%p178) target = $region36
      $region35: #{inception_score_forward.1} parent=31 // pred_region
        %p181 = scmp.lt.s32.totalorder %s11, 1
        %s182 = scalar_select %p181, %s11, 1
        %s183 = smul.addr %s182, 6
        %s184 = smul.addr %s183, 8
        %s185 = scalar_lea.vmem %s0, %s184
      $region36: #{inception_score_forward.1} parent=31 // pred_fallthru
        _
    $region32: #{inception_score_forward.1} parent=5 // pred_fallthru
      _
    %p186 = scmp.le.s32.totalorder 1, %s11
    %p187 = scmp.lt.s32.totalorder %s11, 3
    %p188 = pnand %p186, %p187
    %p189 = pneg %p188
    // Predicated region
    $region37: #{inception_score_forward.1} parent=5 // pred_check
      _
    $region38: #{inception_score_forward.1} parent=5 // pred_check_branch
      %191 = sbr.rel (%p188) target = $region40
    $region39: #{inception_score_forward.1} parent=5 // pred_region
      %s192 = ssub.s32 %s11, 1
      %p193 = scmp.lt.s32.totalorder %s16, 1
      %s194 = scalar_select %p193, %s16, 1
      %s195 = smul.addr %s194, 6
      %s196 = smul.addr %s195, 8
      %s197 = scalar_lea.vmem %s0, %s196
      %p198 = pneg %p37
      %p199 = pneg %p34
      %p200 = pneg %p58
      %p201 = pneg %p55
      %p202 = pneg %p79
      %p203 = pneg %p76
      %p204 = pneg %p100
      %p205 = pneg %p97
      %p206 = pneg %p121
      %p207 = pneg %p118
      %p208 = pneg %p147
      %p209 = pneg %p144
      %p210 = scmp.lt.s32.totalorder %s16, 1
      %s211 = scalar_select %p210, %s16, 1
      %s212 = scalar_lea.vmem %s5, %s211
      %p213 = scmp.lt.s32.totalorder %s16, 1
      %s214 = scalar_select %p213, %s16, 1
      %s215 = smul.addr %s214, 6
      %s216 = smul.addr %s215, 8
      %s217 = scalar_lea.vmem %s0, %s216
      %p218 = scmp.lt.s32.totalorder %s16, 1
      %s219 = scalar_select %p218, %s16, 1
      %s220 = scalar_lea.vmem %s5, %s219
      %v221 = vld [vmem:[%s4] sm:$0xff]
      %v222 = vld [vmem:[%s217] sm:$0xff]
      %v223 = vld [vmem:[%s217 + $0x8] sm:$0xff]
      %v224 = vld [vmem:[%s2] sm:$0xff]
      %v225 = vld [vmem:[%s2 + $0x8] sm:$0xff]
      %v226 = vld [vmem:[%s2 + $0x10] sm:$0xff]
      %v227 = vld [vmem:[%s2 + $0x18] sm:$0xff]
      %v228 = vld [vmem:[%s2 + $0x20] sm:$0xff]
      %v229 = vld [vmem:[%s2 + $0x28] sm:$0xff]
      %vm230 = vcmask 130048
      %v232 = vsel %vm230, %v222, 0
      %v235 = vsel %vm230, %v223, 0
      %237 = vmatprep.subr.mxu0 0.0
      %238 = vmatpush1.msra.mxu0 0.0
      %239 = vmatprep.subr.mxu0 0.0
      %240 = vmatpush1.msra.mxu0 0.0
      %241 = vmatprep.subr.mxu0 0.0
      %242 = vmatpush1.msra.mxu0 0.0
      %243 = vmatprep.subr.mxu0 0.0
      %244 = vmatpush1.msra.mxu0 0.0
      %245 = vmatprep.subr.mxu0 0.0
      %246 = vmatpush1.msra.mxu0 0.0
      %247 = vmatprep.subr.mxu0 0.0
      %248 = vmatpush1.msra.mxu0 0.0
      %249 = vmatprep.subr.mxu0 0.0
      %250 = vmatpush1.msra.mxu0 0.0
      %251 = vmatprep.subr.mxu0 0.0
      %252 = vmatpush1.msra.mxu0 0.0
      %253 = vmatprep.subr.mxu0 0.0
      %254 = vmatpush1.msra.mxu0 0.0
      %255 = vmatprep.subr.mxu0 0.0
      %256 = vmatpush1.msra.mxu0 0.0
      %257 = vmatprep.subr.mxu0 0.0
      %258 = vmatpush1.msra.mxu0 0.0
      %259 = vmatprep.subr.mxu0 0.0
      %260 = vmatpush1.msra.mxu0 0.0
      %261 = vmatprep.subr.mxu0 0.0
      %262 = vmatpush1.msra.mxu0 0.0
      %263 = vmatprep.subr.mxu0 0.0
      %264 = vmatpush1.msra.mxu0 0.0
      %265 = vmatprep.subr.mxu0 %v228
      %266 = vmatpush1.msra.mxu0 %v227
      %267 = vmatprep.subr.mxu0 %v225
      %268 = vmatpush1.msra.mxu0 %v224
      %269 = vmatprep.subr.mxu0 0.0
      %270 = vmatpush2.msra.mxu0 0.0
      %271 = vmatprep.subr.mxu0 0.0
      %272 = vmatpush2.msra.mxu0 0.0
      %273 = vmatprep.subr.mxu0 0.0
      %274 = vmatpush2.msra.mxu0 0.0
      %275 = vmatprep.subr.mxu0 0.0
      %276 = vmatpush2.msra.mxu0 0.0
      %277 = vmatprep.subr.mxu0 0.0
      %278 = vmatpush2.msra.mxu0 0.0
      %279 = vmatprep.subr.mxu0 0.0
      %280 = vmatpush2.msra.mxu0 0.0
      %281 = vmatprep.subr.mxu0 0.0
      %282 = vmatpush2.msra.mxu0 0.0
      %283 = vmatprep.subr.mxu0 0.0
      %284 = vmatpush2.msra.mxu0 0.0
      %285 = vmatprep.subr.mxu0 0.0
      %286 = vmatpush2.msra.mxu0 0.0
      %287 = vmatprep.subr.mxu0 0.0
      %288 = vmatpush2.msra.mxu0 0.0
      %289 = vmatprep.subr.mxu0 0.0
      %290 = vmatpush2.msra.mxu0 0.0
      %291 = vmatprep.subr.mxu0 0.0
      %292 = vmatpush2.msra.mxu0 0.0
      %293 = vmatprep.subr.mxu0 0.0
      %294 = vmatpush2.msra.mxu0 0.0
      %295 = vmatprep.subr.mxu0 0.0
      %296 = vmatpush2.msra.mxu0 0.0
      %297 = vmatprep.subr.mxu0 0.0
      %298 = vmatpush2.msra.mxu0 0.0
      %299 = vmatprep.subr.mxu0 0.0
      %300 = vmatpush2.msra.mxu0 0.0
      %301 = vmatprep.mubr.f32.mxu0 0.0
      %302 = vmatmul.mubr.f32.gmra.mxu0 %v232
      %v303 = vpop.f32.mrf.mxu0
      %v304 = vadd.f32 0.0, %v303
      %v305 = vpop.f32.mrf.mxu0
      %v306 = vadd.f32 0.0, %v305
      %307 = vmatprep.mubr.f32.mxu0 0.0
      %308 = vmatmul.mubr.f32.gmra.mxu0 %v235
      %v309 = vpop.f32.mrf.mxu0
      %v310 = vadd.f32 0.0, %v309
      %v311 = vpop.f32.mrf.mxu0
      %v312 = vadd.f32 0.0, %v311
      %313 = vdwg.mxu0
      %314 = vmatprep.subr.mxu0 0.0
      %315 = vmatpush1.msra.mxu0 0.0
      %316 = vmatprep.subr.mxu0 0.0
      %317 = vmatpush1.msra.mxu0 0.0
      %318 = vmatprep.subr.mxu0 0.0
      %319 = vmatpush1.msra.mxu0 0.0
      %320 = vmatprep.subr.mxu0 0.0
      %321 = vmatpush1.msra.mxu0 0.0
      %322 = vmatprep.subr.mxu0 0.0
      %323 = vmatpush1.msra.mxu0 0.0
      %324 = vmatprep.subr.mxu0 0.0
      %325 = vmatpush1.msra.mxu0 0.0
      %326 = vmatprep.subr.mxu0 0.0
      %327 = vmatpush1.msra.mxu0 0.0
      %328 = vmatprep.subr.mxu0 0.0
      %329 = vmatpush1.msra.mxu0 0.0
      %330 = vmatprep.subr.mxu0 0.0
      %331 = vmatpush1.msra.mxu0 0.0
      %332 = vmatprep.subr.mxu0 0.0
      %333 = vmatpush1.msra.mxu0 0.0
      %334 = vmatprep.subr.mxu0 0.0
      %335 = vmatpush1.msra.mxu0 0.0
      %336 = vmatprep.subr.mxu0 0.0
      %337 = vmatpush1.msra.mxu0 0.0
      %338 = vmatprep.subr.mxu0 0.0
      %339 = vmatpush1.msra.mxu0 0.0
      %340 = vmatprep.subr.mxu0 0.0
      %341 = vmatpush1.msra.mxu0 0.0
      %342 = vmatprep.subr.mxu0 0.0
      %343 = vmatpush1.msra.mxu0 %v229
      %344 = vmatprep.subr.mxu0 0.0
      %345 = vmatpush1.msra.mxu0 %v226
      %346 = vmatprep.subr.mxu0 0.0
      %347 = vmatpush2.msra.mxu0 0.0
      %348 = vmatprep.subr.mxu0 0.0
      %349 = vmatpush2.msra.mxu0 0.0
      %350 = vmatprep.subr.mxu0 0.0
      %351 = vmatpush2.msra.mxu0 0.0
      %352 = vmatprep.subr.mxu0 0.0
      %353 = vmatpush2.msra.mxu0 0.0
      %354 = vmatprep.subr.mxu0 0.0
      %355 = vmatpush2.msra.mxu0 0.0
      %356 = vmatprep.subr.mxu0 0.0
      %357 = vmatpush2.msra.mxu0 0.0
      %358 = vmatprep.subr.mxu0 0.0
      %359 = vmatpush2.msra.mxu0 0.0
      %360 = vmatprep.subr.mxu0 0.0
      %361 = vmatpush2.msra.mxu0 0.0
      %362 = vmatprep.subr.mxu0 0.0
      %363 = vmatpush2.msra.mxu0 0.0
      %364 = vmatprep.subr.mxu0 0.0
      %365 = vmatpush2.msra.mxu0 0.0
      %366 = vmatprep.subr.mxu0 0.0
      %367 = vmatpush2.msra.mxu0 0.0
      %368 = vmatprep.subr.mxu0 0.0
      %369 = vmatpush2.msra.mxu0 0.0
      %370 = vmatprep.subr.mxu0 0.0
      %371 = vmatpush2.msra.mxu0 0.0
      %372 = vmatprep.subr.mxu0 0.0
      %373 = vmatpush2.msra.mxu0 0.0
      %374 = vmatprep.subr.mxu0 0.0
      %375 = vmatpush2.msra.mxu0 0.0
      %376 = vmatprep.subr.mxu0 0.0
      %377 = vmatpush2.msra.mxu0 0.0
      %378 = vmatprep.mubr.f32.mxu0 0.0
      %379 = vmatmul.mubr.f32.gmra.mxu0 %v232
      %v380 = vpop.f32.mrf.mxu0
      %v381 = vadd.f32 0.0, %v380
      %v382 = vpop.f32.mrf.mxu0
      %383 = vmatprep.mubr.f32.mxu0 0.0
      %384 = vmatmul.mubr.f32.gmra.mxu0 %v235
      %v385 = vpop.f32.mrf.mxu0
      %v386 = vadd.f32 0.0, %v385
      %v387 = vpop.f32.mrf.mxu0
      %388 = vdwg.mxu0
      %v389 = vld [vmem:[%s1] sm:$0xff]
      %v390 = vld [vmem:[%s1 + $0x8] sm:$0xff]
      %v391 = vld [vmem:[%s1 + $0x10] sm:$0xff]
      %v392 = vld [vmem:[%s1 + $0x18] sm:$0xff]
      %v393 = vld [vmem:[%s1 + $0x20] sm:$0xff]
      %v394 = vld [vmem:[%s1 + $0x28] sm:$0xff]
      %v395 = vld [vmem:[%s1 + $0x30] sm:$0xff]
      %v396 = vld [vmem:[%s1 + $0x38] sm:$0xff]
      %v397 = vld [vmem:[%s1 + $0x40] sm:$0xff]
      %v398 = vld [vmem:[%s1 + $0x48] sm:$0xff]
      %v399 = vld [vmem:[%s1 + $0x50] sm:$0xff]
      %v400 = vld [vmem:[%s1 + $0x58] sm:$0xff]
      %v401 = vld [vmem:[%s1 + $0x60] sm:$0xff]
      %v402 = vld [vmem:[%s1 + $0x68] sm:$0xff]
      %v403 = vld [vmem:[%s1 + $0x70] sm:$0xff]
      %v404 = vld [vmem:[%s1 + $0x78] sm:$0xff]
      %v405 = vld [vmem:[%s1 + $0x80] sm:$0xff]
      %v406 = vld [vmem:[%s1 + $0x88] sm:$0xff]
      %v407 = vld [vmem:[%s1 + $0x90] sm:$0xff]
      %v408 = vld [vmem:[%s1 + $0x98] sm:$0xff]
      %v409 = vld [vmem:[%s1 + $0xa0] sm:$0xff]
      %v410 = vld [vmem:[%s1 + $0xa8] sm:$0xff]
      %v411 = vld [vmem:[%s1 + $0xb0] sm:$0xff]
      %v412 = vld [vmem:[%s1 + $0xb8] sm:$0xff]
      %v413 = vld [vmem:[%s1 + $0xc0] sm:$0xff]
      %v414 = vld [vmem:[%s1 + $0xc8] sm:$0xff]
      %v415 = vld [vmem:[%s1 + $0xd0] sm:$0xff]
      %v416 = vld [vmem:[%s1 + $0xd8] sm:$0xff]
      %v417 = vld [vmem:[%s1 + $0xe0] sm:$0xff]
      %v418 = vld [vmem:[%s1 + $0xe8] sm:$0xff]
      %v419 = vld [vmem:[%s1 + $0xf0] sm:$0xff]
      %v420 = vld [vmem:[%s1 + $0xf8] sm:$0xff]
      %v421 = vld [vmem:[%s1 + $0x100] sm:$0xff]
      %v422 = vld [vmem:[%s1 + $0x108] sm:$0xff]
      %v423 = vld [vmem:[%s1 + $0x110] sm:$0xff]
      %v424 = vld [vmem:[%s1 + $0x118] sm:$0xff]
      %v425 = vld [vmem:[%s1 + $0x120] sm:$0xff]
      %v426 = vld [vmem:[%s1 + $0x128] sm:$0x7]
      %v428 = vsel %vm230, %v389, 0
      %v431 = vsel %vm230, %v390, 0
      %v434 = vsel %vm230, %v391, 0
      %v437 = vsel %vm230, %v392, 0
      %v440 = vsel %vm230, %v393, 0
      %v443 = vsel %vm230, %v394, 0
      %v446 = vsel %vm230, %v395, 0
      %v449 = vsel %vm230, %v396, 0
      %v452 = vsel %vm230, %v397, 0
      %v455 = vsel %vm230, %v398, 0
      %v458 = vsel %vm230, %v399, 0
      %v461 = vsel %vm230, %v400, 0
      %v464 = vsel %vm230, %v401, 0
      %v467 = vsel %vm230, %v402, 0
      %v470 = vsel %vm230, %v403, 0
      %v473 = vsel %vm230, %v404, 0
      %v476 = vsel %vm230, %v405, 0
      %v479 = vsel %vm230, %v406, 0
      %v482 = vsel %vm230, %v407, 0
      %v485 = vsel %vm230, %v408, 0
      %v488 = vsel %vm230, %v409, 0
      %v491 = vsel %vm230, %v410, 0
      %v494 = vsel %vm230, %v411, 0
      %v497 = vsel %vm230, %v412, 0
      %v500 = vsel %vm230, %v413, 0
      %v503 = vsel %vm230, %v414, 0
      %v506 = vsel %vm230, %v415, 0
      %v509 = vsel %vm230, %v416, 0
      %v512 = vsel %vm230, %v417, 0
      %v515 = vsel %vm230, %v418, 0
      %v518 = vsel %vm230, %v419, 0
      %v521 = vsel %vm230, %v420, 0
      %v524 = vsel %vm230, %v421, 0
      %v527 = vsel %vm230, %v422, 0
      %v530 = vsel %vm230, %v423, 0
      %v533 = vsel %vm230, %v424, 0
      %v536 = vsel %vm230, %v425, 0
      %v539 = vsel %vm230, %v426, 0
      %541 = vmatprep.subr.mxu0 0.0
      %542 = vmatpush1.msra.mxu0 0.0
      %543 = vmatprep.subr.mxu0 0.0
      %544 = vmatpush1.msra.mxu0 0.0
      %545 = vmatprep.subr.mxu0 0.0
      %546 = vmatpush1.msra.mxu0 0.0
      %547 = vmatprep.subr.mxu0 0.0
      %548 = vmatpush1.msra.mxu0 0.0
      %549 = vmatprep.subr.mxu0 0.0
      %550 = vmatpush1.msra.mxu0 0.0
      %551 = vmatprep.subr.mxu0 0.0
      %552 = vmatpush1.msra.mxu0 0.0
      %553 = vmatprep.subr.mxu0 0.0
      %554 = vmatpush1.msra.mxu0 0.0
      %555 = vmatprep.subr.mxu0 0.0
      %556 = vmatpush1.msra.mxu0 0.0
      %557 = vmatprep.subr.mxu0 0.0
      %558 = vmatpush1.msra.mxu0 0.0
      %559 = vmatprep.subr.mxu0 0.0
      %560 = vmatpush1.msra.mxu0 0.0
      %561 = vmatprep.subr.mxu0 0.0
      %562 = vmatpush1.msra.mxu0 0.0
      %563 = vmatprep.subr.mxu0 0.0
      %564 = vmatpush1.msra.mxu0 0.0
      %565 = vmatprep.subr.mxu0 0.0
      %566 = vmatpush1.msra.mxu0 0.0
      %567 = vmatprep.subr.mxu0 0.0
      %568 = vmatpush1.msra.mxu0 0.0
      %569 = vmatprep.subr.mxu0 %v312
      %570 = vmatpush1.msra.mxu0 %v310
      %571 = vmatprep.subr.mxu0 %v306
      %572 = vmatpush1.msra.mxu0 %v304
      %573 = vmatprep.subr.mxu0 0.0
      %574 = vmatpush2.msra.mxu0 0.0
      %575 = vmatprep.subr.mxu0 0.0
      %576 = vmatpush2.msra.mxu0 0.0
      %577 = vmatprep.subr.mxu0 0.0
      %578 = vmatpush2.msra.mxu0 0.0
      %579 = vmatprep.subr.mxu0 0.0
      %580 = vmatpush2.msra.mxu0 0.0
      %581 = vmatprep.subr.mxu0 0.0
      %582 = vmatpush2.msra.mxu0 0.0
      %583 = vmatprep.subr.mxu0 0.0
      %584 = vmatpush2.msra.mxu0 0.0
      %585 = vmatprep.subr.mxu0 0.0
      %586 = vmatpush2.msra.mxu0 0.0
      %587 = vmatprep.subr.mxu0 0.0
      %588 = vmatpush2.msra.mxu0 0.0
      %589 = vmatprep.subr.mxu0 0.0
      %590 = vmatpush2.msra.mxu0 0.0
      %591 = vmatprep.subr.mxu0 0.0
      %592 = vmatpush2.msra.mxu0 0.0
      %593 = vmatprep.subr.mxu0 0.0
      %594 = vmatpush2.msra.mxu0 0.0
      %595 = vmatprep.subr.mxu0 0.0
      %596 = vmatpush2.msra.mxu0 0.0
      %597 = vmatprep.subr.mxu0 0.0
      %598 = vmatpush2.msra.mxu0 0.0
      %599 = vmatprep.subr.mxu0 0.0
      %600 = vmatpush2.msra.mxu0 0.0
      %601 = vmatprep.subr.mxu0 0.0
      %602 = vmatpush2.msra.mxu0 0.0
      %603 = vmatprep.subr.mxu0 0.0
      %604 = vmatpush2.msra.mxu0 0.0
      %605 = vmatprep.mubr.f32.mxu0 0.0
      %606 = vmatmul.mubr.f32.gmra.mxu0 %v428
      %v607 = vpop.f32.mrf.mxu0
      %v608 = vadd.f32 0.0, %v607
      %v609 = vpop.f32.mrf.mxu0
      %v610 = vadd.f32 0.0, %v609
      %611 = vmatprep.mubr.f32.mxu0 0.0
      %612 = vmatmul.mubr.f32.gmra.mxu0 %v431
      %v613 = vpop.f32.mrf.mxu0
      %v614 = vadd.f32 0.0, %v613
      %v615 = vpop.f32.mrf.mxu0
      %v616 = vadd.f32 0.0, %v615
      %617 = vmatprep.mubr.f32.mxu0 0.0
      %618 = vmatmul.mubr.f32.gmra.mxu0 %v434
      %v619 = vpop.f32.mrf.mxu0
      %v620 = vadd.f32 0.0, %v619
      %v621 = vpop.f32.mrf.mxu0
      %v622 = vadd.f32 0.0, %v621
      %623 = vmatprep.mubr.f32.mxu0 0.0
      %624 = vmatmul.mubr.f32.gmra.mxu0 %v437
      %v625 = vpop.f32.mrf.mxu0
      %v626 = vadd.f32 0.0, %v625
      %v627 = vpop.f32.mrf.mxu0
      %v628 = vadd.f32 0.0, %v627
      %629 = vmatprep.mubr.f32.mxu0 0.0
      %630 = vmatmul.mubr.f32.gmra.mxu0 %v440
      %v631 = vpop.f32.mrf.mxu0
      %v632 = vadd.f32 0.0, %v631
      %v633 = vpop.f32.mrf.mxu0
      %v634 = vadd.f32 0.0, %v633
      %635 = vmatprep.mubr.f32.mxu0 0.0
      %636 = vmatmul.mubr.f32.gmra.mxu0 %v443
      %v637 = vpop.f32.mrf.mxu0
      %v638 = vadd.f32 0.0, %v637
      %v639 = vpop.f32.mrf.mxu0
      %v640 = vadd.f32 0.0, %v639
      %641 = vmatprep.mubr.f32.mxu0 0.0
      %642 = vmatmul.mubr.f32.gmra.mxu0 %v446
      %v643 = vpop.f32.mrf.mxu0
      %v644 = vadd.f32 0.0, %v643
      %v645 = vpop.f32.mrf.mxu0
      %v646 = vadd.f32 0.0, %v645
      %647 = vmatprep.mubr.f32.mxu0 0.0
      %648 = vmatmul.mubr.f32.gmra.mxu0 %v449
      %v649 = vpop.f32.mrf.mxu0
      %v650 = vadd.f32 0.0, %v649
      %v651 = vpop.f32.mrf.mxu0
      %v652 = vadd.f32 0.0, %v651
      %653 = vmatprep.mubr.f32.mxu0 0.0
      %654 = vmatmul.mubr.f32.gmra.mxu0 %v452
      %v655 = vpop.f32.mrf.mxu0
      %v656 = vadd.f32 0.0, %v655
      %v657 = vpop.f32.mrf.mxu0
      %v658 = vadd.f32 0.0, %v657
      %659 = vmatprep.mubr.f32.mxu0 0.0
      %660 = vmatmul.mubr.f32.gmra.mxu0 %v455
      %v661 = vpop.f32.mrf.mxu0
      %v662 = vadd.f32 0.0, %v661
      %v663 = vpop.f32.mrf.mxu0
      %v664 = vadd.f32 0.0, %v663
      %665 = vmatprep.mubr.f32.mxu0 0.0
      %666 = vmatmul.mubr.f32.gmra.mxu0 %v458
      %v667 = vpop.f32.mrf.mxu0
      %v668 = vadd.f32 0.0, %v667
      %v669 = vpop.f32.mrf.mxu0
      %v670 = vadd.f32 0.0, %v669
      %671 = vmatprep.mubr.f32.mxu0 0.0
      %672 = vmatmul.mubr.f32.gmra.mxu0 %v461
      %v673 = vpop.f32.mrf.mxu0
      %v674 = vadd.f32 0.0, %v673
      %v675 = vpop.f32.mrf.mxu0
      %v676 = vadd.f32 0.0, %v675
      %677 = vmatprep.mubr.f32.mxu0 0.0
      %678 = vmatmul.mubr.f32.gmra.mxu0 %v464
      %v679 = vpop.f32.mrf.mxu0
      %v680 = vadd.f32 0.0, %v679
      %v681 = vpop.f32.mrf.mxu0
      %v682 = vadd.f32 0.0, %v681
      %683 = vmatprep.mubr.f32.mxu0 0.0
      %684 = vmatmul.mubr.f32.gmra.mxu0 %v467
      %v685 = vpop.f32.mrf.mxu0
      %v686 = vadd.f32 0.0, %v685
      %v687 = vpop.f32.mrf.mxu0
      %v688 = vadd.f32 0.0, %v687
      %689 = vmatprep.mubr.f32.mxu0 0.0
      %690 = vmatmul.mubr.f32.gmra.mxu0 %v470
      %v691 = vpop.f32.mrf.mxu0
      %v692 = vadd.f32 0.0, %v691
      %v693 = vpop.f32.mrf.mxu0
      %v694 = vadd.f32 0.0, %v693
      %695 = vmatprep.mubr.f32.mxu0 0.0
      %696 = vmatmul.mubr.f32.gmra.mxu0 %v473
      %v697 = vpop.f32.mrf.mxu0
      %v698 = vadd.f32 0.0, %v697
      %v699 = vpop.f32.mrf.mxu0
      %v700 = vadd.f32 0.0, %v699
      %701 = vmatprep.mubr.f32.mxu0 0.0
      %702 = vmatmul.mubr.f32.gmra.mxu0 %v476
      %v703 = vpop.f32.mrf.mxu0
      %v704 = vadd.f32 0.0, %v703
      %v705 = vpop.f32.mrf.mxu0
      %v706 = vadd.f32 0.0, %v705
      %707 = vmatprep.mubr.f32.mxu0 0.0
      %708 = vmatmul.mubr.f32.gmra.mxu0 %v479
      %v709 = vpop.f32.mrf.mxu0
      %v710 = vadd.f32 0.0, %v709
      %v711 = vpop.f32.mrf.mxu0
      %v712 = vadd.f32 0.0, %v711
      %713 = vmatprep.mubr.f32.mxu0 0.0
      %714 = vmatmul.mubr.f32.gmra.mxu0 %v482
      %v715 = vpop.f32.mrf.mxu0
      %v716 = vadd.f32 0.0, %v715
      %v717 = vpop.f32.mrf.mxu0
      %v718 = vadd.f32 0.0, %v717
      %719 = vmatprep.mubr.f32.mxu0 0.0
      %720 = vmatmul.mubr.f32.gmra.mxu0 %v485
      %v721 = vpop.f32.mrf.mxu0
      %v722 = vadd.f32 0.0, %v721
      %v723 = vpop.f32.mrf.mxu0
      %v724 = vadd.f32 0.0, %v723
      %725 = vmatprep.mubr.f32.mxu0 0.0
      %726 = vmatmul.mubr.f32.gmra.mxu0 %v488
      %v727 = vpop.f32.mrf.mxu0
      %v728 = vadd.f32 0.0, %v727
      %v729 = vpop.f32.mrf.mxu0
      %v730 = vadd.f32 0.0, %v729
      %731 = vmatprep.mubr.f32.mxu0 0.0
      %732 = vmatmul.mubr.f32.gmra.mxu0 %v491
      %v733 = vpop.f32.mrf.mxu0
      %v734 = vadd.f32 0.0, %v733
      %v735 = vpop.f32.mrf.mxu0
      %v736 = vadd.f32 0.0, %v735
      %737 = vmatprep.mubr.f32.mxu0 0.0
      %738 = vmatmul.mubr.f32.gmra.mxu0 %v494
      %v739 = vpop.f32.mrf.mxu0
      %v740 = vadd.f32 0.0, %v739
      %v741 = vpop.f32.mrf.mxu0
      %v742 = vadd.f32 0.0, %v741
      %743 = vmatprep.mubr.f32.mxu0 0.0
      %744 = vmatmul.mubr.f32.gmra.mxu0 %v497
      %v745 = vpop.f32.mrf.mxu0
      %v746 = vadd.f32 0.0, %v745
      %v747 = vpop.f32.mrf.mxu0
      %v748 = vadd.f32 0.0, %v747
      %749 = vmatprep.mubr.f32.mxu0 0.0
      %750 = vmatmul.mubr.f32.gmra.mxu0 %v500
      %v751 = vpop.f32.mrf.mxu0
      %v752 = vadd.f32 0.0, %v751
      %v753 = vpop.f32.mrf.mxu0
      %v754 = vadd.f32 0.0, %v753
      %755 = vmatprep.mubr.f32.mxu0 0.0
      %756 = vmatmul.mubr.f32.gmra.mxu0 %v503
      %v757 = vpop.f32.mrf.mxu0
      %v758 = vadd.f32 0.0, %v757
      %v759 = vpop.f32.mrf.mxu0
      %v760 = vadd.f32 0.0, %v759
      %761 = vmatprep.mubr.f32.mxu0 0.0
      %762 = vmatmul.mubr.f32.gmra.mxu0 %v506
      %v763 = vpop.f32.mrf.mxu0
      %v764 = vadd.f32 0.0, %v763
      %v765 = vpop.f32.mrf.mxu0
      %v766 = vadd.f32 0.0, %v765
      %767 = vmatprep.mubr.f32.mxu0 0.0
      %768 = vmatmul.mubr.f32.gmra.mxu0 %v509
      %v769 = vpop.f32.mrf.mxu0
      %v770 = vadd.f32 0.0, %v769
      %v771 = vpop.f32.mrf.mxu0
      %v772 = vadd.f32 0.0, %v771
      %773 = vmatprep.mubr.f32.mxu0 0.0
      %774 = vmatmul.mubr.f32.gmra.mxu0 %v512
      %v775 = vpop.f32.mrf.mxu0
      %v776 = vadd.f32 0.0, %v775
      %v777 = vpop.f32.mrf.mxu0
      %v778 = vadd.f32 0.0, %v777
      %779 = vmatprep.mubr.f32.mxu0 0.0
      %780 = vmatmul.mubr.f32.gmra.mxu0 %v515
      %v781 = vpop.f32.mrf.mxu0
      %v782 = vadd.f32 0.0, %v781
      %v783 = vpop.f32.mrf.mxu0
      %v784 = vadd.f32 0.0, %v783
      %785 = vmatprep.mubr.f32.mxu0 0.0
      %786 = vmatmul.mubr.f32.gmra.mxu0 %v518
      %v787 = vpop.f32.mrf.mxu0
      %v788 = vadd.f32 0.0, %v787
      %v789 = vpop.f32.mrf.mxu0
      %v790 = vadd.f32 0.0, %v789
      %791 = vmatprep.mubr.f32.mxu0 0.0
      %792 = vmatmul.mubr.f32.gmra.mxu0 %v521
      %v793 = vpop.f32.mrf.mxu0
      %v794 = vadd.f32 0.0, %v793
      %v795 = vpop.f32.mrf.mxu0
      %v796 = vadd.f32 0.0, %v795
      %797 = vmatprep.mubr.f32.mxu0 0.0
      %798 = vmatmul.mubr.f32.gmra.mxu0 %v524
      %v799 = vpop.f32.mrf.mxu0
      %v800 = vadd.f32 0.0, %v799
      %v801 = vpop.f32.mrf.mxu0
      %v802 = vadd.f32 0.0, %v801
      %803 = vmatprep.mubr.f32.mxu0 0.0
      %804 = vmatmul.mubr.f32.gmra.mxu0 %v527
      %v805 = vpop.f32.mrf.mxu0
      %v806 = vadd.f32 0.0, %v805
      %v807 = vpop.f32.mrf.mxu0
      %v808 = vadd.f32 0.0, %v807
      %809 = vmatprep.mubr.f32.mxu0 0.0
      %810 = vmatmul.mubr.f32.gmra.mxu0 %v530
      %v811 = vpop.f32.mrf.mxu0
      %v812 = vadd.f32 0.0, %v811
      %v813 = vpop.f32.mrf.mxu0
      %v814 = vadd.f32 0.0, %v813
      %815 = vmatprep.mubr.f32.mxu0 0.0
      %816 = vmatmul.mubr.f32.gmra.mxu0 %v533
      %v817 = vpop.f32.mrf.mxu0
      %v818 = vadd.f32 0.0, %v817
      %v819 = vpop.f32.mrf.mxu0
      %v820 = vadd.f32 0.0, %v819
      %821 = vmatprep.mubr.f32.mxu0 0.0
      %822 = vmatmul.mubr.f32.gmra.mxu0 %v536
      %v823 = vpop.f32.mrf.mxu0
      %v824 = vadd.f32 0.0, %v823
      %v825 = vpop.f32.mrf.mxu0
      %v826 = vadd.f32 0.0, %v825
      %827 = vmatprep.mubr.f32.mxu0 0.0
      %828 = vmatmul.mubr.f32.gmra.mxu0 %v539
      %v829 = vpop.f32.mrf.mxu0
      %v830 = vadd.f32 0.0, %v829
      %v831 = vpop.f32.mrf.mxu0
      %v832 = vadd.f32 0.0, %v831
      %833 = vdwg.mxu0
      %834 = vmatprep.subr.mxu0 0.0
      %835 = vmatpush1.msra.mxu0 0.0
      %836 = vmatprep.subr.mxu0 0.0
      %837 = vmatpush1.msra.mxu0 0.0
      %838 = vmatprep.subr.mxu0 0.0
      %839 = vmatpush1.msra.mxu0 0.0
      %840 = vmatprep.subr.mxu0 0.0
      %841 = vmatpush1.msra.mxu0 0.0
      %842 = vmatprep.subr.mxu0 0.0
      %843 = vmatpush1.msra.mxu0 0.0
      %844 = vmatprep.subr.mxu0 0.0
      %845 = vmatpush1.msra.mxu0 0.0
      %846 = vmatprep.subr.mxu0 0.0
      %847 = vmatpush1.msra.mxu0 0.0
      %848 = vmatprep.subr.mxu0 0.0
      %849 = vmatpush1.msra.mxu0 0.0
      %850 = vmatprep.subr.mxu0 0.0
      %851 = vmatpush1.msra.mxu0 0.0
      %852 = vmatprep.subr.mxu0 0.0
      %853 = vmatpush1.msra.mxu0 0.0
      %854 = vmatprep.subr.mxu0 0.0
      %855 = vmatpush1.msra.mxu0 0.0
      %856 = vmatprep.subr.mxu0 0.0
      %857 = vmatpush1.msra.mxu0 0.0
      %858 = vmatprep.subr.mxu0 0.0
      %859 = vmatpush1.msra.mxu0 0.0
      %860 = vmatprep.subr.mxu0 0.0
      %861 = vmatpush1.msra.mxu0 0.0
      %862 = vmatprep.subr.mxu0 0.0
      %863 = vmatpush1.msra.mxu0 %v386
      %864 = vmatprep.subr.mxu0 0.0
      %865 = vmatpush1.msra.mxu0 %v381
      %866 = vmatprep.subr.mxu0 0.0
      %867 = vmatpush2.msra.mxu0 0.0
      %868 = vmatprep.subr.mxu0 0.0
      %869 = vmatpush2.msra.mxu0 0.0
      %870 = vmatprep.subr.mxu0 0.0
      %871 = vmatpush2.msra.mxu0 0.0
      %872 = vmatprep.subr.mxu0 0.0
      %873 = vmatpush2.msra.mxu0 0.0
      %874 = vmatprep.subr.mxu0 0.0
      %875 = vmatpush2.msra.mxu0 0.0
      %876 = vmatprep.subr.mxu0 0.0
      %877 = vmatpush2.msra.mxu0 0.0
      %878 = vmatprep.subr.mxu0 0.0
      %879 = vmatpush2.msra.mxu0 0.0
      %880 = vmatprep.subr.mxu0 0.0
      %881 = vmatpush2.msra.mxu0 0.0
      %882 = vmatprep.subr.mxu0 0.0
      %883 = vmatpush2.msra.mxu0 0.0
      %884 = vmatprep.subr.mxu0 0.0
      %885 = vmatpush2.msra.mxu0 0.0
      %886 = vmatprep.subr.mxu0 0.0
      %887 = vmatpush2.msra.mxu0 0.0
      %888 = vmatprep.subr.mxu0 0.0
      %889 = vmatpush2.msra.mxu0 0.0
      %890 = vmatprep.subr.mxu0 0.0
      %891 = vmatpush2.msra.mxu0 0.0
      %892 = vmatprep.subr.mxu0 0.0
      %893 = vmatpush2.msra.mxu0 0.0
      %894 = vmatprep.subr.mxu0 0.0
      %895 = vmatpush2.msra.mxu0 0.0
      %896 = vmatprep.subr.mxu0 0.0
      %897 = vmatpush2.msra.mxu0 0.0
      %898 = vmatprep.mubr.f32.mxu0 0.0
      %899 = vmatmul.mubr.f32.gmra.mxu0 %v428
      %v900 = vpop.f32.mrf.mxu0
      %v901 = vadd.f32 0.0, %v900
      %v902 = vpop.f32.mrf.mxu0
      %903 = vmatprep.mubr.f32.mxu0 0.0
      %904 = vmatmul.mubr.f32.gmra.mxu0 %v431
      %v905 = vpop.f32.mrf.mxu0
      %v906 = vadd.f32 0.0, %v905
      %v907 = vpop.f32.mrf.mxu0
      %908 = vmatprep.mubr.f32.mxu0 0.0
      %909 = vmatmul.mubr.f32.gmra.mxu0 %v434
      %v910 = vpop.f32.mrf.mxu0
      %v911 = vadd.f32 0.0, %v910
      %v912 = vpop.f32.mrf.mxu0
      %913 = vmatprep.mubr.f32.mxu0 0.0
      %914 = vmatmul.mubr.f32.gmra.mxu0 %v437
      %v915 = vpop.f32.mrf.mxu0
      %v916 = vadd.f32 0.0, %v915
      %v917 = vpop.f32.mrf.mxu0
      %918 = vmatprep.mubr.f32.mxu0 0.0
      %919 = vmatmul.mubr.f32.gmra.mxu0 %v440
      %v920 = vpop.f32.mrf.mxu0
      %v921 = vadd.f32 0.0, %v920
      %v922 = vpop.f32.mrf.mxu0
      %923 = vmatprep.mubr.f32.mxu0 0.0
      %924 = vmatmul.mubr.f32.gmra.mxu0 %v443
      %v925 = vpop.f32.mrf.mxu0
      %v926 = vadd.f32 0.0, %v925
      %v927 = vpop.f32.mrf.mxu0
      %928 = vmatprep.mubr.f32.mxu0 0.0
      %929 = vmatmul.mubr.f32.gmra.mxu0 %v446
      %v930 = vpop.f32.mrf.mxu0
      %v931 = vadd.f32 0.0, %v930
      %v932 = vpop.f32.mrf.mxu0
      %933 = vmatprep.mubr.f32.mxu0 0.0
      %934 = vmatmul.mubr.f32.gmra.mxu0 %v449
      %v935 = vpop.f32.mrf.mxu0
      %v936 = vadd.f32 0.0, %v935
      %v937 = vpop.f32.mrf.mxu0
      %938 = vmatprep.mubr.f32.mxu0 0.0
      %939 = vmatmul.mubr.f32.gmra.mxu0 %v452
      %v940 = vpop.f32.mrf.mxu0
      %v941 = vadd.f32 0.0, %v940
      %v942 = vpop.f32.mrf.mxu0
      %943 = vmatprep.mubr.f32.mxu0 0.0
      %944 = vmatmul.mubr.f32.gmra.mxu0 %v455
      %v945 = vpop.f32.mrf.mxu0
      %v946 = vadd.f32 0.0, %v945
      %v947 = vpop.f32.mrf.mxu0
      %948 = vmatprep.mubr.f32.mxu0 0.0
      %949 = vmatmul.mubr.f32.gmra.mxu0 %v458
      %v950 = vpop.f32.mrf.mxu0
      %v951 = vadd.f32 0.0, %v950
      %v952 = vpop.f32.mrf.mxu0
      %953 = vmatprep.mubr.f32.mxu0 0.0
      %954 = vmatmul.mubr.f32.gmra.mxu0 %v461
      %v955 = vpop.f32.mrf.mxu0
      %v956 = vadd.f32 0.0, %v955
      %v957 = vpop.f32.mrf.mxu0
      %958 = vmatprep.mubr.f32.mxu0 0.0
      %959 = vmatmul.mubr.f32.gmra.mxu0 %v464
      %v960 = vpop.f32.mrf.mxu0
      %v961 = vadd.f32 0.0, %v960
      %v962 = vpop.f32.mrf.mxu0
      %963 = vmatprep.mubr.f32.mxu0 0.0
      %964 = vmatmul.mubr.f32.gmra.mxu0 %v467
      %v965 = vpop.f32.mrf.mxu0
      %v966 = vadd.f32 0.0, %v965
      %v967 = vpop.f32.mrf.mxu0
      %968 = vmatprep.mubr.f32.mxu0 0.0
      %969 = vmatmul.mubr.f32.gmra.mxu0 %v470
      %v970 = vpop.f32.mrf.mxu0
      %v971 = vadd.f32 0.0, %v970
      %v972 = vpop.f32.mrf.mxu0
      %973 = vmatprep.mubr.f32.mxu0 0.0
      %974 = vmatmul.mubr.f32.gmra.mxu0 %v473
      %v975 = vpop.f32.mrf.mxu0
      %v976 = vadd.f32 0.0, %v975
      %v977 = vpop.f32.mrf.mxu0
      %978 = vmatprep.mubr.f32.mxu0 0.0
      %979 = vmatmul.mubr.f32.gmra.mxu0 %v476
      %v980 = vpop.f32.mrf.mxu0
      %v981 = vadd.f32 0.0, %v980
      %v982 = vpop.f32.mrf.mxu0
      %983 = vmatprep.mubr.f32.mxu0 0.0
      %984 = vmatmul.mubr.f32.gmra.mxu0 %v479
      %v985 = vpop.f32.mrf.mxu0
      %v986 = vadd.f32 0.0, %v985
      %v987 = vpop.f32.mrf.mxu0
      %988 = vmatprep.mubr.f32.mxu0 0.0
      %989 = vmatmul.mubr.f32.gmra.mxu0 %v482
      %v990 = vpop.f32.mrf.mxu0
      %v991 = vadd.f32 0.0, %v990
      %v992 = vpop.f32.mrf.mxu0
      %993 = vmatprep.mubr.f32.mxu0 0.0
      %994 = vmatmul.mubr.f32.gmra.mxu0 %v485
      %v995 = vpop.f32.mrf.mxu0
      %v996 = vadd.f32 0.0, %v995
      %v997 = vpop.f32.mrf.mxu0
      %998 = vmatprep.mubr.f32.mxu0 0.0
      %999 = vmatmul.mubr.f32.gmra.mxu0 %v488
      %v1000 = vpop.f32.mrf.mxu0
      %v1001 = vadd.f32 0.0, %v1000
      %v1002 = vpop.f32.mrf.mxu0
      %1003 = vmatprep.mubr.f32.mxu0 0.0
      %1004 = vmatmul.mubr.f32.gmra.mxu0 %v491
      %v1005 = vpop.f32.mrf.mxu0
      %v1006 = vadd.f32 0.0, %v1005
      %v1007 = vpop.f32.mrf.mxu0
      %1008 = vmatprep.mubr.f32.mxu0 0.0
      %1009 = vmatmul.mubr.f32.gmra.mxu0 %v494
      %v1010 = vpop.f32.mrf.mxu0
      %v1011 = vadd.f32 0.0, %v1010
      %v1012 = vpop.f32.mrf.mxu0
      %1013 = vmatprep.mubr.f32.mxu0 0.0
      %1014 = vmatmul.mubr.f32.gmra.mxu0 %v497
      %v1015 = vpop.f32.mrf.mxu0
      %v1016 = vadd.f32 0.0, %v1015
      %v1017 = vpop.f32.mrf.mxu0
      %1018 = vmatprep.mubr.f32.mxu0 0.0
      %1019 = vmatmul.mubr.f32.gmra.mxu0 %v500
      %v1020 = vpop.f32.mrf.mxu0
      %v1021 = vadd.f32 0.0, %v1020
      %v1022 = vpop.f32.mrf.mxu0
      %1023 = vmatprep.mubr.f32.mxu0 0.0
      %1024 = vmatmul.mubr.f32.gmra.mxu0 %v503
      %v1025 = vpop.f32.mrf.mxu0
      %v1026 = vadd.f32 0.0, %v1025
      %v1027 = vpop.f32.mrf.mxu0
      %1028 = vmatprep.mubr.f32.mxu0 0.0
      %1029 = vmatmul.mubr.f32.gmra.mxu0 %v506
      %v1030 = vpop.f32.mrf.mxu0
      %v1031 = vadd.f32 0.0, %v1030
      %v1032 = vpop.f32.mrf.mxu0
      %1033 = vmatprep.mubr.f32.mxu0 0.0
      %1034 = vmatmul.mubr.f32.gmra.mxu0 %v509
      %v1035 = vpop.f32.mrf.mxu0
      %v1036 = vadd.f32 0.0, %v1035
      %v1037 = vpop.f32.mrf.mxu0
      %1038 = vmatprep.mubr.f32.mxu0 0.0
      %1039 = vmatmul.mubr.f32.gmra.mxu0 %v512
      %v1040 = vpop.f32.mrf.mxu0
      %v1041 = vadd.f32 0.0, %v1040
      %v1042 = vpop.f32.mrf.mxu0
      %1043 = vmatprep.mubr.f32.mxu0 0.0
      %1044 = vmatmul.mubr.f32.gmra.mxu0 %v515
      %v1045 = vpop.f32.mrf.mxu0
      %v1046 = vadd.f32 0.0, %v1045
      %v1047 = vpop.f32.mrf.mxu0
      %1048 = vmatprep.mubr.f32.mxu0 0.0
      %1049 = vmatmul.mubr.f32.gmra.mxu0 %v518
      %v1050 = vpop.f32.mrf.mxu0
      %v1051 = vadd.f32 0.0, %v1050
      %v1052 = vpop.f32.mrf.mxu0
      %1053 = vmatprep.mubr.f32.mxu0 0.0
      %1054 = vmatmul.mubr.f32.gmra.mxu0 %v521
      %v1055 = vpop.f32.mrf.mxu0
      %v1056 = vadd.f32 0.0, %v1055
      %v1057 = vpop.f32.mrf.mxu0
      %1058 = vmatprep.mubr.f32.mxu0 0.0
      %1059 = vmatmul.mubr.f32.gmra.mxu0 %v524
      %v1060 = vpop.f32.mrf.mxu0
      %v1061 = vadd.f32 0.0, %v1060
      %v1062 = vpop.f32.mrf.mxu0
      %1063 = vmatprep.mubr.f32.mxu0 0.0
      %1064 = vmatmul.mubr.f32.gmra.mxu0 %v527
      %v1065 = vpop.f32.mrf.mxu0
      %v1066 = vadd.f32 0.0, %v1065
      %v1067 = vpop.f32.mrf.mxu0
      %1068 = vmatprep.mubr.f32.mxu0 0.0
      %1069 = vmatmul.mubr.f32.gmra.mxu0 %v530
      %v1070 = vpop.f32.mrf.mxu0
      %v1071 = vadd.f32 0.0, %v1070
      %v1072 = vpop.f32.mrf.mxu0
      %1073 = vmatprep.mubr.f32.mxu0 0.0
      %1074 = vmatmul.mubr.f32.gmra.mxu0 %v533
      %v1075 = vpop.f32.mrf.mxu0
      %v1076 = vadd.f32 0.0, %v1075
      %v1077 = vpop.f32.mrf.mxu0
      %1078 = vmatprep.mubr.f32.mxu0 0.0
      %1079 = vmatmul.mubr.f32.gmra.mxu0 %v536
      %v1080 = vpop.f32.mrf.mxu0
      %v1081 = vadd.f32 0.0, %v1080
      %v1082 = vpop.f32.mrf.mxu0
      %1083 = vmatprep.mubr.f32.mxu0 0.0
      %1084 = vmatmul.mubr.f32.gmra.mxu0 %v539
      %v1085 = vpop.f32.mrf.mxu0
      %v1086 = vadd.f32 0.0, %v1085
      %v1087 = vpop.f32.mrf.mxu0
      %1088 = vdwg.mxu0
      %vm1089 = vcmask 351232
      %v1091 = vsel %vm1089, 1.0, 0
      %vm1093 = vcmask 1042432
      %v1095 = vsel %vm1093, %v830, 0
      %v1098 = vsel %vm1093, %v832, 0
      %v1101 = vsel %vm1093, %v1086, 0
      %1103 = vmatprep.subr.mxu0 %v700
      %1104 = vmatpush1.msra.mxu0 %v698
      %1105 = vmatprep.subr.mxu0 %v694
      %1106 = vmatpush1.msra.mxu0 %v692
      %1107 = vmatprep.subr.mxu0 %v688
      %1108 = vmatpush1.msra.mxu0 %v686
      %1109 = vmatprep.subr.mxu0 %v682
      %1110 = vmatpush1.msra.mxu0 %v680
      %1111 = vmatprep.subr.mxu0 %v676
      %1112 = vmatpush1.msra.mxu0 %v674
      %1113 = vmatprep.subr.mxu0 %v670
      %1114 = vmatpush1.msra.mxu0 %v668
      %1115 = vmatprep.subr.mxu0 %v664
      %1116 = vmatpush1.msra.mxu0 %v662
      %1117 = vmatprep.subr.mxu0 %v658
      %1118 = vmatpush1.msra.mxu0 %v656
      %1119 = vmatprep.subr.mxu0 %v652
      %1120 = vmatpush1.msra.mxu0 %v650
      %1121 = vmatprep.subr.mxu0 %v646
      %1122 = vmatpush1.msra.mxu0 %v644
      %1123 = vmatprep.subr.mxu0 %v640
      %1124 = vmatpush1.msra.mxu0 %v638
      %1125 = vmatprep.subr.mxu0 %v634
      %1126 = vmatpush1.msra.mxu0 %v632
      %1127 = vmatprep.subr.mxu0 %v628
      %1128 = vmatpush1.msra.mxu0 %v626
      %1129 = vmatprep.subr.mxu0 %v622
      %1130 = vmatpush1.msra.mxu0 %v620
      %1131 = vmatprep.subr.mxu0 %v616
      %1132 = vmatpush1.msra.mxu0 %v614
      %1133 = vmatprep.subr.mxu0 %v610
      %1134 = vmatpush1.msra.mxu0 %v608
      %1135 = vmatprep.subr.mxu0 %v796
      %1136 = vmatpush2.msra.mxu0 %v794
      %1137 = vmatprep.subr.mxu0 %v790
      %1138 = vmatpush2.msra.mxu0 %v788
      %1139 = vmatprep.subr.mxu0 %v784
      %1140 = vmatpush2.msra.mxu0 %v782
      %1141 = vmatprep.subr.mxu0 %v778
      %1142 = vmatpush2.msra.mxu0 %v776
      %1143 = vmatprep.subr.mxu0 %v772
      %1144 = vmatpush2.msra.mxu0 %v770
      %1145 = vmatprep.subr.mxu0 %v766
      %1146 = vmatpush2.msra.mxu0 %v764
      %1147 = vmatprep.subr.mxu0 %v760
      %1148 = vmatpush2.msra.mxu0 %v758
      %1149 = vmatprep.subr.mxu0 %v754
      %1150 = vmatpush2.msra.mxu0 %v752
      %1151 = vmatprep.subr.mxu0 %v748
      %1152 = vmatpush2.msra.mxu0 %v746
      %1153 = vmatprep.subr.mxu0 %v742
      %1154 = vmatpush2.msra.mxu0 %v740
      %1155 = vmatprep.subr.mxu0 %v736
      %1156 = vmatpush2.msra.mxu0 %v734
      %1157 = vmatprep.subr.mxu0 %v730
      %1158 = vmatpush2.msra.mxu0 %v728
      %1159 = vmatprep.subr.mxu0 %v724
      %1160 = vmatpush2.msra.mxu0 %v722
      %1161 = vmatprep.subr.mxu0 %v718
      %1162 = vmatpush2.msra.mxu0 %v716
      %1163 = vmatprep.subr.mxu0 %v712
      %1164 = vmatpush2.msra.mxu0 %v710
      %1165 = vmatprep.subr.mxu0 %v706
      %1166 = vmatpush2.msra.mxu0 %v704
      %1167 = vmatprep.mubr.f32.mxu0 1.0
      %1168 = vmatmul.mubr.f32.gmra.mxu0 1.0
      %v1169 = vpop.f32.mrf.mxu0
      %v1170 = vadd.f32 0.0, %v1169
      %v1171 = vpop.f32.mrf.mxu0
      %v1172 = vadd.f32 0.0, %v1171
      %1173 = vdwg.mxu0
      %1174 = vmatprep.subr.mxu0 0.0
      %1175 = vmatpush1.msra.mxu0 0.0
      %1176 = vmatprep.subr.mxu0 0.0
      %1177 = vmatpush1.msra.mxu0 0.0
      %1178 = vmatprep.subr.mxu0 0.0
      %1179 = vmatpush1.msra.mxu0 0.0
      %1180 = vmatprep.subr.mxu0 0.0
      %1181 = vmatpush1.msra.mxu0 0.0
      %1182 = vmatprep.subr.mxu0 0.0
      %1183 = vmatpush1.msra.mxu0 0.0
      %1184 = vmatprep.subr.mxu0 0.0
      %1185 = vmatpush1.msra.mxu0 0.0
      %1186 = vmatprep.subr.mxu0 0.0
      %1187 = vmatpush1.msra.mxu0 0.0
      %1188 = vmatprep.subr.mxu0 0.0
      %1189 = vmatpush1.msra.mxu0 0.0
      %1190 = vmatprep.subr.mxu0 0.0
      %1191 = vmatpush1.msra.mxu0 0.0
      %1192 = vmatprep.subr.mxu0 0.0
      %1193 = vmatpush1.msra.mxu0 0.0
      %1194 = vmatprep.subr.mxu0 %v1098
      %1195 = vmatpush1.msra.mxu0 %v1095
      %1196 = vmatprep.subr.mxu0 %v826
      %1197 = vmatpush1.msra.mxu0 %v824
      %1198 = vmatprep.subr.mxu0 %v820
      %1199 = vmatpush1.msra.mxu0 %v818
      %1200 = vmatprep.subr.mxu0 %v814
      %1201 = vmatpush1.msra.mxu0 %v812
      %1202 = vmatprep.subr.mxu0 %v808
      %1203 = vmatpush1.msra.mxu0 %v806
      %1204 = vmatprep.subr.mxu0 %v802
      %1205 = vmatpush1.msra.mxu0 %v800
      %1206 = vmatprep.subr.mxu0 0.0
      %1207 = vmatpush2.msra.mxu0 0.0
      %1208 = vmatprep.subr.mxu0 0.0
      %1209 = vmatpush2.msra.mxu0 0.0
      %1210 = vmatprep.subr.mxu0 0.0
      %1211 = vmatpush2.msra.mxu0 0.0
      %1212 = vmatprep.subr.mxu0 0.0
      %1213 = vmatpush2.msra.mxu0 0.0
      %1214 = vmatprep.subr.mxu0 0.0
      %1215 = vmatpush2.msra.mxu0 0.0
      %1216 = vmatprep.subr.mxu0 0.0
      %1217 = vmatpush2.msra.mxu0 0.0
      %1218 = vmatprep.subr.mxu0 0.0
      %1219 = vmatpush2.msra.mxu0 0.0
      %1220 = vmatprep.subr.mxu0 0.0
      %1221 = vmatpush2.msra.mxu0 0.0
      %1222 = vmatprep.subr.mxu0 0.0
      %1223 = vmatpush2.msra.mxu0 0.0
      %1224 = vmatprep.subr.mxu0 0.0
      %1225 = vmatpush2.msra.mxu0 0.0
      %1226 = vmatprep.subr.mxu0 0.0
      %1227 = vmatpush2.msra.mxu0 0.0
      %1228 = vmatprep.subr.mxu0 0.0
      %1229 = vmatpush2.msra.mxu0 0.0
      %1230 = vmatprep.subr.mxu0 0.0
      %1231 = vmatpush2.msra.mxu0 0.0
      %1232 = vmatprep.subr.mxu0 0.0
      %1233 = vmatpush2.msra.mxu0 0.0
      %1234 = vmatprep.subr.mxu0 0.0
      %1235 = vmatpush2.msra.mxu0 0.0
      %1236 = vmatprep.subr.mxu0 0.0
      %1237 = vmatpush2.msra.mxu0 0.0
      %1238 = vmatprep.mubr.f32.mxu0 0.0
      %1239 = vmatmul.mubr.f32.gmra.mxu0 %v1091
      %v1240 = vpop.f32.mrf.mxu0
      %v1241 = vadd.f32 %v1170, %v1240
      %v1242 = vpop.f32.mrf.mxu0
      %v1243 = vadd.f32 %v1172, %v1242
      %1244 = vdwg.mxu0
      %1245 = vmatprep.subr.mxu0 0.0
      %1246 = vmatpush1.msra.mxu0 %v976
      %1247 = vmatprep.subr.mxu0 0.0
      %1248 = vmatpush1.msra.mxu0 %v971
      %1249 = vmatprep.subr.mxu0 0.0
      %1250 = vmatpush1.msra.mxu0 %v966
      %1251 = vmatprep.subr.mxu0 0.0
      %1252 = vmatpush1.msra.mxu0 %v961
      %1253 = vmatprep.subr.mxu0 0.0
      %1254 = vmatpush1.msra.mxu0 %v956
      %1255 = vmatprep.subr.mxu0 0.0
      %1256 = vmatpush1.msra.mxu0 %v951
      %1257 = vmatprep.subr.mxu0 0.0
      %1258 = vmatpush1.msra.mxu0 %v946
      %1259 = vmatprep.subr.mxu0 0.0
      %1260 = vmatpush1.msra.mxu0 %v941
      %1261 = vmatprep.subr.mxu0 0.0
      %1262 = vmatpush1.msra.mxu0 %v936
      %1263 = vmatprep.subr.mxu0 0.0
      %1264 = vmatpush1.msra.mxu0 %v931
      %1265 = vmatprep.subr.mxu0 0.0
      %1266 = vmatpush1.msra.mxu0 %v926
      %1267 = vmatprep.subr.mxu0 0.0
      %1268 = vmatpush1.msra.mxu0 %v921
      %1269 = vmatprep.subr.mxu0 0.0
      %1270 = vmatpush1.msra.mxu0 %v916
      %1271 = vmatprep.subr.mxu0 0.0
      %1272 = vmatpush1.msra.mxu0 %v911
      %1273 = vmatprep.subr.mxu0 0.0
      %1274 = vmatpush1.msra.mxu0 %v906
      %1275 = vmatprep.subr.mxu0 0.0
      %1276 = vmatpush1.msra.mxu0 %v901
      %1277 = vmatprep.subr.mxu0 0.0
      %1278 = vmatpush2.msra.mxu0 %v1056
      %1279 = vmatprep.subr.mxu0 0.0
      %1280 = vmatpush2.msra.mxu0 %v1051
      %1281 = vmatprep.subr.mxu0 0.0
      %1282 = vmatpush2.msra.mxu0 %v1046
      %1283 = vmatprep.subr.mxu0 0.0
      %1284 = vmatpush2.msra.mxu0 %v1041
      %1285 = vmatprep.subr.mxu0 0.0
      %1286 = vmatpush2.msra.mxu0 %v1036
      %1287 = vmatprep.subr.mxu0 0.0
      %1288 = vmatpush2.msra.mxu0 %v1031
      %1289 = vmatprep.subr.mxu0 0.0
      %1290 = vmatpush2.msra.mxu0 %v1026
      %1291 = vmatprep.subr.mxu0 0.0
      %1292 = vmatpush2.msra.mxu0 %v1021
      %1293 = vmatprep.subr.mxu0 0.0
      %1294 = vmatpush2.msra.mxu0 %v1016
      %1295 = vmatprep.subr.mxu0 0.0
      %1296 = vmatpush2.msra.mxu0 %v1011
      %1297 = vmatprep.subr.mxu0 0.0
      %1298 = vmatpush2.msra.mxu0 %v1006
      %1299 = vmatprep.subr.mxu0 0.0
      %1300 = vmatpush2.msra.mxu0 %v1001
      %1301 = vmatprep.subr.mxu0 0.0
      %1302 = vmatpush2.msra.mxu0 %v996
      %1303 = vmatprep.subr.mxu0 0.0
      %1304 = vmatpush2.msra.mxu0 %v991
      %1305 = vmatprep.subr.mxu0 0.0
      %1306 = vmatpush2.msra.mxu0 %v986
      %1307 = vmatprep.subr.mxu0 0.0
      %1308 = vmatpush2.msra.mxu0 %v981
      %1309 = vmatprep.mubr.f32.mxu0 1.0
      %1310 = vmatmul.mubr.f32.gmra.mxu0 1.0
      %v1311 = vpop.f32.mrf.mxu0
      %v1312 = vadd.f32 0.0, %v1311
      %v1313 = vpop.f32.mrf.mxu0
      %1314 = vdwg.mxu0
      %1315 = vmatprep.subr.mxu0 0.0
      %1316 = vmatpush1.msra.mxu0 0.0
      %1317 = vmatprep.subr.mxu0 0.0
      %1318 = vmatpush1.msra.mxu0 0.0
      %1319 = vmatprep.subr.mxu0 0.0
      %1320 = vmatpush1.msra.mxu0 0.0
      %1321 = vmatprep.subr.mxu0 0.0
      %1322 = vmatpush1.msra.mxu0 0.0
      %1323 = vmatprep.subr.mxu0 0.0
      %1324 = vmatpush1.msra.mxu0 0.0
      %1325 = vmatprep.subr.mxu0 0.0
      %1326 = vmatpush1.msra.mxu0 0.0
      %1327 = vmatprep.subr.mxu0 0.0
      %1328 = vmatpush1.msra.mxu0 0.0
      %1329 = vmatprep.subr.mxu0 0.0
      %1330 = vmatpush1.msra.mxu0 0.0
      %1331 = vmatprep.subr.mxu0 0.0
      %1332 = vmatpush1.msra.mxu0 0.0
      %1333 = vmatprep.subr.mxu0 0.0
      %1334 = vmatpush1.msra.mxu0 0.0
      %1335 = vmatprep.subr.mxu0 0.0
      %1336 = vmatpush1.msra.mxu0 %v1101
      %1337 = vmatprep.subr.mxu0 0.0
      %1338 = vmatpush1.msra.mxu0 %v1081
      %1339 = vmatprep.subr.mxu0 0.0
      %1340 = vmatpush1.msra.mxu0 %v1076
      %1341 = vmatprep.subr.mxu0 0.0
      %1342 = vmatpush1.msra.mxu0 %v1071
      %1343 = vmatprep.subr.mxu0 0.0
      %1344 = vmatpush1.msra.mxu0 %v1066
      %1345 = vmatprep.subr.mxu0 0.0
      %1346 = vmatpush1.msra.mxu0 %v1061
      %1347 = vmatprep.subr.mxu0 0.0
      %1348 = vmatpush2.msra.mxu0 0.0
      %1349 = vmatprep.subr.mxu0 0.0
      %1350 = vmatpush2.msra.mxu0 0.0
      %1351 = vmatprep.subr.mxu0 0.0
      %1352 = vmatpush2.msra.mxu0 0.0
      %1353 = vmatprep.subr.mxu0 0.0
      %1354 = vmatpush2.msra.mxu0 0.0
      %1355 = vmatprep.subr.mxu0 0.0
      %1356 = vmatpush2.msra.mxu0 0.0
      %1357 = vmatprep.subr.mxu0 0.0
      %1358 = vmatpush2.msra.mxu0 0.0
      %1359 = vmatprep.subr.mxu0 0.0
      %1360 = vmatpush2.msra.mxu0 0.0
      %1361 = vmatprep.subr.mxu0 0.0
      %1362 = vmatpush2.msra.mxu0 0.0
      %1363 = vmatprep.subr.mxu0 0.0
      %1364 = vmatpush2.msra.mxu0 0.0
      %1365 = vmatprep.subr.mxu0 0.0
      %1366 = vmatpush2.msra.mxu0 0.0
      %1367 = vmatprep.subr.mxu0 0.0
      %1368 = vmatpush2.msra.mxu0 0.0
      %1369 = vmatprep.subr.mxu0 0.0
      %1370 = vmatpush2.msra.mxu0 0.0
      %1371 = vmatprep.subr.mxu0 0.0
      %1372 = vmatpush2.msra.mxu0 0.0
      %1373 = vmatprep.subr.mxu0 0.0
      %1374 = vmatpush2.msra.mxu0 0.0
      %1375 = vmatprep.subr.mxu0 0.0
      %1376 = vmatpush2.msra.mxu0 0.0
      %1377 = vmatprep.subr.mxu0 0.0
      %1378 = vmatpush2.msra.mxu0 0.0
      %1379 = vmatprep.mubr.f32.mxu0 0.0
      %1380 = vmatmul.mubr.f32.gmra.mxu0 %v1091
      %v1381 = vpop.f32.mrf.mxu0
      %v1382 = vadd.f32 %v1312, %v1381
      %v1383 = vpop.f32.mrf.mxu0
      %1384 = vdwg.mxu0
      %vm1385 = vcmask 1040384
      %v1386 = vsel %vm1385, %v1241, 0.0
      %v1387 = vsel %vm1385, %v1243, 0.0
      %v1388 = vadd.f32 %v1386, %v1387
      %vm1389 = vcmask 344064
      %v1390 = vsel %vm1389, %v1382, 0.0
      %v1391 = vadd.f32 %v1388, %v1390
      %1392 = vadd.xlane.f32.xlu0 %v1391
      %v1393 = vpop.xlane.xlu0 %1392
      %v1394 = vrot.slane %v1393, 4
      %v1395 = vadd.f32 %v1393, %v1394
      %v1396 = vrot.slane %v1395, 2
      %v1397 = vadd.f32 %v1395, %v1396
      %v1398 = vrot.slane %v1397, 1
      %v1399 = vadd.f32 %v1397, %v1398
      %s1400 = vtos %v1399
      %s1401 = smul.f32 %s1400, 1.1185557e-05
      %v1402 = vld [vmem:[%s3] ss:$4 sm:$0xff]
      %v1403 = vstv %s1401
      %v1404 = vmul.f32 %v1403, %v1402
      %v1405 = vadd.f32 %v221, %v1404
      %s1406 = scalar_lea.vmem %s217, 16
      %v1407 = vld [vmem:[%s1406] sm:$0xff]
      %v1408 = vld [vmem:[%s1406 + $0x8] sm:$0xff]
      %v1410 = vsel %vm230, %v1407, 0
      %v1413 = vsel %vm230, %v1408, 0
      %1415 = vmatprep.subr.mxu0 0.0
      %1416 = vmatpush1.msra.mxu0 0.0
      %1417 = vmatprep.subr.mxu0 0.0
      %1418 = vmatpush1.msra.mxu0 0.0
      %1419 = vmatprep.subr.mxu0 0.0
      %1420 = vmatpush1.msra.mxu0 0.0
      %1421 = vmatprep.subr.mxu0 0.0
      %1422 = vmatpush1.msra.mxu0 0.0
      %1423 = vmatprep.subr.mxu0 0.0
      %1424 = vmatpush1.msra.mxu0 0.0
      %1425 = vmatprep.subr.mxu0 0.0
      %1426 = vmatpush1.msra.mxu0 0.0
      %1427 = vmatprep.subr.mxu0 0.0
      %1428 = vmatpush1.msra.mxu0 0.0
      %1429 = vmatprep.subr.mxu0 0.0
      %1430 = vmatpush1.msra.mxu0 0.0
      %1431 = vmatprep.subr.mxu0 0.0
      %1432 = vmatpush1.msra.mxu0 0.0
      %1433 = vmatprep.subr.mxu0 0.0
      %1434 = vmatpush1.msra.mxu0 0.0
      %1435 = vmatprep.subr.mxu0 0.0
      %1436 = vmatpush1.msra.mxu0 0.0
      %1437 = vmatprep.subr.mxu0 0.0
      %1438 = vmatpush1.msra.mxu0 0.0
      %1439 = vmatprep.subr.mxu0 0.0
      %1440 = vmatpush1.msra.mxu0 0.0
      %1441 = vmatprep.subr.mxu0 0.0
      %1442 = vmatpush1.msra.mxu0 0.0
      %1443 = vmatprep.subr.mxu0 %v228
      %1444 = vmatpush1.msra.mxu0 %v227
      %1445 = vmatprep.subr.mxu0 %v225
      %1446 = vmatpush1.msra.mxu0 %v224
      %1447 = vmatprep.subr.mxu0 0.0
      %1448 = vmatpush2.msra.mxu0 0.0
      %1449 = vmatprep.subr.mxu0 0.0
      %1450 = vmatpush2.msra.mxu0 0.0
      %1451 = vmatprep.subr.mxu0 0.0
      %1452 = vmatpush2.msra.mxu0 0.0
      %1453 = vmatprep.subr.mxu0 0.0
      %1454 = vmatpush2.msra.mxu0 0.0
      %1455 = vmatprep.subr.mxu0 0.0
      %1456 = vmatpush2.msra.mxu0 0.0
      %1457 = vmatprep.subr.mxu0 0.0
      %1458 = vmatpush2.msra.mxu0 0.0
      %1459 = vmatprep.subr.mxu0 0.0
      %1460 = vmatpush2.msra.mxu0 0.0
      %1461 = vmatprep.subr.mxu0 0.0
      %1462 = vmatpush2.msra.mxu0 0.0
      %1463 = vmatprep.subr.mxu0 0.0
      %1464 = vmatpush2.msra.mxu0 0.0
      %1465 = vmatprep.subr.mxu0 0.0
      %1466 = vmatpush2.msra.mxu0 0.0
      %1467 = vmatprep.subr.mxu0 0.0
      %1468 = vmatpush2.msra.mxu0 0.0
      %1469 = vmatprep.subr.mxu0 0.0
      %1470 = vmatpush2.msra.mxu0 0.0
      %1471 = vmatprep.subr.mxu0 0.0
      %1472 = vmatpush2.msra.mxu0 0.0
      %1473 = vmatprep.subr.mxu0 0.0
      %1474 = vmatpush2.msra.mxu0 0.0
      %1475 = vmatprep.subr.mxu0 0.0
      %1476 = vmatpush2.msra.mxu0 0.0
      %1477 = vmatprep.subr.mxu0 0.0
      %1478 = vmatpush2.msra.mxu0 0.0
      %1479 = vmatprep.mubr.f32.mxu0 0.0
      %1480 = vmatmul.mubr.f32.gmra.mxu0 %v1410
      %v1481 = vpop.f32.mrf.mxu0
      %v1482 = vadd.f32 0.0, %v1481
      %v1483 = vpop.f32.mrf.mxu0
      %v1484 = vadd.f32 0.0, %v1483
      %1485 = vmatprep.mubr.f32.mxu0 0.0
      %1486 = vmatmul.mubr.f32.gmra.mxu0 %v1413
      %v1487 = vpop.f32.mrf.mxu0
      %v1488 = vadd.f32 0.0, %v1487
      %v1489 = vpop.f32.mrf.mxu0
      %v1490 = vadd.f32 0.0, %v1489
      %1491 = vdwg.mxu0
      %1492 = vmatprep.subr.mxu0 0.0
      %1493 = vmatpush1.msra.mxu0 0.0
      %1494 = vmatprep.subr.mxu0 0.0
      %1495 = vmatpush1.msra.mxu0 0.0
      %1496 = vmatprep.subr.mxu0 0.0
      %1497 = vmatpush1.msra.mxu0 0.0
      %1498 = vmatprep.subr.mxu0 0.0
      %1499 = vmatpush1.msra.mxu0 0.0
      %1500 = vmatprep.subr.mxu0 0.0
      %1501 = vmatpush1.msra.mxu0 0.0
      %1502 = vmatprep.subr.mxu0 0.0
      %1503 = vmatpush1.msra.mxu0 0.0
      %1504 = vmatprep.subr.mxu0 0.0
      %1505 = vmatpush1.msra.mxu0 0.0
      %1506 = vmatprep.subr.mxu0 0.0
      %1507 = vmatpush1.msra.mxu0 0.0
      %1508 = vmatprep.subr.mxu0 0.0
      %1509 = vmatpush1.msra.mxu0 0.0
      %1510 = vmatprep.subr.mxu0 0.0
      %1511 = vmatpush1.msra.mxu0 0.0
      %1512 = vmatprep.subr.mxu0 0.0
      %1513 = vmatpush1.msra.mxu0 0.0
      %1514 = vmatprep.subr.mxu0 0.0
      %1515 = vmatpush1.msra.mxu0 0.0
      %1516 = vmatprep.subr.mxu0 0.0
      %1517 = vmatpush1.msra.mxu0 0.0
      %1518 = vmatprep.subr.mxu0 0.0
      %1519 = vmatpush1.msra.mxu0 0.0
      %1520 = vmatprep.subr.mxu0 0.0
      %1521 = vmatpush1.msra.mxu0 %v229
      %1522 = vmatprep.subr.mxu0 0.0
      %1523 = vmatpush1.msra.mxu0 %v226
      %1524 = vmatprep.subr.mxu0 0.0
      %1525 = vmatpush2.msra.mxu0 0.0
      %1526 = vmatprep.subr.mxu0 0.0
      %1527 = vmatpush2.msra.mxu0 0.0
      %1528 = vmatprep.subr.mxu0 0.0
      %1529 = vmatpush2.msra.mxu0 0.0
      %1530 = vmatprep.subr.mxu0 0.0
      %1531 = vmatpush2.msra.mxu0 0.0
      %1532 = vmatprep.subr.mxu0 0.0
      %1533 = vmatpush2.msra.mxu0 0.0
      %1534 = vmatprep.subr.mxu0 0.0
      %1535 = vmatpush2.msra.mxu0 0.0
      %1536 = vmatprep.subr.mxu0 0.0
      %1537 = vmatpush2.msra.mxu0 0.0
      %1538 = vmatprep.subr.mxu0 0.0
      %1539 = vmatpush2.msra.mxu0 0.0
      %1540 = vmatprep.subr.mxu0 0.0
      %1541 = vmatpush2.msra.mxu0 0.0
      %1542 = vmatprep.subr.mxu0 0.0
      %1543 = vmatpush2.msra.mxu0 0.0
      %1544 = vmatprep.subr.mxu0 0.0
      %1545 = vmatpush2.msra.mxu0 0.0
      %1546 = vmatprep.subr.mxu0 0.0
      %1547 = vmatpush2.msra.mxu0 0.0
      %1548 = vmatprep.subr.mxu0 0.0
      %1549 = vmatpush2.msra.mxu0 0.0
      %1550 = vmatprep.subr.mxu0 0.0
      %1551 = vmatpush2.msra.mxu0 0.0
      %1552 = vmatprep.subr.mxu0 0.0
      %1553 = vmatpush2.msra.mxu0 0.0
      %1554 = vmatprep.subr.mxu0 0.0
      %1555 = vmatpush2.msra.mxu0 0.0
      %1556 = vmatprep.mubr.f32.mxu0 0.0
      %1557 = vmatmul.mubr.f32.gmra.mxu0 %v1410
      %v1558 = vpop.f32.mrf.mxu0
      %v1559 = vadd.f32 0.0, %v1558
      %v1560 = vpop.f32.mrf.mxu0
      %1561 = vmatprep.mubr.f32.mxu0 0.0
      %1562 = vmatmul.mubr.f32.gmra.mxu0 %v1413
      %v1563 = vpop.f32.mrf.mxu0
      %v1564 = vadd.f32 0.0, %v1563
      %v1565 = vpop.f32.mrf.mxu0
      %1566 = vdwg.mxu0
      %1567 = vmatprep.subr.mxu0 0.0
      %1568 = vmatpush1.msra.mxu0 0.0
      %1569 = vmatprep.subr.mxu0 0.0
      %1570 = vmatpush1.msra.mxu0 0.0
      %1571 = vmatprep.subr.mxu0 0.0
      %1572 = vmatpush1.msra.mxu0 0.0
      %1573 = vmatprep.subr.mxu0 0.0
      %1574 = vmatpush1.msra.mxu0 0.0
      %1575 = vmatprep.subr.mxu0 0.0
      %1576 = vmatpush1.msra.mxu0 0.0
      %1577 = vmatprep.subr.mxu0 0.0
      %1578 = vmatpush1.msra.mxu0 0.0
      %1579 = vmatprep.subr.mxu0 0.0
      %1580 = vmatpush1.msra.mxu0 0.0
      %1581 = vmatprep.subr.mxu0 0.0
      %1582 = vmatpush1.msra.mxu0 0.0
      %1583 = vmatprep.subr.mxu0 0.0
      %1584 = vmatpush1.msra.mxu0 0.0
      %1585 = vmatprep.subr.mxu0 0.0
      %1586 = vmatpush1.msra.mxu0 0.0
      %1587 = vmatprep.subr.mxu0 0.0
      %1588 = vmatpush1.msra.mxu0 0.0
      %1589 = vmatprep.subr.mxu0 0.0
      %1590 = vmatpush1.msra.mxu0 0.0
      %1591 = vmatprep.subr.mxu0 0.0
      %1592 = vmatpush1.msra.mxu0 0.0
      %1593 = vmatprep.subr.mxu0 0.0
      %1594 = vmatpush1.msra.mxu0 0.0
      %1595 = vmatprep.subr.mxu0 %v1490
      %1596 = vmatpush1.msra.mxu0 %v1488
      %1597 = vmatprep.subr.mxu0 %v1484
      %1598 = vmatpush1.msra.mxu0 %v1482
      %1599 = vmatprep.subr.mxu0 0.0
      %1600 = vmatpush2.msra.mxu0 0.0
      %1601 = vmatprep.subr.mxu0 0.0
      %1602 = vmatpush2.msra.mxu0 0.0
      %1603 = vmatprep.subr.mxu0 0.0
      %1604 = vmatpush2.msra.mxu0 0.0
      %1605 = vmatprep.subr.mxu0 0.0
      %1606 = vmatpush2.msra.mxu0 0.0
      %1607 = vmatprep.subr.mxu0 0.0
      %1608 = vmatpush2.msra.mxu0 0.0
      %1609 = vmatprep.subr.mxu0 0.0
      %1610 = vmatpush2.msra.mxu0 0.0
      %1611 = vmatprep.subr.mxu0 0.0
      %1612 = vmatpush2.msra.mxu0 0.0
      %1613 = vmatprep.subr.mxu0 0.0
      %1614 = vmatpush2.msra.mxu0 0.0
      %1615 = vmatprep.subr.mxu0 0.0
      %1616 = vmatpush2.msra.mxu0 0.0
      %1617 = vmatprep.subr.mxu0 0.0
      %1618 = vmatpush2.msra.mxu0 0.0
      %1619 = vmatprep.subr.mxu0 0.0
      %1620 = vmatpush2.msra.mxu0 0.0
      %1621 = vmatprep.subr.mxu0 0.0
      %1622 = vmatpush2.msra.mxu0 0.0
      %1623 = vmatprep.subr.mxu0 0.0
      %1624 = vmatpush2.msra.mxu0 0.0
      %1625 = vmatprep.subr.mxu0 0.0
      %1626 = vmatpush2.msra.mxu0 0.0
      %1627 = vmatprep.subr.mxu0 0.0
      %1628 = vmatpush2.msra.mxu0 0.0
      %1629 = vmatprep.subr.mxu0 0.0
      %1630 = vmatpush2.msra.mxu0 0.0
      %1631 = vmatprep.mubr.f32.mxu0 0.0
      %1632 = vmatmul.mubr.f32.gmra.mxu0 %v428
      %v1633 = vpop.f32.mrf.mxu0
      %v1634 = vadd.f32 0.0, %v1633
      %v1635 = vpop.f32.mrf.mxu0
      %v1636 = vadd.f32 0.0, %v1635
      %1637 = vmatprep.mubr.f32.mxu0 0.0
      %1638 = vmatmul.mubr.f32.gmra.mxu0 %v431
      %v1639 = vpop.f32.mrf.mxu0
      %v1640 = vadd.f32 0.0, %v1639
      %v1641 = vpop.f32.mrf.mxu0
      %v1642 = vadd.f32 0.0, %v1641
      %1643 = vmatprep.mubr.f32.mxu0 0.0
      %1644 = vmatmul.mubr.f32.gmra.mxu0 %v434
      %v1645 = vpop.f32.mrf.mxu0
      %v1646 = vadd.f32 0.0, %v1645
      %v1647 = vpop.f32.mrf.mxu0
      %v1648 = vadd.f32 0.0, %v1647
      %1649 = vmatprep.mubr.f32.mxu0 0.0
      %1650 = vmatmul.mubr.f32.gmra.mxu0 %v437
      %v1651 = vpop.f32.mrf.mxu0
      %v1652 = vadd.f32 0.0, %v1651
      %v1653 = vpop.f32.mrf.mxu0
      %v1654 = vadd.f32 0.0, %v1653
      %1655 = vmatprep.mubr.f32.mxu0 0.0
      %1656 = vmatmul.mubr.f32.gmra.mxu0 %v440
      %v1657 = vpop.f32.mrf.mxu0
      %v1658 = vadd.f32 0.0, %v1657
      %v1659 = vpop.f32.mrf.mxu0
      %v1660 = vadd.f32 0.0, %v1659
      %1661 = vmatprep.mubr.f32.mxu0 0.0
      %1662 = vmatmul.mubr.f32.gmra.mxu0 %v443
      %v1663 = vpop.f32.mrf.mxu0
      %v1664 = vadd.f32 0.0, %v1663
      %v1665 = vpop.f32.mrf.mxu0
      %v1666 = vadd.f32 0.0, %v1665
      %1667 = vmatprep.mubr.f32.mxu0 0.0
      %1668 = vmatmul.mubr.f32.gmra.mxu0 %v446
      %v1669 = vpop.f32.mrf.mxu0
      %v1670 = vadd.f32 0.0, %v1669
      %v1671 = vpop.f32.mrf.mxu0
      %v1672 = vadd.f32 0.0, %v1671
      %1673 = vmatprep.mubr.f32.mxu0 0.0
      %1674 = vmatmul.mubr.f32.gmra.mxu0 %v449
      %v1675 = vpop.f32.mrf.mxu0
      %v1676 = vadd.f32 0.0, %v1675
      %v1677 = vpop.f32.mrf.mxu0
      %v1678 = vadd.f32 0.0, %v1677
      %1679 = vmatprep.mubr.f32.mxu0 0.0
      %1680 = vmatmul.mubr.f32.gmra.mxu0 %v452
      %v1681 = vpop.f32.mrf.mxu0
      %v1682 = vadd.f32 0.0, %v1681
      %v1683 = vpop.f32.mrf.mxu0
      %v1684 = vadd.f32 0.0, %v1683
      %1685 = vmatprep.mubr.f32.mxu0 0.0
      %1686 = vmatmul.mubr.f32.gmra.mxu0 %v455
      %v1687 = vpop.f32.mrf.mxu0
      %v1688 = vadd.f32 0.0, %v1687
      %v1689 = vpop.f32.mrf.mxu0
      %v1690 = vadd.f32 0.0, %v1689
      %1691 = vmatprep.mubr.f32.mxu0 0.0
      %1692 = vmatmul.mubr.f32.gmra.mxu0 %v458
      %v1693 = vpop.f32.mrf.mxu0
      %v1694 = vadd.f32 0.0, %v1693
      %v1695 = vpop.f32.mrf.mxu0
      %v1696 = vadd.f32 0.0, %v1695
      %1697 = vmatprep.mubr.f32.mxu0 0.0
      %1698 = vmatmul.mubr.f32.gmra.mxu0 %v461
      %v1699 = vpop.f32.mrf.mxu0
      %v1700 = vadd.f32 0.0, %v1699
      %v1701 = vpop.f32.mrf.mxu0
      %v1702 = vadd.f32 0.0, %v1701
      %1703 = vmatprep.mubr.f32.mxu0 0.0
      %1704 = vmatmul.mubr.f32.gmra.mxu0 %v464
      %v1705 = vpop.f32.mrf.mxu0
      %v1706 = vadd.f32 0.0, %v1705
      %v1707 = vpop.f32.mrf.mxu0
      %v1708 = vadd.f32 0.0, %v1707
      %1709 = vmatprep.mubr.f32.mxu0 0.0
      %1710 = vmatmul.mubr.f32.gmra.mxu0 %v467
      %v1711 = vpop.f32.mrf.mxu0
      %v1712 = vadd.f32 0.0, %v1711
      %v1713 = vpop.f32.mrf.mxu0
      %v1714 = vadd.f32 0.0, %v1713
      %1715 = vmatprep.mubr.f32.mxu0 0.0
      %1716 = vmatmul.mubr.f32.gmra.mxu0 %v470
      %v1717 = vpop.f32.mrf.mxu0
      %v1718 = vadd.f32 0.0, %v1717
      %v1719 = vpop.f32.mrf.mxu0
      %v1720 = vadd.f32 0.0, %v1719
      %1721 = vmatprep.mubr.f32.mxu0 0.0
      %1722 = vmatmul.mubr.f32.gmra.mxu0 %v473
      %v1723 = vpop.f32.mrf.mxu0
      %v1724 = vadd.f32 0.0, %v1723
      %v1725 = vpop.f32.mrf.mxu0
      %v1726 = vadd.f32 0.0, %v1725
      %1727 = vmatprep.mubr.f32.mxu0 0.0
      %1728 = vmatmul.mubr.f32.gmra.mxu0 %v476
      %v1729 = vpop.f32.mrf.mxu0
      %v1730 = vadd.f32 0.0, %v1729
      %v1731 = vpop.f32.mrf.mxu0
      %v1732 = vadd.f32 0.0, %v1731
      %1733 = vmatprep.mubr.f32.mxu0 0.0
      %1734 = vmatmul.mubr.f32.gmra.mxu0 %v479
      %v1735 = vpop.f32.mrf.mxu0
      %v1736 = vadd.f32 0.0, %v1735
      %v1737 = vpop.f32.mrf.mxu0
      %v1738 = vadd.f32 0.0, %v1737
      %1739 = vmatprep.mubr.f32.mxu0 0.0
      %1740 = vmatmul.mubr.f32.gmra.mxu0 %v482
      %v1741 = vpop.f32.mrf.mxu0
      %v1742 = vadd.f32 0.0, %v1741
      %v1743 = vpop.f32.mrf.mxu0
      %v1744 = vadd.f32 0.0, %v1743
      %1745 = vmatprep.mubr.f32.mxu0 0.0
      %1746 = vmatmul.mubr.f32.gmra.mxu0 %v485
      %v1747 = vpop.f32.mrf.mxu0
      %v1748 = vadd.f32 0.0, %v1747
      %v1749 = vpop.f32.mrf.mxu0
      %v1750 = vadd.f32 0.0, %v1749
      %1751 = vmatprep.mubr.f32.mxu0 0.0
      %1752 = vmatmul.mubr.f32.gmra.mxu0 %v488
      %v1753 = vpop.f32.mrf.mxu0
      %v1754 = vadd.f32 0.0, %v1753
      %v1755 = vpop.f32.mrf.mxu0
      %v1756 = vadd.f32 0.0, %v1755
      %1757 = vmatprep.mubr.f32.mxu0 0.0
      %1758 = vmatmul.mubr.f32.gmra.mxu0 %v491
      %v1759 = vpop.f32.mrf.mxu0
      %v1760 = vadd.f32 0.0, %v1759
      %v1761 = vpop.f32.mrf.mxu0
      %v1762 = vadd.f32 0.0, %v1761
      %1763 = vmatprep.mubr.f32.mxu0 0.0
      %1764 = vmatmul.mubr.f32.gmra.mxu0 %v494
      %v1765 = vpop.f32.mrf.mxu0
      %v1766 = vadd.f32 0.0, %v1765
      %v1767 = vpop.f32.mrf.mxu0
      %v1768 = vadd.f32 0.0, %v1767
      %1769 = vmatprep.mubr.f32.mxu0 0.0
      %1770 = vmatmul.mubr.f32.gmra.mxu0 %v497
      %v1771 = vpop.f32.mrf.mxu0
      %v1772 = vadd.f32 0.0, %v1771
      %v1773 = vpop.f32.mrf.mxu0
      %v1774 = vadd.f32 0.0, %v1773
      %1775 = vmatprep.mubr.f32.mxu0 0.0
      %1776 = vmatmul.mubr.f32.gmra.mxu0 %v500
      %v1777 = vpop.f32.mrf.mxu0
      %v1778 = vadd.f32 0.0, %v1777
      %v1779 = vpop.f32.mrf.mxu0
      %v1780 = vadd.f32 0.0, %v1779
      %1781 = vmatprep.mubr.f32.mxu0 0.0
      %1782 = vmatmul.mubr.f32.gmra.mxu0 %v503
      %v1783 = vpop.f32.mrf.mxu0
      %v1784 = vadd.f32 0.0, %v1783
      %v1785 = vpop.f32.mrf.mxu0
      %v1786 = vadd.f32 0.0, %v1785
      %1787 = vmatprep.mubr.f32.mxu0 0.0
      %1788 = vmatmul.mubr.f32.gmra.mxu0 %v506
      %v1789 = vpop.f32.mrf.mxu0
      %v1790 = vadd.f32 0.0, %v1789
      %v1791 = vpop.f32.mrf.mxu0
      %v1792 = vadd.f32 0.0, %v1791
      %1793 = vmatprep.mubr.f32.mxu0 0.0
      %1794 = vmatmul.mubr.f32.gmra.mxu0 %v509
      %v1795 = vpop.f32.mrf.mxu0
      %v1796 = vadd.f32 0.0, %v1795
      %v1797 = vpop.f32.mrf.mxu0
      %v1798 = vadd.f32 0.0, %v1797
      %1799 = vmatprep.mubr.f32.mxu0 0.0
      %1800 = vmatmul.mubr.f32.gmra.mxu0 %v512
      %v1801 = vpop.f32.mrf.mxu0
      %v1802 = vadd.f32 0.0, %v1801
      %v1803 = vpop.f32.mrf.mxu0
      %v1804 = vadd.f32 0.0, %v1803
      %1805 = vmatprep.mubr.f32.mxu0 0.0
      %1806 = vmatmul.mubr.f32.gmra.mxu0 %v515
      %v1807 = vpop.f32.mrf.mxu0
      %v1808 = vadd.f32 0.0, %v1807
      %v1809 = vpop.f32.mrf.mxu0
      %v1810 = vadd.f32 0.0, %v1809
      %1811 = vmatprep.mubr.f32.mxu0 0.0
      %1812 = vmatmul.mubr.f32.gmra.mxu0 %v518
      %v1813 = vpop.f32.mrf.mxu0
      %v1814 = vadd.f32 0.0, %v1813
      %v1815 = vpop.f32.mrf.mxu0
      %v1816 = vadd.f32 0.0, %v1815
      %1817 = vmatprep.mubr.f32.mxu0 0.0
      %1818 = vmatmul.mubr.f32.gmra.mxu0 %v521
      %v1819 = vpop.f32.mrf.mxu0
      %v1820 = vadd.f32 0.0, %v1819
      %v1821 = vpop.f32.mrf.mxu0
      %v1822 = vadd.f32 0.0, %v1821
      %1823 = vmatprep.mubr.f32.mxu0 0.0
      %1824 = vmatmul.mubr.f32.gmra.mxu0 %v524
      %v1825 = vpop.f32.mrf.mxu0
      %v1826 = vadd.f32 0.0, %v1825
      %v1827 = vpop.f32.mrf.mxu0
      %v1828 = vadd.f32 0.0, %v1827
      %1829 = vmatprep.mubr.f32.mxu0 0.0
      %1830 = vmatmul.mubr.f32.gmra.mxu0 %v527
      %v1831 = vpop.f32.mrf.mxu0
      %v1832 = vadd.f32 0.0, %v1831
      %v1833 = vpop.f32.mrf.mxu0
      %v1834 = vadd.f32 0.0, %v1833
      %1835 = vmatprep.mubr.f32.mxu0 0.0
      %1836 = vmatmul.mubr.f32.gmra.mxu0 %v530
      %v1837 = vpop.f32.mrf.mxu0
      %v1838 = vadd.f32 0.0, %v1837
      %v1839 = vpop.f32.mrf.mxu0
      %v1840 = vadd.f32 0.0, %v1839
      %1841 = vmatprep.mubr.f32.mxu0 0.0
      %1842 = vmatmul.mubr.f32.gmra.mxu0 %v533
      %v1843 = vpop.f32.mrf.mxu0
      %v1844 = vadd.f32 0.0, %v1843
      %v1845 = vpop.f32.mrf.mxu0
      %v1846 = vadd.f32 0.0, %v1845
      %1847 = vmatprep.mubr.f32.mxu0 0.0
      %1848 = vmatmul.mubr.f32.gmra.mxu0 %v536
      %v1849 = vpop.f32.mrf.mxu0
      %v1850 = vadd.f32 0.0, %v1849
      %v1851 = vpop.f32.mrf.mxu0
      %v1852 = vadd.f32 0.0, %v1851
      %1853 = vmatprep.mubr.f32.mxu0 0.0
      %1854 = vmatmul.mubr.f32.gmra.mxu0 %v539
      %v1855 = vpop.f32.mrf.mxu0
      %v1856 = vadd.f32 0.0, %v1855
      %v1857 = vpop.f32.mrf.mxu0
      %v1858 = vadd.f32 0.0, %v1857
      %1859 = vdwg.mxu0
      %1860 = vmatprep.subr.mxu0 0.0
      %1861 = vmatpush1.msra.mxu0 0.0
      %1862 = vmatprep.subr.mxu0 0.0
      %1863 = vmatpush1.msra.mxu0 0.0
      %1864 = vmatprep.subr.mxu0 0.0
      %1865 = vmatpush1.msra.mxu0 0.0
      %1866 = vmatprep.subr.mxu0 0.0
      %1867 = vmatpush1.msra.mxu0 0.0
      %1868 = vmatprep.subr.mxu0 0.0
      %1869 = vmatpush1.msra.mxu0 0.0
      %1870 = vmatprep.subr.mxu0 0.0
      %1871 = vmatpush1.msra.mxu0 0.0
      %1872 = vmatprep.subr.mxu0 0.0
      %1873 = vmatpush1.msra.mxu0 0.0
      %1874 = vmatprep.subr.mxu0 0.0
      %1875 = vmatpush1.msra.mxu0 0.0
      %1876 = vmatprep.subr.mxu0 0.0
      %1877 = vmatpush1.msra.mxu0 0.0
      %1878 = vmatprep.subr.mxu0 0.0
      %1879 = vmatpush1.msra.mxu0 0.0
      %1880 = vmatprep.subr.mxu0 0.0
      %1881 = vmatpush1.msra.mxu0 0.0
      %1882 = vmatprep.subr.mxu0 0.0
      %1883 = vmatpush1.msra.mxu0 0.0
      %1884 = vmatprep.subr.mxu0 0.0
      %1885 = vmatpush1.msra.mxu0 0.0
      %1886 = vmatprep.subr.mxu0 0.0
      %1887 = vmatpush1.msra.mxu0 0.0
      %1888 = vmatprep.subr.mxu0 0.0
      %1889 = vmatpush1.msra.mxu0 %v1564
      %1890 = vmatprep.subr.mxu0 0.0
      %1891 = vmatpush1.msra.mxu0 %v1559
      %1892 = vmatprep.subr.mxu0 0.0
      %1893 = vmatpush2.msra.mxu0 0.0
      %1894 = vmatprep.subr.mxu0 0.0
      %1895 = vmatpush2.msra.mxu0 0.0
      %1896 = vmatprep.subr.mxu0 0.0
      %1897 = vmatpush2.msra.mxu0 0.0
      %1898 = vmatprep.subr.mxu0 0.0
      %1899 = vmatpush2.msra.mxu0 0.0
      %1900 = vmatprep.subr.mxu0 0.0
      %1901 = vmatpush2.msra.mxu0 0.0
      %1902 = vmatprep.subr.mxu0 0.0
      %1903 = vmatpush2.msra.mxu0 0.0
      %1904 = vmatprep.subr.mxu0 0.0
      %1905 = vmatpush2.msra.mxu0 0.0
      %1906 = vmatprep.subr.mxu0 0.0
      %1907 = vmatpush2.msra.mxu0 0.0
      %1908 = vmatprep.subr.mxu0 0.0
      %1909 = vmatpush2.msra.mxu0 0.0
      %1910 = vmatprep.subr.mxu0 0.0
      %1911 = vmatpush2.msra.mxu0 0.0
      %1912 = vmatprep.subr.mxu0 0.0
      %1913 = vmatpush2.msra.mxu0 0.0
      %1914 = vmatprep.subr.mxu0 0.0
      %1915 = vmatpush2.msra.mxu0 0.0
      %1916 = vmatprep.subr.mxu0 0.0
      %1917 = vmatpush2.msra.mxu0 0.0
      %1918 = vmatprep.subr.mxu0 0.0
      %1919 = vmatpush2.msra.mxu0 0.0
      %1920 = vmatprep.subr.mxu0 0.0
      %1921 = vmatpush2.msra.mxu0 0.0
      %1922 = vmatprep.subr.mxu0 0.0
      %1923 = vmatpush2.msra.mxu0 0.0
      %1924 = vmatprep.mubr.f32.mxu0 0.0
      %1925 = vmatmul.mubr.f32.gmra.mxu0 %v428
      %v1926 = vpop.f32.mrf.mxu0
      %v1927 = vadd.f32 0.0, %v1926
      %v1928 = vpop.f32.mrf.mxu0
      %1929 = vmatprep.mubr.f32.mxu0 0.0
      %1930 = vmatmul.mubr.f32.gmra.mxu0 %v431
      %v1931 = vpop.f32.mrf.mxu0
      %v1932 = vadd.f32 0.0, %v1931
      %v1933 = vpop.f32.mrf.mxu0
      %1934 = vmatprep.mubr.f32.mxu0 0.0
      %1935 = vmatmul.mubr.f32.gmra.mxu0 %v434
      %v1936 = vpop.f32.mrf.mxu0
      %v1937 = vadd.f32 0.0, %v1936
      %v1938 = vpop.f32.mrf.mxu0
      %1939 = vmatprep.mubr.f32.mxu0 0.0
      %1940 = vmatmul.mubr.f32.gmra.mxu0 %v437
      %v1941 = vpop.f32.mrf.mxu0
      %v1942 = vadd.f32 0.0, %v1941
      %v1943 = vpop.f32.mrf.mxu0
      %1944 = vmatprep.mubr.f32.mxu0 0.0
      %1945 = vmatmul.mubr.f32.gmra.mxu0 %v440
      %v1946 = vpop.f32.mrf.mxu0
      %v1947 = vadd.f32 0.0, %v1946
      %v1948 = vpop.f32.mrf.mxu0
      %1949 = vmatprep.mubr.f32.mxu0 0.0
      %1950 = vmatmul.mubr.f32.gmra.mxu0 %v443
      %v1951 = vpop.f32.mrf.mxu0
      %v1952 = vadd.f32 0.0, %v1951
      %v1953 = vpop.f32.mrf.mxu0
      %1954 = vmatprep.mubr.f32.mxu0 0.0
      %1955 = vmatmul.mubr.f32.gmra.mxu0 %v446
      %v1956 = vpop.f32.mrf.mxu0
      %v1957 = vadd.f32 0.0, %v1956
      %v1958 = vpop.f32.mrf.mxu0
      %1959 = vmatprep.mubr.f32.mxu0 0.0
      %1960 = vmatmul.mubr.f32.gmra.mxu0 %v449
      %v1961 = vpop.f32.mrf.mxu0
      %v1962 = vadd.f32 0.0, %v1961
      %v1963 = vpop.f32.mrf.mxu0
      %1964 = vmatprep.mubr.f32.mxu0 0.0
      %1965 = vmatmul.mubr.f32.gmra.mxu0 %v452
      %v1966 = vpop.f32.mrf.mxu0
      %v1967 = vadd.f32 0.0, %v1966
      %v1968 = vpop.f32.mrf.mxu0
      %1969 = vmatprep.mubr.f32.mxu0 0.0
      %1970 = vmatmul.mubr.f32.gmra.mxu0 %v455
      %v1971 = vpop.f32.mrf.mxu0
      %v1972 = vadd.f32 0.0, %v1971
      %v1973 = vpop.f32.mrf.mxu0
      %1974 = vmatprep.mubr.f32.mxu0 0.0
      %1975 = vmatmul.mubr.f32.gmra.mxu0 %v458
      %v1976 = vpop.f32.mrf.mxu0
      %v1977 = vadd.f32 0.0, %v1976
      %v1978 = vpop.f32.mrf.mxu0
      %1979 = vmatprep.mubr.f32.mxu0 0.0
      %1980 = vmatmul.mubr.f32.gmra.mxu0 %v461
      %v1981 = vpop.f32.mrf.mxu0
      %v1982 = vadd.f32 0.0, %v1981
      %v1983 = vpop.f32.mrf.mxu0
      %1984 = vmatprep.mubr.f32.mxu0 0.0
      %1985 = vmatmul.mubr.f32.gmra.mxu0 %v464
      %v1986 = vpop.f32.mrf.mxu0
      %v1987 = vadd.f32 0.0, %v1986
      %v1988 = vpop.f32.mrf.mxu0
      %1989 = vmatprep.mubr.f32.mxu0 0.0
      %1990 = vmatmul.mubr.f32.gmra.mxu0 %v467
      %v1991 = vpop.f32.mrf.mxu0
      %v1992 = vadd.f32 0.0, %v1991
      %v1993 = vpop.f32.mrf.mxu0
      %1994 = vmatprep.mubr.f32.mxu0 0.0
      %1995 = vmatmul.mubr.f32.gmra.mxu0 %v470
      %v1996 = vpop.f32.mrf.mxu0
      %v1997 = vadd.f32 0.0, %v1996
      %v1998 = vpop.f32.mrf.mxu0
      %1999 = vmatprep.mubr.f32.mxu0 0.0
      %2000 = vmatmul.mubr.f32.gmra.mxu0 %v473
      %v2001 = vpop.f32.mrf.mxu0
      %v2002 = vadd.f32 0.0, %v2001
      %v2003 = vpop.f32.mrf.mxu0
      %2004 = vmatprep.mubr.f32.mxu0 0.0
      %2005 = vmatmul.mubr.f32.gmra.mxu0 %v476
      %v2006 = vpop.f32.mrf.mxu0
      %v2007 = vadd.f32 0.0, %v2006
      %v2008 = vpop.f32.mrf.mxu0
      %2009 = vmatprep.mubr.f32.mxu0 0.0
      %2010 = vmatmul.mubr.f32.gmra.mxu0 %v479
      %v2011 = vpop.f32.mrf.mxu0
      %v2012 = vadd.f32 0.0, %v2011
      %v2013 = vpop.f32.mrf.mxu0
      %2014 = vmatprep.mubr.f32.mxu0 0.0
      %2015 = vmatmul.mubr.f32.gmra.mxu0 %v482
      %v2016 = vpop.f32.mrf.mxu0
      %v2017 = vadd.f32 0.0, %v2016
      %v2018 = vpop.f32.mrf.mxu0
      %2019 = vmatprep.mubr.f32.mxu0 0.0
      %2020 = vmatmul.mubr.f32.gmra.mxu0 %v485
      %v2021 = vpop.f32.mrf.mxu0
      %v2022 = vadd.f32 0.0, %v2021
      %v2023 = vpop.f32.mrf.mxu0
      %2024 = vmatprep.mubr.f32.mxu0 0.0
      %2025 = vmatmul.mubr.f32.gmra.mxu0 %v488
      %v2026 = vpop.f32.mrf.mxu0
      %v2027 = vadd.f32 0.0, %v2026
      %v2028 = vpop.f32.mrf.mxu0
      %2029 = vmatprep.mubr.f32.mxu0 0.0
      %2030 = vmatmul.mubr.f32.gmra.mxu0 %v491
      %v2031 = vpop.f32.mrf.mxu0
      %v2032 = vadd.f32 0.0, %v2031
      %v2033 = vpop.f32.mrf.mxu0
      %2034 = vmatprep.mubr.f32.mxu0 0.0
      %2035 = vmatmul.mubr.f32.gmra.mxu0 %v494
      %v2036 = vpop.f32.mrf.mxu0
      %v2037 = vadd.f32 0.0, %v2036
      %v2038 = vpop.f32.mrf.mxu0
      %2039 = vmatprep.mubr.f32.mxu0 0.0
      %2040 = vmatmul.mubr.f32.gmra.mxu0 %v497
      %v2041 = vpop.f32.mrf.mxu0
      %v2042 = vadd.f32 0.0, %v2041
      %v2043 = vpop.f32.mrf.mxu0
      %2044 = vmatprep.mubr.f32.mxu0 0.0
      %2045 = vmatmul.mubr.f32.gmra.mxu0 %v500
      %v2046 = vpop.f32.mrf.mxu0
      %v2047 = vadd.f32 0.0, %v2046
      %v2048 = vpop.f32.mrf.mxu0
      %2049 = vmatprep.mubr.f32.mxu0 0.0
      %2050 = vmatmul.mubr.f32.gmra.mxu0 %v503
      %v2051 = vpop.f32.mrf.mxu0
      %v2052 = vadd.f32 0.0, %v2051
      %v2053 = vpop.f32.mrf.mxu0
      %2054 = vmatprep.mubr.f32.mxu0 0.0
      %2055 = vmatmul.mubr.f32.gmra.mxu0 %v506
      %v2056 = vpop.f32.mrf.mxu0
      %v2057 = vadd.f32 0.0, %v2056
      %v2058 = vpop.f32.mrf.mxu0
      %2059 = vmatprep.mubr.f32.mxu0 0.0
      %2060 = vmatmul.mubr.f32.gmra.mxu0 %v509
      %v2061 = vpop.f32.mrf.mxu0
      %v2062 = vadd.f32 0.0, %v2061
      %v2063 = vpop.f32.mrf.mxu0
      %2064 = vmatprep.mubr.f32.mxu0 0.0
      %2065 = vmatmul.mubr.f32.gmra.mxu0 %v512
      %v2066 = vpop.f32.mrf.mxu0
      %v2067 = vadd.f32 0.0, %v2066
      %v2068 = vpop.f32.mrf.mxu0
      %2069 = vmatprep.mubr.f32.mxu0 0.0
      %2070 = vmatmul.mubr.f32.gmra.mxu0 %v515
      %v2071 = vpop.f32.mrf.mxu0
      %v2072 = vadd.f32 0.0, %v2071
      %v2073 = vpop.f32.mrf.mxu0
      %2074 = vmatprep.mubr.f32.mxu0 0.0
      %2075 = vmatmul.mubr.f32.gmra.mxu0 %v518
      %v2076 = vpop.f32.mrf.mxu0
      %v2077 = vadd.f32 0.0, %v2076
      %v2078 = vpop.f32.mrf.mxu0
      %2079 = vmatprep.mubr.f32.mxu0 0.0
      %2080 = vmatmul.mubr.f32.gmra.mxu0 %v521
      %v2081 = vpop.f32.mrf.mxu0
      %v2082 = vadd.f32 0.0, %v2081
      %v2083 = vpop.f32.mrf.mxu0
      %2084 = vmatprep.mubr.f32.mxu0 0.0
      %2085 = vmatmul.mubr.f32.gmra.mxu0 %v524
      %v2086 = vpop.f32.mrf.mxu0
      %v2087 = vadd.f32 0.0, %v2086
      %v2088 = vpop.f32.mrf.mxu0
      %2089 = vmatprep.mubr.f32.mxu0 0.0
      %2090 = vmatmul.mubr.f32.gmra.mxu0 %v527
      %v2091 = vpop.f32.mrf.mxu0
      %v2092 = vadd.f32 0.0, %v2091
      %v2093 = vpop.f32.mrf.mxu0
      %2094 = vmatprep.mubr.f32.mxu0 0.0
      %2095 = vmatmul.mubr.f32.gmra.mxu0 %v530
      %v2096 = vpop.f32.mrf.mxu0
      %v2097 = vadd.f32 0.0, %v2096
      %v2098 = vpop.f32.mrf.mxu0
      %2099 = vmatprep.mubr.f32.mxu0 0.0
      %2100 = vmatmul.mubr.f32.gmra.mxu0 %v533
      %v2101 = vpop.f32.mrf.mxu0
      %v2102 = vadd.f32 0.0, %v2101
      %v2103 = vpop.f32.mrf.mxu0
      %2104 = vmatprep.mubr.f32.mxu0 0.0
      %2105 = vmatmul.mubr.f32.gmra.mxu0 %v536
      %v2106 = vpop.f32.mrf.mxu0
      %v2107 = vadd.f32 0.0, %v2106
      %v2108 = vpop.f32.mrf.mxu0
      %2109 = vmatprep.mubr.f32.mxu0 0.0
      %2110 = vmatmul.mubr.f32.gmra.mxu0 %v539
      %v2111 = vpop.f32.mrf.mxu0
      %v2112 = vadd.f32 0.0, %v2111
      %v2113 = vpop.f32.mrf.mxu0
      %2114 = vdwg.mxu0
      %v2116 = vsel %vm1093, %v1856, 0
      %v2119 = vsel %vm1093, %v1858, 0
      %v2122 = vsel %vm1093, %v2112, 0
      %2124 = vmatprep.subr.mxu0 %v1726
      %2125 = vmatpush1.msra.mxu0 %v1724
      %2126 = vmatprep.subr.mxu0 %v1720
      %2127 = vmatpush1.msra.mxu0 %v1718
      %2128 = vmatprep.subr.mxu0 %v1714
      %2129 = vmatpush1.msra.mxu0 %v1712
      %2130 = vmatprep.subr.mxu0 %v1708
      %2131 = vmatpush1.msra.mxu0 %v1706
      %2132 = vmatprep.subr.mxu0 %v1702
      %2133 = vmatpush1.msra.mxu0 %v1700
      %2134 = vmatprep.subr.mxu0 %v1696
      %2135 = vmatpush1.msra.mxu0 %v1694
      %2136 = vmatprep.subr.mxu0 %v1690
      %2137 = vmatpush1.msra.mxu0 %v1688
      %2138 = vmatprep.subr.mxu0 %v1684
      %2139 = vmatpush1.msra.mxu0 %v1682
      %2140 = vmatprep.subr.mxu0 %v1678
      %2141 = vmatpush1.msra.mxu0 %v1676
      %2142 = vmatprep.subr.mxu0 %v1672
      %2143 = vmatpush1.msra.mxu0 %v1670
      %2144 = vmatprep.subr.mxu0 %v1666
      %2145 = vmatpush1.msra.mxu0 %v1664
      %2146 = vmatprep.subr.mxu0 %v1660
      %2147 = vmatpush1.msra.mxu0 %v1658
      %2148 = vmatprep.subr.mxu0 %v1654
      %2149 = vmatpush1.msra.mxu0 %v1652
      %2150 = vmatprep.subr.mxu0 %v1648
      %2151 = vmatpush1.msra.mxu0 %v1646
      %2152 = vmatprep.subr.mxu0 %v1642
      %2153 = vmatpush1.msra.mxu0 %v1640
      %2154 = vmatprep.subr.mxu0 %v1636
      %2155 = vmatpush1.msra.mxu0 %v1634
      %2156 = vmatprep.subr.mxu0 %v1822
      %2157 = vmatpush2.msra.mxu0 %v1820
      %2158 = vmatprep.subr.mxu0 %v1816
      %2159 = vmatpush2.msra.mxu0 %v1814
      %2160 = vmatprep.subr.mxu0 %v1810
      %2161 = vmatpush2.msra.mxu0 %v1808
      %2162 = vmatprep.subr.mxu0 %v1804
      %2163 = vmatpush2.msra.mxu0 %v1802
      %2164 = vmatprep.subr.mxu0 %v1798
      %2165 = vmatpush2.msra.mxu0 %v1796
      %2166 = vmatprep.subr.mxu0 %v1792
      %2167 = vmatpush2.msra.mxu0 %v1790
      %2168 = vmatprep.subr.mxu0 %v1786
      %2169 = vmatpush2.msra.mxu0 %v1784
      %2170 = vmatprep.subr.mxu0 %v1780
      %2171 = vmatpush2.msra.mxu0 %v1778
      %2172 = vmatprep.subr.mxu0 %v1774
      %2173 = vmatpush2.msra.mxu0 %v1772
      %2174 = vmatprep.subr.mxu0 %v1768
      %2175 = vmatpush2.msra.mxu0 %v1766
      %2176 = vmatprep.subr.mxu0 %v1762
      %2177 = vmatpush2.msra.mxu0 %v1760
      %2178 = vmatprep.subr.mxu0 %v1756
      %2179 = vmatpush2.msra.mxu0 %v1754
      %2180 = vmatprep.subr.mxu0 %v1750
      %2181 = vmatpush2.msra.mxu0 %v1748
      %2182 = vmatprep.subr.mxu0 %v1744
      %2183 = vmatpush2.msra.mxu0 %v1742
      %2184 = vmatprep.subr.mxu0 %v1738
      %2185 = vmatpush2.msra.mxu0 %v1736
      %2186 = vmatprep.subr.mxu0 %v1732
      %2187 = vmatpush2.msra.mxu0 %v1730
      %2188 = vmatprep.mubr.f32.mxu0 1.0
      %2189 = vmatmul.mubr.f32.gmra.mxu0 1.0
      %v2190 = vpop.f32.mrf.mxu0
      %v2191 = vadd.f32 0.0, %v2190
      %v2192 = vpop.f32.mrf.mxu0
      %v2193 = vadd.f32 0.0, %v2192
      %2194 = vdwg.mxu0
      %2195 = vmatprep.subr.mxu0 0.0
      %2196 = vmatpush1.msra.mxu0 0.0
      %2197 = vmatprep.subr.mxu0 0.0
      %2198 = vmatpush1.msra.mxu0 0.0
      %2199 = vmatprep.subr.mxu0 0.0
      %2200 = vmatpush1.msra.mxu0 0.0
      %2201 = vmatprep.subr.mxu0 0.0
      %2202 = vmatpush1.msra.mxu0 0.0
      %2203 = vmatprep.subr.mxu0 0.0
      %2204 = vmatpush1.msra.mxu0 0.0
      %2205 = vmatprep.subr.mxu0 0.0
      %2206 = vmatpush1.msra.mxu0 0.0
      %2207 = vmatprep.subr.mxu0 0.0
      %2208 = vmatpush1.msra.mxu0 0.0
      %2209 = vmatprep.subr.mxu0 0.0
      %2210 = vmatpush1.msra.mxu0 0.0
      %2211 = vmatprep.subr.mxu0 0.0
      %2212 = vmatpush1.msra.mxu0 0.0
      %2213 = vmatprep.subr.mxu0 0.0
      %2214 = vmatpush1.msra.mxu0 0.0
      %2215 = vmatprep.subr.mxu0 %v2119
      %2216 = vmatpush1.msra.mxu0 %v2116
      %2217 = vmatprep.subr.mxu0 %v1852
      %2218 = vmatpush1.msra.mxu0 %v1850
      %2219 = vmatprep.subr.mxu0 %v1846
      %2220 = vmatpush1.msra.mxu0 %v1844
      %2221 = vmatprep.subr.mxu0 %v1840
      %2222 = vmatpush1.msra.mxu0 %v1838
      %2223 = vmatprep.subr.mxu0 %v1834
      %2224 = vmatpush1.msra.mxu0 %v1832
      %2225 = vmatprep.subr.mxu0 %v1828
      %2226 = vmatpush1.msra.mxu0 %v1826
      %2227 = vmatprep.subr.mxu0 0.0
      %2228 = vmatpush2.msra.mxu0 0.0
      %2229 = vmatprep.subr.mxu0 0.0
      %2230 = vmatpush2.msra.mxu0 0.0
      %2231 = vmatprep.subr.mxu0 0.0
      %2232 = vmatpush2.msra.mxu0 0.0
      %2233 = vmatprep.subr.mxu0 0.0
      %2234 = vmatpush2.msra.mxu0 0.0
      %2235 = vmatprep.subr.mxu0 0.0
      %2236 = vmatpush2.msra.mxu0 0.0
      %2237 = vmatprep.subr.mxu0 0.0
      %2238 = vmatpush2.msra.mxu0 0.0
      %2239 = vmatprep.subr.mxu0 0.0
      %2240 = vmatpush2.msra.mxu0 0.0
      %2241 = vmatprep.subr.mxu0 0.0
      %2242 = vmatpush2.msra.mxu0 0.0
      %2243 = vmatprep.subr.mxu0 0.0
      %2244 = vmatpush2.msra.mxu0 0.0
      %2245 = vmatprep.subr.mxu0 0.0
      %2246 = vmatpush2.msra.mxu0 0.0
      %2247 = vmatprep.subr.mxu0 0.0
      %2248 = vmatpush2.msra.mxu0 0.0
      %2249 = vmatprep.subr.mxu0 0.0
      %2250 = vmatpush2.msra.mxu0 0.0
      %2251 = vmatprep.subr.mxu0 0.0
      %2252 = vmatpush2.msra.mxu0 0.0
      %2253 = vmatprep.subr.mxu0 0.0
      %2254 = vmatpush2.msra.mxu0 0.0
      %2255 = vmatprep.subr.mxu0 0.0
      %2256 = vmatpush2.msra.mxu0 0.0
      %2257 = vmatprep.subr.mxu0 0.0
      %2258 = vmatpush2.msra.mxu0 0.0
      %2259 = vmatprep.mubr.f32.mxu0 0.0
      %2260 = vmatmul.mubr.f32.gmra.mxu0 %v1091
      %v2261 = vpop.f32.mrf.mxu0
      %v2262 = vadd.f32 %v2191, %v2261
      %v2263 = vpop.f32.mrf.mxu0
      %v2264 = vadd.f32 %v2193, %v2263
      %2265 = vdwg.mxu0
      %2266 = vmatprep.subr.mxu0 0.0
      %2267 = vmatpush1.msra.mxu0 %v2002
      %2268 = vmatprep.subr.mxu0 0.0
      %2269 = vmatpush1.msra.mxu0 %v1997
      %2270 = vmatprep.subr.mxu0 0.0
      %2271 = vmatpush1.msra.mxu0 %v1992
      %2272 = vmatprep.subr.mxu0 0.0
      %2273 = vmatpush1.msra.mxu0 %v1987
      %2274 = vmatprep.subr.mxu0 0.0
      %2275 = vmatpush1.msra.mxu0 %v1982
      %2276 = vmatprep.subr.mxu0 0.0
      %2277 = vmatpush1.msra.mxu0 %v1977
      %2278 = vmatprep.subr.mxu0 0.0
      %2279 = vmatpush1.msra.mxu0 %v1972
      %2280 = vmatprep.subr.mxu0 0.0
      %2281 = vmatpush1.msra.mxu0 %v1967
      %2282 = vmatprep.subr.mxu0 0.0
      %2283 = vmatpush1.msra.mxu0 %v1962
      %2284 = vmatprep.subr.mxu0 0.0
      %2285 = vmatpush1.msra.mxu0 %v1957
      %2286 = vmatprep.subr.mxu0 0.0
      %2287 = vmatpush1.msra.mxu0 %v1952
      %2288 = vmatprep.subr.mxu0 0.0
      %2289 = vmatpush1.msra.mxu0 %v1947
      %2290 = vmatprep.subr.mxu0 0.0
      %2291 = vmatpush1.msra.mxu0 %v1942
      %2292 = vmatprep.subr.mxu0 0.0
      %2293 = vmatpush1.msra.mxu0 %v1937
      %2294 = vmatprep.subr.mxu0 0.0
      %2295 = vmatpush1.msra.mxu0 %v1932
      %2296 = vmatprep.subr.mxu0 0.0
      %2297 = vmatpush1.msra.mxu0 %v1927
      %2298 = vmatprep.subr.mxu0 0.0
      %2299 = vmatpush2.msra.mxu0 %v2082
      %2300 = vmatprep.subr.mxu0 0.0
      %2301 = vmatpush2.msra.mxu0 %v2077
      %2302 = vmatprep.subr.mxu0 0.0
      %2303 = vmatpush2.msra.mxu0 %v2072
      %2304 = vmatprep.subr.mxu0 0.0
      %2305 = vmatpush2.msra.mxu0 %v2067
      %2306 = vmatprep.subr.mxu0 0.0
      %2307 = vmatpush2.msra.mxu0 %v2062
      %2308 = vmatprep.subr.mxu0 0.0
      %2309 = vmatpush2.msra.mxu0 %v2057
      %2310 = vmatprep.subr.mxu0 0.0
      %2311 = vmatpush2.msra.mxu0 %v2052
      %2312 = vmatprep.subr.mxu0 0.0
      %2313 = vmatpush2.msra.mxu0 %v2047
      %2314 = vmatprep.subr.mxu0 0.0
      %2315 = vmatpush2.msra.mxu0 %v2042
      %2316 = vmatprep.subr.mxu0 0.0
      %2317 = vmatpush2.msra.mxu0 %v2037
      %2318 = vmatprep.subr.mxu0 0.0
      %2319 = vmatpush2.msra.mxu0 %v2032
      %2320 = vmatprep.subr.mxu0 0.0
      %2321 = vmatpush2.msra.mxu0 %v2027
      %2322 = vmatprep.subr.mxu0 0.0
      %2323 = vmatpush2.msra.mxu0 %v2022
      %2324 = vmatprep.subr.mxu0 0.0
      %2325 = vmatpush2.msra.mxu0 %v2017
      %2326 = vmatprep.subr.mxu0 0.0
      %2327 = vmatpush2.msra.mxu0 %v2012
      %2328 = vmatprep.subr.mxu0 0.0
      %2329 = vmatpush2.msra.mxu0 %v2007
      %2330 = vmatprep.mubr.f32.mxu0 1.0
      %2331 = vmatmul.mubr.f32.gmra.mxu0 1.0
      %v2332 = vpop.f32.mrf.mxu0
      %v2333 = vadd.f32 0.0, %v2332
      %v2334 = vpop.f32.mrf.mxu0
      %2335 = vdwg.mxu0
      %2336 = vmatprep.subr.mxu0 0.0
      %2337 = vmatpush1.msra.mxu0 0.0
      %2338 = vmatprep.subr.mxu0 0.0
      %2339 = vmatpush1.msra.mxu0 0.0
      %2340 = vmatprep.subr.mxu0 0.0
      %2341 = vmatpush1.msra.mxu0 0.0
      %2342 = vmatprep.subr.mxu0 0.0
      %2343 = vmatpush1.msra.mxu0 0.0
      %2344 = vmatprep.subr.mxu0 0.0
      %2345 = vmatpush1.msra.mxu0 0.0
      %2346 = vmatprep.subr.mxu0 0.0
      %2347 = vmatpush1.msra.mxu0 0.0
      %2348 = vmatprep.subr.mxu0 0.0
      %2349 = vmatpush1.msra.mxu0 0.0
      %2350 = vmatprep.subr.mxu0 0.0
      %2351 = vmatpush1.msra.mxu0 0.0
      %2352 = vmatprep.subr.mxu0 0.0
      %2353 = vmatpush1.msra.mxu0 0.0
      %2354 = vmatprep.subr.mxu0 0.0
      %2355 = vmatpush1.msra.mxu0 0.0
      %2356 = vmatprep.subr.mxu0 0.0
      %2357 = vmatpush1.msra.mxu0 %v2122
      %2358 = vmatprep.subr.mxu0 0.0
      %2359 = vmatpush1.msra.mxu0 %v2107
      %2360 = vmatprep.subr.mxu0 0.0
      %2361 = vmatpush1.msra.mxu0 %v2102
      %2362 = vmatprep.subr.mxu0 0.0
      %2363 = vmatpush1.msra.mxu0 %v2097
      %2364 = vmatprep.subr.mxu0 0.0
      %2365 = vmatpush1.msra.mxu0 %v2092
      %2366 = vmatprep.subr.mxu0 0.0
      %2367 = vmatpush1.msra.mxu0 %v2087
      %2368 = vmatprep.subr.mxu0 0.0
      %2369 = vmatpush2.msra.mxu0 0.0
      %2370 = vmatprep.subr.mxu0 0.0
      %2371 = vmatpush2.msra.mxu0 0.0
      %2372 = vmatprep.subr.mxu0 0.0
      %2373 = vmatpush2.msra.mxu0 0.0
      %2374 = vmatprep.subr.mxu0 0.0
      %2375 = vmatpush2.msra.mxu0 0.0
      %2376 = vmatprep.subr.mxu0 0.0
      %2377 = vmatpush2.msra.mxu0 0.0
      %2378 = vmatprep.subr.mxu0 0.0
      %2379 = vmatpush2.msra.mxu0 0.0
      %2380 = vmatprep.subr.mxu0 0.0
      %2381 = vmatpush2.msra.mxu0 0.0
      %2382 = vmatprep.subr.mxu0 0.0
      %2383 = vmatpush2.msra.mxu0 0.0
      %2384 = vmatprep.subr.mxu0 0.0
      %2385 = vmatpush2.msra.mxu0 0.0
      %2386 = vmatprep.subr.mxu0 0.0
      %2387 = vmatpush2.msra.mxu0 0.0
      %2388 = vmatprep.subr.mxu0 0.0
      %2389 = vmatpush2.msra.mxu0 0.0
      %2390 = vmatprep.subr.mxu0 0.0
      %2391 = vmatpush2.msra.mxu0 0.0
      %2392 = vmatprep.subr.mxu0 0.0
      %2393 = vmatpush2.msra.mxu0 0.0
      %2394 = vmatprep.subr.mxu0 0.0
      %2395 = vmatpush2.msra.mxu0 0.0
      %2396 = vmatprep.subr.mxu0 0.0
      %2397 = vmatpush2.msra.mxu0 0.0
      %2398 = vmatprep.subr.mxu0 0.0
      %2399 = vmatpush2.msra.mxu0 0.0
      %2400 = vmatprep.mubr.f32.mxu0 0.0
      %2401 = vmatmul.mubr.f32.gmra.mxu0 %v1091
      %v2402 = vpop.f32.mrf.mxu0
      %v2403 = vadd.f32 %v2333, %v2402
      %v2404 = vpop.f32.mrf.mxu0
      %2405 = vdwg.mxu0
      %v2406 = vsel %vm1385, %v2262, 0.0
      %v2407 = vsel %vm1385, %v2264, 0.0
      %v2408 = vadd.f32 %v2406, %v2407
      %v2409 = vsel %vm1389, %v2403, 0.0
      %v2410 = vadd.f32 %v2408, %v2409
      %2411 = vadd.xlane.f32.xlu0 %v2410
      %v2412 = vpop.xlane.xlu0 %2411
      %v2413 = vrot.slane %v2412, 4
      %v2414 = vadd.f32 %v2412, %v2413
      %v2415 = vrot.slane %v2414, 2
      %v2416 = vadd.f32 %v2414, %v2415
      %v2417 = vrot.slane %v2416, 1
      %v2418 = vadd.f32 %v2416, %v2417
      %s2419 = vtos %v2418
      %s2420 = smul.f32 %s2419, 1.1185557e-05
      %s2421 = scalar_lea.vmem %s3, 1
      %v2422 = vld [vmem:[%s2421] ss:$4 sm:$0xff]
      %v2423 = vstv %s2420
      %v2424 = vmul.f32 %v2423, %v2422
      %v2425 = vadd.f32 %v1405, %v2424
      %s2426 = scalar_lea.vmem %s217, 32
      %v2427 = vld [vmem:[%s2426] sm:$0xff]
      %v2428 = vld [vmem:[%s2426 + $0x8] sm:$0xff]
      %v2430 = vsel %vm230, %v2427, 0
      %v2433 = vsel %vm230, %v2428, 0
      %2435 = vmatprep.subr.mxu0 0.0
      %2436 = vmatpush1.msra.mxu0 0.0
      %2437 = vmatprep.subr.mxu0 0.0
      %2438 = vmatpush1.msra.mxu0 0.0
      %2439 = vmatprep.subr.mxu0 0.0
      %2440 = vmatpush1.msra.mxu0 0.0
      %2441 = vmatprep.subr.mxu0 0.0
      %2442 = vmatpush1.msra.mxu0 0.0
      %2443 = vmatprep.subr.mxu0 0.0
      %2444 = vmatpush1.msra.mxu0 0.0
      %2445 = vmatprep.subr.mxu0 0.0
      %2446 = vmatpush1.msra.mxu0 0.0
      %2447 = vmatprep.subr.mxu0 0.0
      %2448 = vmatpush1.msra.mxu0 0.0
      %2449 = vmatprep.subr.mxu0 0.0
      %2450 = vmatpush1.msra.mxu0 0.0
      %2451 = vmatprep.subr.mxu0 0.0
      %2452 = vmatpush1.msra.mxu0 0.0
      %2453 = vmatprep.subr.mxu0 0.0
      %2454 = vmatpush1.msra.mxu0 0.0
      %2455 = vmatprep.subr.mxu0 0.0
      %2456 = vmatpush1.msra.mxu0 0.0
      %2457 = vmatprep.subr.mxu0 0.0
      %2458 = vmatpush1.msra.mxu0 0.0
      %2459 = vmatprep.subr.mxu0 0.0
      %2460 = vmatpush1.msra.mxu0 0.0
      %2461 = vmatprep.subr.mxu0 0.0
      %2462 = vmatpush1.msra.mxu0 0.0
      %2463 = vmatprep.subr.mxu0 %v228
      %2464 = vmatpush1.msra.mxu0 %v227
      %2465 = vmatprep.subr.mxu0 %v225
      %2466 = vmatpush1.msra.mxu0 %v224
      %2467 = vmatprep.subr.mxu0 0.0
      %2468 = vmatpush2.msra.mxu0 0.0
      %2469 = vmatprep.subr.mxu0 0.0
      %2470 = vmatpush2.msra.mxu0 0.0
      %2471 = vmatprep.subr.mxu0 0.0
      %2472 = vmatpush2.msra.mxu0 0.0
      %2473 = vmatprep.subr.mxu0 0.0
      %2474 = vmatpush2.msra.mxu0 0.0
      %2475 = vmatprep.subr.mxu0 0.0
      %2476 = vmatpush2.msra.mxu0 0.0
      %2477 = vmatprep.subr.mxu0 0.0
      %2478 = vmatpush2.msra.mxu0 0.0
      %2479 = vmatprep.subr.mxu0 0.0
      %2480 = vmatpush2.msra.mxu0 0.0
      %2481 = vmatprep.subr.mxu0 0.0
      %2482 = vmatpush2.msra.mxu0 0.0
      %2483 = vmatprep.subr.mxu0 0.0
      %2484 = vmatpush2.msra.mxu0 0.0
      %2485 = vmatprep.subr.mxu0 0.0
      %2486 = vmatpush2.msra.mxu0 0.0
      %2487 = vmatprep.subr.mxu0 0.0
      %2488 = vmatpush2.msra.mxu0 0.0
      %2489 = vmatprep.subr.mxu0 0.0
      %2490 = vmatpush2.msra.mxu0 0.0
      %2491 = vmatprep.subr.mxu0 0.0
      %2492 = vmatpush2.msra.mxu0 0.0
      %2493 = vmatprep.subr.mxu0 0.0
      %2494 = vmatpush2.msra.mxu0 0.0
      %2495 = vmatprep.subr.mxu0 0.0
      %2496 = vmatpush2.msra.mxu0 0.0
      %2497 = vmatprep.subr.mxu0 0.0
      %2498 = vmatpush2.msra.mxu0 0.0
      %2499 = vmatprep.mubr.f32.mxu0 0.0
      %2500 = vmatmul.mubr.f32.gmra.mxu0 %v2430
      %v2501 = vpop.f32.mrf.mxu0
      %v2502 = vadd.f32 0.0, %v2501
      %v2503 = vpop.f32.mrf.mxu0
      %v2504 = vadd.f32 0.0, %v2503
      %2505 = vmatprep.mubr.f32.mxu0 0.0
      %2506 = vmatmul.mubr.f32.gmra.mxu0 %v2433
      %v2507 = vpop.f32.mrf.mxu0
      %v2508 = vadd.f32 0.0, %v2507
      %v2509 = vpop.f32.mrf.mxu0
      %v2510 = vadd.f32 0.0, %v2509
      %2511 = vdwg.mxu0
      %2512 = vmatprep.subr.mxu0 0.0
      %2513 = vmatpush1.msra.mxu0 0.0
      %2514 = vmatprep.subr.mxu0 0.0
      %2515 = vmatpush1.msra.mxu0 0.0
      %2516 = vmatprep.subr.mxu0 0.0
      %2517 = vmatpush1.msra.mxu0 0.0
      %2518 = vmatprep.subr.mxu0 0.0
      %2519 = vmatpush1.msra.mxu0 0.0
      %2520 = vmatprep.subr.mxu0 0.0
      %2521 = vmatpush1.msra.mxu0 0.0
      %2522 = vmatprep.subr.mxu0 0.0
      %2523 = vmatpush1.msra.mxu0 0.0
      %2524 = vmatprep.subr.mxu0 0.0
      %2525 = vmatpush1.msra.mxu0 0.0
      %2526 = vmatprep.subr.mxu0 0.0
      %2527 = vmatpush1.msra.mxu0 0.0
      %2528 = vmatprep.subr.mxu0 0.0
      %2529 = vmatpush1.msra.mxu0 0.0
      %2530 = vmatprep.subr.mxu0 0.0
      %2531 = vmatpush1.msra.mxu0 0.0
      %2532 = vmatprep.subr.mxu0 0.0
      %2533 = vmatpush1.msra.mxu0 0.0
      %2534 = vmatprep.subr.mxu0 0.0
      %2535 = vmatpush1.msra.mxu0 0.0
      %2536 = vmatprep.subr.mxu0 0.0
      %2537 = vmatpush1.msra.mxu0 0.0
      %2538 = vmatprep.subr.mxu0 0.0
      %2539 = vmatpush1.msra.mxu0 0.0
      %2540 = vmatprep.subr.mxu0 0.0
      %2541 = vmatpush1.msra.mxu0 %v229
      %2542 = vmatprep.subr.mxu0 0.0
      %2543 = vmatpush1.msra.mxu0 %v226
      %2544 = vmatprep.subr.mxu0 0.0
      %2545 = vmatpush2.msra.mxu0 0.0
      %2546 = vmatprep.subr.mxu0 0.0
      %2547 = vmatpush2.msra.mxu0 0.0
      %2548 = vmatprep.subr.mxu0 0.0
      %2549 = vmatpush2.msra.mxu0 0.0
      %2550 = vmatprep.subr.mxu0 0.0
      %2551 = vmatpush2.msra.mxu0 0.0
      %2552 = vmatprep.subr.mxu0 0.0
      %2553 = vmatpush2.msra.mxu0 0.0
      %2554 = vmatprep.subr.mxu0 0.0
      %2555 = vmatpush2.msra.mxu0 0.0
      %2556 = vmatprep.subr.mxu0 0.0
      %2557 = vmatpush2.msra.mxu0 0.0
      %2558 = vmatprep.subr.mxu0 0.0
      %2559 = vmatpush2.msra.mxu0 0.0
      %2560 = vmatprep.subr.mxu0 0.0
      %2561 = vmatpush2.msra.mxu0 0.0
      %2562 = vmatprep.subr.mxu0 0.0
      %2563 = vmatpush2.msra.mxu0 0.0
      %2564 = vmatprep.subr.mxu0 0.0
      %2565 = vmatpush2.msra.mxu0 0.0
      %2566 = vmatprep.subr.mxu0 0.0
      %2567 = vmatpush2.msra.mxu0 0.0
      %2568 = vmatprep.subr.mxu0 0.0
      %2569 = vmatpush2.msra.mxu0 0.0
      %2570 = vmatprep.subr.mxu0 0.0
      %2571 = vmatpush2.msra.mxu0 0.0
      %2572 = vmatprep.subr.mxu0 0.0
      %2573 = vmatpush2.msra.mxu0 0.0
      %2574 = vmatprep.subr.mxu0 0.0
      %2575 = vmatpush2.msra.mxu0 0.0
      %2576 = vmatprep.mubr.f32.mxu0 0.0
      %2577 = vmatmul.mubr.f32.gmra.mxu0 %v2430
      %v2578 = vpop.f32.mrf.mxu0
      %v2579 = vadd.f32 0.0, %v2578
      %v2580 = vpop.f32.mrf.mxu0
      %2581 = vmatprep.mubr.f32.mxu0 0.0
      %2582 = vmatmul.mubr.f32.gmra.mxu0 %v2433
      %v2583 = vpop.f32.mrf.mxu0
      %v2584 = vadd.f32 0.0, %v2583
      %v2585 = vpop.f32.mrf.mxu0
      %2586 = vdwg.mxu0
      %2587 = vmatprep.subr.mxu0 0.0
      %2588 = vmatpush1.msra.mxu0 0.0
      %2589 = vmatprep.subr.mxu0 0.0
      %2590 = vmatpush1.msra.mxu0 0.0
      %2591 = vmatprep.subr.mxu0 0.0
      %2592 = vmatpush1.msra.mxu0 0.0
      %2593 = vmatprep.subr.mxu0 0.0
      %2594 = vmatpush1.msra.mxu0 0.0
      %2595 = vmatprep.subr.mxu0 0.0
      %2596 = vmatpush1.msra.mxu0 0.0
      %2597 = vmatprep.subr.mxu0 0.0
      %2598 = vmatpush1.msra.mxu0 0.0
      %2599 = vmatprep.subr.mxu0 0.0
      %2600 = vmatpush1.msra.mxu0 0.0
      %2601 = vmatprep.subr.mxu0 0.0
      %2602 = vmatpush1.msra.mxu0 0.0
      %2603 = vmatprep.subr.mxu0 0.0
      %2604 = vmatpush1.msra.mxu0 0.0
      %2605 = vmatprep.subr.mxu0 0.0
      %2606 = vmatpush1.msra.mxu0 0.0
      %2607 = vmatprep.subr.mxu0 0.0
      %2608 = vmatpush1.msra.mxu0 0.0
      %2609 = vmatprep.subr.mxu0 0.0
      %2610 = vmatpush1.msra.mxu0 0.0
      %2611 = vmatprep.subr.mxu0 0.0
      %2612 = vmatpush1.msra.mxu0 0.0
      %2613 = vmatprep.subr.mxu0 0.0
      %2614 = vmatpush1.msra.mxu0 0.0
      %2615 = vmatprep.subr.mxu0 %v2510
      %2616 = vmatpush1.msra.mxu0 %v2508
      %2617 = vmatprep.subr.mxu0 %v2504
      %2618 = vmatpush1.msra.mxu0 %v2502
      %2619 = vmatprep.subr.mxu0 0.0
      %2620 = vmatpush2.msra.mxu0 0.0
      %2621 = vmatprep.subr.mxu0 0.0
      %2622 = vmatpush2.msra.mxu0 0.0
      %2623 = vmatprep.subr.mxu0 0.0
      %2624 = vmatpush2.msra.mxu0 0.0
      %2625 = vmatprep.subr.mxu0 0.0
      %2626 = vmatpush2.msra.mxu0 0.0
      %2627 = vmatprep.subr.mxu0 0.0
      %2628 = vmatpush2.msra.mxu0 0.0
      %2629 = vmatprep.subr.mxu0 0.0
      %2630 = vmatpush2.msra.mxu0 0.0
      %2631 = vmatprep.subr.mxu0 0.0
      %2632 = vmatpush2.msra.mxu0 0.0
      %2633 = vmatprep.subr.mxu0 0.0
      %2634 = vmatpush2.msra.mxu0 0.0
      %2635 = vmatprep.subr.mxu0 0.0
      %2636 = vmatpush2.msra.mxu0 0.0
      %2637 = vmatprep.subr.mxu0 0.0
      %2638 = vmatpush2.msra.mxu0 0.0
      %2639 = vmatprep.subr.mxu0 0.0
      %2640 = vmatpush2.msra.mxu0 0.0
      %2641 = vmatprep.subr.mxu0 0.0
      %2642 = vmatpush2.msra.mxu0 0.0
      %2643 = vmatprep.subr.mxu0 0.0
      %2644 = vmatpush2.msra.mxu0 0.0
      %2645 = vmatprep.subr.mxu0 0.0
      %2646 = vmatpush2.msra.mxu0 0.0
      %2647 = vmatprep.subr.mxu0 0.0
      %2648 = vmatpush2.msra.mxu0 0.0
      %2649 = vmatprep.subr.mxu0 0.0
      %2650 = vmatpush2.msra.mxu0 0.0
      %2651 = vmatprep.mubr.f32.mxu0 0.0
      %2652 = vmatmul.mubr.f32.gmra.mxu0 %v428
      %v2653 = vpop.f32.mrf.mxu0
      %v2654 = vadd.f32 0.0, %v2653
      %v2655 = vpop.f32.mrf.mxu0
      %v2656 = vadd.f32 0.0, %v2655
      %2657 = vmatprep.mubr.f32.mxu0 0.0
      %2658 = vmatmul.mubr.f32.gmra.mxu0 %v431
      %v2659 = vpop.f32.mrf.mxu0
      %v2660 = vadd.f32 0.0, %v2659
      %v2661 = vpop.f32.mrf.mxu0
      %v2662 = vadd.f32 0.0, %v2661
      %2663 = vmatprep.mubr.f32.mxu0 0.0
      %2664 = vmatmul.mubr.f32.gmra.mxu0 %v434
      %v2665 = vpop.f32.mrf.mxu0
      %v2666 = vadd.f32 0.0, %v2665
      %v2667 = vpop.f32.mrf.mxu0
      %v2668 = vadd.f32 0.0, %v2667
      %2669 = vmatprep.mubr.f32.mxu0 0.0
      %2670 = vmatmul.mubr.f32.gmra.mxu0 %v437
      %v2671 = vpop.f32.mrf.mxu0
      %v2672 = vadd.f32 0.0, %v2671
      %v2673 = vpop.f32.mrf.mxu0
      %v2674 = vadd.f32 0.0, %v2673
      %2675 = vmatprep.mubr.f32.mxu0 0.0
      %2676 = vmatmul.mubr.f32.gmra.mxu0 %v440
      %v2677 = vpop.f32.mrf.mxu0
      %v2678 = vadd.f32 0.0, %v2677
      %v2679 = vpop.f32.mrf.mxu0
      %v2680 = vadd.f32 0.0, %v2679
      %2681 = vmatprep.mubr.f32.mxu0 0.0
      %2682 = vmatmul.mubr.f32.gmra.mxu0 %v443
      %v2683 = vpop.f32.mrf.mxu0
      %v2684 = vadd.f32 0.0, %v2683
      %v2685 = vpop.f32.mrf.mxu0
      %v2686 = vadd.f32 0.0, %v2685
      %2687 = vmatprep.mubr.f32.mxu0 0.0
      %2688 = vmatmul.mubr.f32.gmra.mxu0 %v446
      %v2689 = vpop.f32.mrf.mxu0
      %v2690 = vadd.f32 0.0, %v2689
      %v2691 = vpop.f32.mrf.mxu0
      %v2692 = vadd.f32 0.0, %v2691
      %2693 = vmatprep.mubr.f32.mxu0 0.0
      %2694 = vmatmul.mubr.f32.gmra.mxu0 %v449
      %v2695 = vpop.f32.mrf.mxu0
      %v2696 = vadd.f32 0.0, %v2695
      %v2697 = vpop.f32.mrf.mxu0
      %v2698 = vadd.f32 0.0, %v2697
      %2699 = vmatprep.mubr.f32.mxu0 0.0
      %2700 = vmatmul.mubr.f32.gmra.mxu0 %v452
      %v2701 = vpop.f32.mrf.mxu0
      %v2702 = vadd.f32 0.0, %v2701
      %v2703 = vpop.f32.mrf.mxu0
      %v2704 = vadd.f32 0.0, %v2703
      %2705 = vmatprep.mubr.f32.mxu0 0.0
      %2706 = vmatmul.mubr.f32.gmra.mxu0 %v455
      %v2707 = vpop.f32.mrf.mxu0
      %v2708 = vadd.f32 0.0, %v2707
      %v2709 = vpop.f32.mrf.mxu0
      %v2710 = vadd.f32 0.0, %v2709
      %2711 = vmatprep.mubr.f32.mxu0 0.0
      %2712 = vmatmul.mubr.f32.gmra.mxu0 %v458
      %v2713 = vpop.f32.mrf.mxu0
      %v2714 = vadd.f32 0.0, %v2713
      %v2715 = vpop.f32.mrf.mxu0
      %v2716 = vadd.f32 0.0, %v2715
      %2717 = vmatprep.mubr.f32.mxu0 0.0
      %2718 = vmatmul.mubr.f32.gmra.mxu0 %v461
      %v2719 = vpop.f32.mrf.mxu0
      %v2720 = vadd.f32 0.0, %v2719
      %v2721 = vpop.f32.mrf.mxu0
      %v2722 = vadd.f32 0.0, %v2721
      %2723 = vmatprep.mubr.f32.mxu0 0.0
      %2724 = vmatmul.mubr.f32.gmra.mxu0 %v464
      %v2725 = vpop.f32.mrf.mxu0
      %v2726 = vadd.f32 0.0, %v2725
      %v2727 = vpop.f32.mrf.mxu0
      %v2728 = vadd.f32 0.0, %v2727
      %2729 = vmatprep.mubr.f32.mxu0 0.0
      %2730 = vmatmul.mubr.f32.gmra.mxu0 %v467
      %v2731 = vpop.f32.mrf.mxu0
      %v2732 = vadd.f32 0.0, %v2731
      %v2733 = vpop.f32.mrf.mxu0
      %v2734 = vadd.f32 0.0, %v2733
      %2735 = vmatprep.mubr.f32.mxu0 0.0
      %2736 = vmatmul.mubr.f32.gmra.mxu0 %v470
      %v2737 = vpop.f32.mrf.mxu0
      %v2738 = vadd.f32 0.0, %v2737
      %v2739 = vpop.f32.mrf.mxu0
      %v2740 = vadd.f32 0.0, %v2739
      %2741 = vmatprep.mubr.f32.mxu0 0.0
      %2742 = vmatmul.mubr.f32.gmra.mxu0 %v473
      %v2743 = vpop.f32.mrf.mxu0
      %v2744 = vadd.f32 0.0, %v2743
      %v2745 = vpop.f32.mrf.mxu0
      %v2746 = vadd.f32 0.0, %v2745
      %2747 = vmatprep.mubr.f32.mxu0 0.0
      %2748 = vmatmul.mubr.f32.gmra.mxu0 %v476
      %v2749 = vpop.f32.mrf.mxu0
      %v2750 = vadd.f32 0.0, %v2749
      %v2751 = vpop.f32.mrf.mxu0
      %v2752 = vadd.f32 0.0, %v2751
      %2753 = vmatprep.mubr.f32.mxu0 0.0
      %2754 = vmatmul.mubr.f32.gmra.mxu0 %v479
      %v2755 = vpop.f32.mrf.mxu0
      %v2756 = vadd.f32 0.0, %v2755
      %v2757 = vpop.f32.mrf.mxu0
      %v2758 = vadd.f32 0.0, %v2757
      %2759 = vmatprep.mubr.f32.mxu0 0.0
      %2760 = vmatmul.mubr.f32.gmra.mxu0 %v482
      %v2761 = vpop.f32.mrf.mxu0
      %v2762 = vadd.f32 0.0, %v2761
      %v2763 = vpop.f32.mrf.mxu0
      %v2764 = vadd.f32 0.0, %v2763
      %2765 = vmatprep.mubr.f32.mxu0 0.0
      %2766 = vmatmul.mubr.f32.gmra.mxu0 %v485
      %v2767 = vpop.f32.mrf.mxu0
      %v2768 = vadd.f32 0.0, %v2767
      %v2769 = vpop.f32.mrf.mxu0
      %v2770 = vadd.f32 0.0, %v2769
      %2771 = vmatprep.mubr.f32.mxu0 0.0
      %2772 = vmatmul.mubr.f32.gmra.mxu0 %v488
      %v2773 = vpop.f32.mrf.mxu0
      %v2774 = vadd.f32 0.0, %v2773
      %v2775 = vpop.f32.mrf.mxu0
      %v2776 = vadd.f32 0.0, %v2775
      %2777 = vmatprep.mubr.f32.mxu0 0.0
      %2778 = vmatmul.mubr.f32.gmra.mxu0 %v491
      %v2779 = vpop.f32.mrf.mxu0
      %v2780 = vadd.f32 0.0, %v2779
      %v2781 = vpop.f32.mrf.mxu0
      %v2782 = vadd.f32 0.0, %v2781
      %2783 = vmatprep.mubr.f32.mxu0 0.0
      %2784 = vmatmul.mubr.f32.gmra.mxu0 %v494
      %v2785 = vpop.f32.mrf.mxu0
      %v2786 = vadd.f32 0.0, %v2785
      %v2787 = vpop.f32.mrf.mxu0
      %v2788 = vadd.f32 0.0, %v2787
      %2789 = vmatprep.mubr.f32.mxu0 0.0
      %2790 = vmatmul.mubr.f32.gmra.mxu0 %v497
      %v2791 = vpop.f32.mrf.mxu0
      %v2792 = vadd.f32 0.0, %v2791
      %v2793 = vpop.f32.mrf.mxu0
      %v2794 = vadd.f32 0.0, %v2793
      %2795 = vmatprep.mubr.f32.mxu0 0.0
      %2796 = vmatmul.mubr.f32.gmra.mxu0 %v500
      %v2797 = vpop.f32.mrf.mxu0
      %v2798 = vadd.f32 0.0, %v2797
      %v2799 = vpop.f32.mrf.mxu0
      %v2800 = vadd.f32 0.0, %v2799
      %2801 = vmatprep.mubr.f32.mxu0 0.0
      %2802 = vmatmul.mubr.f32.gmra.mxu0 %v503
      %v2803 = vpop.f32.mrf.mxu0
      %v2804 = vadd.f32 0.0, %v2803
      %v2805 = vpop.f32.mrf.mxu0
      %v2806 = vadd.f32 0.0, %v2805
      %2807 = vmatprep.mubr.f32.mxu0 0.0
      %2808 = vmatmul.mubr.f32.gmra.mxu0 %v506
      %v2809 = vpop.f32.mrf.mxu0
      %v2810 = vadd.f32 0.0, %v2809
      %v2811 = vpop.f32.mrf.mxu0
      %v2812 = vadd.f32 0.0, %v2811
      %2813 = vmatprep.mubr.f32.mxu0 0.0
      %2814 = vmatmul.mubr.f32.gmra.mxu0 %v509
      %v2815 = vpop.f32.mrf.mxu0
      %v2816 = vadd.f32 0.0, %v2815
      %v2817 = vpop.f32.mrf.mxu0
      %v2818 = vadd.f32 0.0, %v2817
      %2819 = vmatprep.mubr.f32.mxu0 0.0
      %2820 = vmatmul.mubr.f32.gmra.mxu0 %v512
      %v2821 = vpop.f32.mrf.mxu0
      %v2822 = vadd.f32 0.0, %v2821
      %v2823 = vpop.f32.mrf.mxu0
      %v2824 = vadd.f32 0.0, %v2823
      %2825 = vmatprep.mubr.f32.mxu0 0.0
      %2826 = vmatmul.mubr.f32.gmra.mxu0 %v515
      %v2827 = vpop.f32.mrf.mxu0
      %v2828 = vadd.f32 0.0, %v2827
      %v2829 = vpop.f32.mrf.mxu0
      %v2830 = vadd.f32 0.0, %v2829
      %2831 = vmatprep.mubr.f32.mxu0 0.0
      %2832 = vmatmul.mubr.f32.gmra.mxu0 %v518
      %v2833 = vpop.f32.mrf.mxu0
      %v2834 = vadd.f32 0.0, %v2833
      %v2835 = vpop.f32.mrf.mxu0
      %v2836 = vadd.f32 0.0, %v2835
      %2837 = vmatprep.mubr.f32.mxu0 0.0
      %2838 = vmatmul.mubr.f32.gmra.mxu0 %v521
      %v2839 = vpop.f32.mrf.mxu0
      %v2840 = vadd.f32 0.0, %v2839
      %v2841 = vpop.f32.mrf.mxu0
      %v2842 = vadd.f32 0.0, %v2841
      %2843 = vmatprep.mubr.f32.mxu0 0.0
      %2844 = vmatmul.mubr.f32.gmra.mxu0 %v524
      %v2845 = vpop.f32.mrf.mxu0
      %v2846 = vadd.f32 0.0, %v2845
      %v2847 = vpop.f32.mrf.mxu0
      %v2848 = vadd.f32 0.0, %v2847
      %2849 = vmatprep.mubr.f32.mxu0 0.0
      %2850 = vmatmul.mubr.f32.gmra.mxu0 %v527
      %v2851 = vpop.f32.mrf.mxu0
      %v2852 = vadd.f32 0.0, %v2851
      %v2853 = vpop.f32.mrf.mxu0
      %v2854 = vadd.f32 0.0, %v2853
      %2855 = vmatprep.mubr.f32.mxu0 0.0
      %2856 = vmatmul.mubr.f32.gmra.mxu0 %v530
      %v2857 = vpop.f32.mrf.mxu0
      %v2858 = vadd.f32 0.0, %v2857
      %v2859 = vpop.f32.mrf.mxu0
      %v2860 = vadd.f32 0.0, %v2859
      %2861 = vmatprep.mubr.f32.mxu0 0.0
      %2862 = vmatmul.mubr.f32.gmra.mxu0 %v533
      %v2863 = vpop.f32.mrf.mxu0
      %v2864 = vadd.f32 0.0, %v2863
      %v2865 = vpop.f32.mrf.mxu0
      %v2866 = vadd.f32 0.0, %v2865
      %2867 = vmatprep.mubr.f32.mxu0 0.0
      %2868 = vmatmul.mubr.f32.gmra.mxu0 %v536
      %v2869 = vpop.f32.mrf.mxu0
      %v2870 = vadd.f32 0.0, %v2869
      %v2871 = vpop.f32.mrf.mxu0
      %v2872 = vadd.f32 0.0, %v2871
      %2873 = vmatprep.mubr.f32.mxu0 0.0
      %2874 = vmatmul.mubr.f32.gmra.mxu0 %v539
      %v2875 = vpop.f32.mrf.mxu0
      %v2876 = vadd.f32 0.0, %v2875
      %v2877 = vpop.f32.mrf.mxu0
      %v2878 = vadd.f32 0.0, %v2877
      %2879 = vdwg.mxu0
      %2880 = vmatprep.subr.mxu0 0.0
      %2881 = vmatpush1.msra.mxu0 0.0
      %2882 = vmatprep.subr.mxu0 0.0
      %2883 = vmatpush1.msra.mxu0 0.0
      %2884 = vmatprep.subr.mxu0 0.0
      %2885 = vmatpush1.msra.mxu0 0.0
      %2886 = vmatprep.subr.mxu0 0.0
      %2887 = vmatpush1.msra.mxu0 0.0
      %2888 = vmatprep.subr.mxu0 0.0
      %2889 = vmatpush1.msra.mxu0 0.0
      %2890 = vmatprep.subr.mxu0 0.0
      %2891 = vmatpush1.msra.mxu0 0.0
      %2892 = vmatprep.subr.mxu0 0.0
      %2893 = vmatpush1.msra.mxu0 0.0
      %2894 = vmatprep.subr.mxu0 0.0
      %2895 = vmatpush1.msra.mxu0 0.0
      %2896 = vmatprep.subr.mxu0 0.0
      %2897 = vmatpush1.msra.mxu0 0.0
      %2898 = vmatprep.subr.mxu0 0.0
      %2899 = vmatpush1.msra.mxu0 0.0
      %2900 = vmatprep.subr.mxu0 0.0
      %2901 = vmatpush1.msra.mxu0 0.0
      %2902 = vmatprep.subr.mxu0 0.0
      %2903 = vmatpush1.msra.mxu0 0.0
      %2904 = vmatprep.subr.mxu0 0.0
      %2905 = vmatpush1.msra.mxu0 0.0
      %2906 = vmatprep.subr.mxu0 0.0
      %2907 = vmatpush1.msra.mxu0 0.0
      %2908 = vmatprep.subr.mxu0 0.0
      %2909 = vmatpush1.msra.mxu0 %v2584
      %2910 = vmatprep.subr.mxu0 0.0
      %2911 = vmatpush1.msra.mxu0 %v2579
      %2912 = vmatprep.subr.mxu0 0.0
      %2913 = vmatpush2.msra.mxu0 0.0
      %2914 = vmatprep.subr.mxu0 0.0
      %2915 = vmatpush2.msra.mxu0 0.0
      %2916 = vmatprep.subr.mxu0 0.0
      %2917 = vmatpush2.msra.mxu0 0.0
      %2918 = vmatprep.subr.mxu0 0.0
      %2919 = vmatpush2.msra.mxu0 0.0
      %2920 = vmatprep.subr.mxu0 0.0
      %2921 = vmatpush2.msra.mxu0 0.0
      %2922 = vmatprep.subr.mxu0 0.0
      %2923 = vmatpush2.msra.mxu0 0.0
      %2924 = vmatprep.subr.mxu0 0.0
      %2925 = vmatpush2.msra.mxu0 0.0
      %2926 = vmatprep.subr.mxu0 0.0
      %2927 = vmatpush2.msra.mxu0 0.0
      %2928 = vmatprep.subr.mxu0 0.0
      %2929 = vmatpush2.msra.mxu0 0.0
      %2930 = vmatprep.subr.mxu0 0.0
      %2931 = vmatpush2.msra.mxu0 0.0
      %2932 = vmatprep.subr.mxu0 0.0
      %2933 = vmatpush2.msra.mxu0 0.0
      %2934 = vmatprep.subr.mxu0 0.0
      %2935 = vmatpush2.msra.mxu0 0.0
      %2936 = vmatprep.subr.mxu0 0.0
      %2937 = vmatpush2.msra.mxu0 0.0
      %2938 = vmatprep.subr.mxu0 0.0
      %2939 = vmatpush2.msra.mxu0 0.0
      %2940 = vmatprep.subr.mxu0 0.0
      %2941 = vmatpush2.msra.mxu0 0.0
      %2942 = vmatprep.subr.mxu0 0.0
      %2943 = vmatpush2.msra.mxu0 0.0
      %2944 = vmatprep.mubr.f32.mxu0 0.0
      %2945 = vmatmul.mubr.f32.gmra.mxu0 %v428
      %v2946 = vpop.f32.mrf.mxu0
      %v2947 = vadd.f32 0.0, %v2946
      %v2948 = vpop.f32.mrf.mxu0
      %2949 = vmatprep.mubr.f32.mxu0 0.0
      %2950 = vmatmul.mubr.f32.gmra.mxu0 %v431
      %v2951 = vpop.f32.mrf.mxu0
      %v2952 = vadd.f32 0.0, %v2951
      %v2953 = vpop.f32.mrf.mxu0
      %2954 = vmatprep.mubr.f32.mxu0 0.0
      %2955 = vmatmul.mubr.f32.gmra.mxu0 %v434
      %v2956 = vpop.f32.mrf.mxu0
      %v2957 = vadd.f32 0.0, %v2956
      %v2958 = vpop.f32.mrf.mxu0
      %2959 = vmatprep.mubr.f32.mxu0 0.0
      %2960 = vmatmul.mubr.f32.gmra.mxu0 %v437
      %v2961 = vpop.f32.mrf.mxu0
      %v2962 = vadd.f32 0.0, %v2961
      %v2963 = vpop.f32.mrf.mxu0
      %2964 = vmatprep.mubr.f32.mxu0 0.0
      %2965 = vmatmul.mubr.f32.gmra.mxu0 %v440
      %v2966 = vpop.f32.mrf.mxu0
      %v2967 = vadd.f32 0.0, %v2966
      %v2968 = vpop.f32.mrf.mxu0
      %2969 = vmatprep.mubr.f32.mxu0 0.0
      %2970 = vmatmul.mubr.f32.gmra.mxu0 %v443
      %v2971 = vpop.f32.mrf.mxu0
      %v2972 = vadd.f32 0.0, %v2971
      %v2973 = vpop.f32.mrf.mxu0
      %2974 = vmatprep.mubr.f32.mxu0 0.0
      %2975 = vmatmul.mubr.f32.gmra.mxu0 %v446
      %v2976 = vpop.f32.mrf.mxu0
      %v2977 = vadd.f32 0.0, %v2976
      %v2978 = vpop.f32.mrf.mxu0
      %2979 = vmatprep.mubr.f32.mxu0 0.0
      %2980 = vmatmul.mubr.f32.gmra.mxu0 %v449
      %v2981 = vpop.f32.mrf.mxu0
      %v2982 = vadd.f32 0.0, %v2981
      %v2983 = vpop.f32.mrf.mxu0
      %2984 = vmatprep.mubr.f32.mxu0 0.0
      %2985 = vmatmul.mubr.f32.gmra.mxu0 %v452
      %v2986 = vpop.f32.mrf.mxu0
      %v2987 = vadd.f32 0.0, %v2986
      %v2988 = vpop.f32.mrf.mxu0
      %2989 = vmatprep.mubr.f32.mxu0 0.0
      %2990 = vmatmul.mubr.f32.gmra.mxu0 %v455
      %v2991 = vpop.f32.mrf.mxu0
      %v2992 = vadd.f32 0.0, %v2991
      %v2993 = vpop.f32.mrf.mxu0
      %2994 = vmatprep.mubr.f32.mxu0 0.0
      %2995 = vmatmul.mubr.f32.gmra.mxu0 %v458
      %v2996 = vpop.f32.mrf.mxu0
      %v2997 = vadd.f32 0.0, %v2996
      %v2998 = vpop.f32.mrf.mxu0
      %2999 = vmatprep.mubr.f32.mxu0 0.0
      %3000 = vmatmul.mubr.f32.gmra.mxu0 %v461
      %v3001 = vpop.f32.mrf.mxu0
      %v3002 = vadd.f32 0.0, %v3001
      %v3003 = vpop.f32.mrf.mxu0
      %3004 = vmatprep.mubr.f32.mxu0 0.0
      %3005 = vmatmul.mubr.f32.gmra.mxu0 %v464
      %v3006 = vpop.f32.mrf.mxu0
      %v3007 = vadd.f32 0.0, %v3006
      %v3008 = vpop.f32.mrf.mxu0
      %3009 = vmatprep.mubr.f32.mxu0 0.0
      %3010 = vmatmul.mubr.f32.gmra.mxu0 %v467
      %v3011 = vpop.f32.mrf.mxu0
      %v3012 = vadd.f32 0.0, %v3011
      %v3013 = vpop.f32.mrf.mxu0
      %3014 = vmatprep.mubr.f32.mxu0 0.0
      %3015 = vmatmul.mubr.f32.gmra.mxu0 %v470
      %v3016 = vpop.f32.mrf.mxu0
      %v3017 = vadd.f32 0.0, %v3016
      %v3018 = vpop.f32.mrf.mxu0
      %3019 = vmatprep.mubr.f32.mxu0 0.0
      %3020 = vmatmul.mubr.f32.gmra.mxu0 %v473
      %v3021 = vpop.f32.mrf.mxu0
      %v3022 = vadd.f32 0.0, %v3021
      %v3023 = vpop.f32.mrf.mxu0
      %3024 = vmatprep.mubr.f32.mxu0 0.0
      %3025 = vmatmul.mubr.f32.gmra.mxu0 %v476
      %v3026 = vpop.f32.mrf.mxu0
      %v3027 = vadd.f32 0.0, %v3026
      %v3028 = vpop.f32.mrf.mxu0
      %3029 = vmatprep.mubr.f32.mxu0 0.0
      %3030 = vmatmul.mubr.f32.gmra.mxu0 %v479
      %v3031 = vpop.f32.mrf.mxu0
      %v3032 = vadd.f32 0.0, %v3031
      %v3033 = vpop.f32.mrf.mxu0
      %3034 = vmatprep.mubr.f32.mxu0 0.0
      %3035 = vmatmul.mubr.f32.gmra.mxu0 %v482
      %v3036 = vpop.f32.mrf.mxu0
      %v3037 = vadd.f32 0.0, %v3036
      %v3038 = vpop.f32.mrf.mxu0
      %3039 = vmatprep.mubr.f32.mxu0 0.0
      %3040 = vmatmul.mubr.f32.gmra.mxu0 %v485
      %v3041 = vpop.f32.mrf.mxu0
      %v3042 = vadd.f32 0.0, %v3041
      %v3043 = vpop.f32.mrf.mxu0
      %3044 = vmatprep.mubr.f32.mxu0 0.0
      %3045 = vmatmul.mubr.f32.gmra.mxu0 %v488
      %v3046 = vpop.f32.mrf.mxu0
      %v3047 = vadd.f32 0.0, %v3046
      %v3048 = vpop.f32.mrf.mxu0
      %3049 = vmatprep.mubr.f32.mxu0 0.0
      %3050 = vmatmul.mubr.f32.gmra.mxu0 %v491
      %v3051 = vpop.f32.mrf.mxu0
      %v3052 = vadd.f32 0.0, %v3051
      %v3053 = vpop.f32.mrf.mxu0
      %3054 = vmatprep.mubr.f32.mxu0 0.0
      %3055 = vmatmul.mubr.f32.gmra.mxu0 %v494
      %v3056 = vpop.f32.mrf.mxu0
      %v3057 = vadd.f32 0.0, %v3056
      %v3058 = vpop.f32.mrf.mxu0
      %3059 = vmatprep.mubr.f32.mxu0 0.0
      %3060 = vmatmul.mubr.f32.gmra.mxu0 %v497
      %v3061 = vpop.f32.mrf.mxu0
      %v3062 = vadd.f32 0.0, %v3061
      %v3063 = vpop.f32.mrf.mxu0
      %3064 = vmatprep.mubr.f32.mxu0 0.0
      %3065 = vmatmul.mubr.f32.gmra.mxu0 %v500
      %v3066 = vpop.f32.mrf.mxu0
      %v3067 = vadd.f32 0.0, %v3066
      %v3068 = vpop.f32.mrf.mxu0
      %3069 = vmatprep.mubr.f32.mxu0 0.0
      %3070 = vmatmul.mubr.f32.gmra.mxu0 %v503
      %v3071 = vpop.f32.mrf.mxu0
      %v3072 = vadd.f32 0.0, %v3071
      %v3073 = vpop.f32.mrf.mxu0
      %3074 = vmatprep.mubr.f32.mxu0 0.0
      %3075 = vmatmul.mubr.f32.gmra.mxu0 %v506
      %v3076 = vpop.f32.mrf.mxu0
      %v3077 = vadd.f32 0.0, %v3076
      %v3078 = vpop.f32.mrf.mxu0
      %3079 = vmatprep.mubr.f32.mxu0 0.0
      %3080 = vmatmul.mubr.f32.gmra.mxu0 %v509
      %v3081 = vpop.f32.mrf.mxu0
      %v3082 = vadd.f32 0.0, %v3081
      %v3083 = vpop.f32.mrf.mxu0
      %3084 = vmatprep.mubr.f32.mxu0 0.0
      %3085 = vmatmul.mubr.f32.gmra.mxu0 %v512
      %v3086 = vpop.f32.mrf.mxu0
      %v3087 = vadd.f32 0.0, %v3086
      %v3088 = vpop.f32.mrf.mxu0
      %3089 = vmatprep.mubr.f32.mxu0 0.0
      %3090 = vmatmul.mubr.f32.gmra.mxu0 %v515
      %v3091 = vpop.f32.mrf.mxu0
      %v3092 = vadd.f32 0.0, %v3091
      %v3093 = vpop.f32.mrf.mxu0
      %3094 = vmatprep.mubr.f32.mxu0 0.0
      %3095 = vmatmul.mubr.f32.gmra.mxu0 %v518
      %v3096 = vpop.f32.mrf.mxu0
      %v3097 = vadd.f32 0.0, %v3096
      %v3098 = vpop.f32.mrf.mxu0
      %3099 = vmatprep.mubr.f32.mxu0 0.0
      %3100 = vmatmul.mubr.f32.gmra.mxu0 %v521
      %v3101 = vpop.f32.mrf.mxu0
      %v3102 = vadd.f32 0.0, %v3101
      %v3103 = vpop.f32.mrf.mxu0
      %3104 = vmatprep.mubr.f32.mxu0 0.0
      %3105 = vmatmul.mubr.f32.gmra.mxu0 %v524
      %v3106 = vpop.f32.mrf.mxu0
      %v3107 = vadd.f32 0.0, %v3106
      %v3108 = vpop.f32.mrf.mxu0
      %3109 = vmatprep.mubr.f32.mxu0 0.0
      %3110 = vmatmul.mubr.f32.gmra.mxu0 %v527
      %v3111 = vpop.f32.mrf.mxu0
      %v3112 = vadd.f32 0.0, %v3111
      %v3113 = vpop.f32.mrf.mxu0
      %3114 = vmatprep.mubr.f32.mxu0 0.0
      %3115 = vmatmul.mubr.f32.gmra.mxu0 %v530
      %v3116 = vpop.f32.mrf.mxu0
      %v3117 = vadd.f32 0.0, %v3116
      %v3118 = vpop.f32.mrf.mxu0
      %3119 = vmatprep.mubr.f32.mxu0 0.0
      %3120 = vmatmul.mubr.f32.gmra.mxu0 %v533
      %v3121 = vpop.f32.mrf.mxu0
      %v3122 = vadd.f32 0.0, %v3121
      %v3123 = vpop.f32.mrf.mxu0
      %3124 = vmatprep.mubr.f32.mxu0 0.0
      %3125 = vmatmul.mubr.f32.gmra.mxu0 %v536
      %v3126 = vpop.f32.mrf.mxu0
      %v3127 = vadd.f32 0.0, %v3126
      %v3128 = vpop.f32.mrf.mxu0
      %3129 = vmatprep.mubr.f32.mxu0 0.0
      %3130 = vmatmul.mubr.f32.gmra.mxu0 %v539
      %v3131 = vpop.f32.mrf.mxu0
      %v3132 = vadd.f32 0.0, %v3131
      %v3133 = vpop.f32.mrf.mxu0
      %3134 = vdwg.mxu0
      %v3136 = vsel %vm1093, %v2876, 0
      %v3139 = vsel %vm1093, %v2878, 0
      %v3142 = vsel %vm1093, %v3132, 0
      %3144 = vmatprep.subr.mxu0 %v2746
      %3145 = vmatpush1.msra.mxu0 %v2744
      %3146 = vmatprep.subr.mxu0 %v2740
      %3147 = vmatpush1.msra.mxu0 %v2738
      %3148 = vmatprep.subr.mxu0 %v2734
      %3149 = vmatpush1.msra.mxu0 %v2732
      %3150 = vmatprep.subr.mxu0 %v2728
      %3151 = vmatpush1.msra.mxu0 %v2726
      %3152 = vmatprep.subr.mxu0 %v2722
      %3153 = vmatpush1.msra.mxu0 %v2720
      %3154 = vmatprep.subr.mxu0 %v2716
      %3155 = vmatpush1.msra.mxu0 %v2714
      %3156 = vmatprep.subr.mxu0 %v2710
      %3157 = vmatpush1.msra.mxu0 %v2708
      %3158 = vmatprep.subr.mxu0 %v2704
      %3159 = vmatpush1.msra.mxu0 %v2702
      %3160 = vmatprep.subr.mxu0 %v2698
      %3161 = vmatpush1.msra.mxu0 %v2696
      %3162 = vmatprep.subr.mxu0 %v2692
      %3163 = vmatpush1.msra.mxu0 %v2690
      %3164 = vmatprep.subr.mxu0 %v2686
      %3165 = vmatpush1.msra.mxu0 %v2684
      %3166 = vmatprep.subr.mxu0 %v2680
      %3167 = vmatpush1.msra.mxu0 %v2678
      %3168 = vmatprep.subr.mxu0 %v2674
      %3169 = vmatpush1.msra.mxu0 %v2672
      %3170 = vmatprep.subr.mxu0 %v2668
      %3171 = vmatpush1.msra.mxu0 %v2666
      %3172 = vmatprep.subr.mxu0 %v2662
      %3173 = vmatpush1.msra.mxu0 %v2660
      %3174 = vmatprep.subr.mxu0 %v2656
      %3175 = vmatpush1.msra.mxu0 %v2654
      %3176 = vmatprep.subr.mxu0 %v2842
      %3177 = vmatpush2.msra.mxu0 %v2840
      %3178 = vmatprep.subr.mxu0 %v2836
      %3179 = vmatpush2.msra.mxu0 %v2834
      %3180 = vmatprep.subr.mxu0 %v2830
      %3181 = vmatpush2.msra.mxu0 %v2828
      %3182 = vmatprep.subr.mxu0 %v2824
      %3183 = vmatpush2.msra.mxu0 %v2822
      %3184 = vmatprep.subr.mxu0 %v2818
      %3185 = vmatpush2.msra.mxu0 %v2816
      %3186 = vmatprep.subr.mxu0 %v2812
      %3187 = vmatpush2.msra.mxu0 %v2810
      %3188 = vmatprep.subr.mxu0 %v2806
      %3189 = vmatpush2.msra.mxu0 %v2804
      %3190 = vmatprep.subr.mxu0 %v2800
      %3191 = vmatpush2.msra.mxu0 %v2798
      %3192 = vmatprep.subr.mxu0 %v2794
      %3193 = vmatpush2.msra.mxu0 %v2792
      %3194 = vmatprep.subr.mxu0 %v2788
      %3195 = vmatpush2.msra.mxu0 %v2786
      %3196 = vmatprep.subr.mxu0 %v2782
      %3197 = vmatpush2.msra.mxu0 %v2780
      %3198 = vmatprep.subr.mxu0 %v2776
      %3199 = vmatpush2.msra.mxu0 %v2774
      %3200 = vmatprep.subr.mxu0 %v2770
      %3201 = vmatpush2.msra.mxu0 %v2768
      %3202 = vmatprep.subr.mxu0 %v2764
      %3203 = vmatpush2.msra.mxu0 %v2762
      %3204 = vmatprep.subr.mxu0 %v2758
      %3205 = vmatpush2.msra.mxu0 %v2756
      %3206 = vmatprep.subr.mxu0 %v2752
      %3207 = vmatpush2.msra.mxu0 %v2750
      %3208 = vmatprep.mubr.f32.mxu0 1.0
      %3209 = vmatmul.mubr.f32.gmra.mxu0 1.0
      %v3210 = vpop.f32.mrf.mxu0
      %v3211 = vadd.f32 0.0, %v3210
      %v3212 = vpop.f32.mrf.mxu0
      %v3213 = vadd.f32 0.0, %v3212
      %3214 = vdwg.mxu0
      %3215 = vmatprep.subr.mxu0 0.0
      %3216 = vmatpush1.msra.mxu0 0.0
      %3217 = vmatprep.subr.mxu0 0.0
      %3218 = vmatpush1.msra.mxu0 0.0
      %3219 = vmatprep.subr.mxu0 0.0
      %3220 = vmatpush1.msra.mxu0 0.0
      %3221 = vmatprep.subr.mxu0 0.0
      %3222 = vmatpush1.msra.mxu0 0.0
      %3223 = vmatprep.subr.mxu0 0.0
      %3224 = vmatpush1.msra.mxu0 0.0
      %3225 = vmatprep.subr.mxu0 0.0
      %3226 = vmatpush1.msra.mxu0 0.0
      %3227 = vmatprep.subr.mxu0 0.0
      %3228 = vmatpush1.msra.mxu0 0.0
      %3229 = vmatprep.subr.mxu0 0.0
      %3230 = vmatpush1.msra.mxu0 0.0
      %3231 = vmatprep.subr.mxu0 0.0
      %3232 = vmatpush1.msra.mxu0 0.0
      %3233 = vmatprep.subr.mxu0 0.0
      %3234 = vmatpush1.msra.mxu0 0.0
      %3235 = vmatprep.subr.mxu0 %v3139
      %3236 = vmatpush1.msra.mxu0 %v3136
      %3237 = vmatprep.subr.mxu0 %v2872
      %3238 = vmatpush1.msra.mxu0 %v2870
      %3239 = vmatprep.subr.mxu0 %v2866
      %3240 = vmatpush1.msra.mxu0 %v2864
      %3241 = vmatprep.subr.mxu0 %v2860
      %3242 = vmatpush1.msra.mxu0 %v2858
      %3243 = vmatprep.subr.mxu0 %v2854
      %3244 = vmatpush1.msra.mxu0 %v2852
      %3245 = vmatprep.subr.mxu0 %v2848
      %3246 = vmatpush1.msra.mxu0 %v2846
      %3247 = vmatprep.subr.mxu0 0.0
      %3248 = vmatpush2.msra.mxu0 0.0
      %3249 = vmatprep.subr.mxu0 0.0
      %3250 = vmatpush2.msra.mxu0 0.0
      %3251 = vmatprep.subr.mxu0 0.0
      %3252 = vmatpush2.msra.mxu0 0.0
      %3253 = vmatprep.subr.mxu0 0.0
      %3254 = vmatpush2.msra.mxu0 0.0
      %3255 = vmatprep.subr.mxu0 0.0
      %3256 = vmatpush2.msra.mxu0 0.0
      %3257 = vmatprep.subr.mxu0 0.0
      %3258 = vmatpush2.msra.mxu0 0.0
      %3259 = vmatprep.subr.mxu0 0.0
      %3260 = vmatpush2.msra.mxu0 0.0
      %3261 = vmatprep.subr.mxu0 0.0
      %3262 = vmatpush2.msra.mxu0 0.0
      %3263 = vmatprep.subr.mxu0 0.0
      %3264 = vmatpush2.msra.mxu0 0.0
      %3265 = vmatprep.subr.mxu0 0.0
      %3266 = vmatpush2.msra.mxu0 0.0
      %3267 = vmatprep.subr.mxu0 0.0
      %3268 = vmatpush2.msra.mxu0 0.0
      %3269 = vmatprep.subr.mxu0 0.0
      %3270 = vmatpush2.msra.mxu0 0.0
      %3271 = vmatprep.subr.mxu0 0.0
      %3272 = vmatpush2.msra.mxu0 0.0
      %3273 = vmatprep.subr.mxu0 0.0
      %3274 = vmatpush2.msra.mxu0 0.0
      %3275 = vmatprep.subr.mxu0 0.0
      %3276 = vmatpush2.msra.mxu0 0.0
      %3277 = vmatprep.subr.mxu0 0.0
      %3278 = vmatpush2.msra.mxu0 0.0
      %3279 = vmatprep.mubr.f32.mxu0 0.0
      %3280 = vmatmul.mubr.f32.gmra.mxu0 %v1091
      %v3281 = vpop.f32.mrf.mxu0
      %v3282 = vadd.f32 %v3211, %v3281
      %v3283 = vpop.f32.mrf.mxu0
      %v3284 = vadd.f32 %v3213, %v3283
      %3285 = vdwg.mxu0
      %3286 = vmatprep.subr.mxu0 0.0
      %3287 = vmatpush1.msra.mxu0 %v3022
      %3288 = vmatprep.subr.mxu0 0.0
      %3289 = vmatpush1.msra.mxu0 %v3017
      %3290 = vmatprep.subr.mxu0 0.0
      %3291 = vmatpush1.msra.mxu0 %v3012
      %3292 = vmatprep.subr.mxu0 0.0
      %3293 = vmatpush1.msra.mxu0 %v3007
      %3294 = vmatprep.subr.mxu0 0.0
      %3295 = vmatpush1.msra.mxu0 %v3002
      %3296 = vmatprep.subr.mxu0 0.0
      %3297 = vmatpush1.msra.mxu0 %v2997
      %3298 = vmatprep.subr.mxu0 0.0
      %3299 = vmatpush1.msra.mxu0 %v2992
      %3300 = vmatprep.subr.mxu0 0.0
      %3301 = vmatpush1.msra.mxu0 %v2987
      %3302 = vmatprep.subr.mxu0 0.0
      %3303 = vmatpush1.msra.mxu0 %v2982
      %3304 = vmatprep.subr.mxu0 0.0
      %3305 = vmatpush1.msra.mxu0 %v2977
      %3306 = vmatprep.subr.mxu0 0.0
      %3307 = vmatpush1.msra.mxu0 %v2972
      %3308 = vmatprep.subr.mxu0 0.0
      %3309 = vmatpush1.msra.mxu0 %v2967
      %3310 = vmatprep.subr.mxu0 0.0
      %3311 = vmatpush1.msra.mxu0 %v2962
      %3312 = vmatprep.subr.mxu0 0.0
      %3313 = vmatpush1.msra.mxu0 %v2957
      %3314 = vmatprep.subr.mxu0 0.0
      %3315 = vmatpush1.msra.mxu0 %v2952
      %3316 = vmatprep.subr.mxu0 0.0
      %3317 = vmatpush1.msra.mxu0 %v2947
      %3318 = vmatprep.subr.mxu0 0.0
      %3319 = vmatpush2.msra.mxu0 %v3102
      %3320 = vmatprep.subr.mxu0 0.0
      %3321 = vmatpush2.msra.mxu0 %v3097
      %3322 = vmatprep.subr.mxu0 0.0
      %3323 = vmatpush2.msra.mxu0 %v3092
      %3324 = vmatprep.subr.mxu0 0.0
      %3325 = vmatpush2.msra.mxu0 %v3087
      %3326 = vmatprep.subr.mxu0 0.0
      %3327 = vmatpush2.msra.mxu0 %v3082
      %3328 = vmatprep.subr.mxu0 0.0
      %3329 = vmatpush2.msra.mxu0 %v3077
      %3330 = vmatprep.subr.mxu0 0.0
      %3331 = vmatpush2.msra.mxu0 %v3072
      %3332 = vmatprep.subr.mxu0 0.0
      %3333 = vmatpush2.msra.mxu0 %v3067
      %3334 = vmatprep.subr.mxu0 0.0
      %3335 = vmatpush2.msra.mxu0 %v3062
      %3336 = vmatprep.subr.mxu0 0.0
      %3337 = vmatpush2.msra.mxu0 %v3057
      %3338 = vmatprep.subr.mxu0 0.0
      %3339 = vmatpush2.msra.mxu0 %v3052
      %3340 = vmatprep.subr.mxu0 0.0
      %3341 = vmatpush2.msra.mxu0 %v3047
      %3342 = vmatprep.subr.mxu0 0.0
      %3343 = vmatpush2.msra.mxu0 %v3042
      %3344 = vmatprep.subr.mxu0 0.0
      %3345 = vmatpush2.msra.mxu0 %v3037
      %3346 = vmatprep.subr.mxu0 0.0
      %3347 = vmatpush2.msra.mxu0 %v3032
      %3348 = vmatprep.subr.mxu0 0.0
      %3349 = vmatpush2.msra.mxu0 %v3027
      %3350 = vmatprep.mubr.f32.mxu0 1.0
      %3351 = vmatmul.mubr.f32.gmra.mxu0 1.0
      %v3352 = vpop.f32.mrf.mxu0
      %v3353 = vadd.f32 0.0, %v3352
      %v3354 = vpop.f32.mrf.mxu0
      %3355 = vdwg.mxu0
      %3356 = vmatprep.subr.mxu0 0.0
      %3357 = vmatpush1.msra.mxu0 0.0
      %3358 = vmatprep.subr.mxu0 0.0
      %3359 = vmatpush1.msra.mxu0 0.0
      %3360 = vmatprep.subr.mxu0 0.0
      %3361 = vmatpush1.msra.mxu0 0.0
      %3362 = vmatprep.subr.mxu0 0.0
      %3363 = vmatpush1.msra.mxu0 0.0
      %3364 = vmatprep.subr.mxu0 0.0
      %3365 = vmatpush1.msra.mxu0 0.0
      %3366 = vmatprep.subr.mxu0 0.0
      %3367 = vmatpush1.msra.mxu0 0.0
      %3368 = vmatprep.subr.mxu0 0.0
      %3369 = vmatpush1.msra.mxu0 0.0
      %3370 = vmatprep.subr.mxu0 0.0
      %3371 = vmatpush1.msra.mxu0 0.0
      %3372 = vmatprep.subr.mxu0 0.0
      %3373 = vmatpush1.msra.mxu0 0.0
      %3374 = vmatprep.subr.mxu0 0.0
      %3375 = vmatpush1.msra.mxu0 0.0
      %3376 = vmatprep.subr.mxu0 0.0
      %3377 = vmatpush1.msra.mxu0 %v3142
      %3378 = vmatprep.subr.mxu0 0.0
      %3379 = vmatpush1.msra.mxu0 %v3127
      %3380 = vmatprep.subr.mxu0 0.0
      %3381 = vmatpush1.msra.mxu0 %v3122
      %3382 = vmatprep.subr.mxu0 0.0
      %3383 = vmatpush1.msra.mxu0 %v3117
      %3384 = vmatprep.subr.mxu0 0.0
      %3385 = vmatpush1.msra.mxu0 %v3112
      %3386 = vmatprep.subr.mxu0 0.0
      %3387 = vmatpush1.msra.mxu0 %v3107
      %3388 = vmatprep.subr.mxu0 0.0
      %3389 = vmatpush2.msra.mxu0 0.0
      %3390 = vmatprep.subr.mxu0 0.0
      %3391 = vmatpush2.msra.mxu0 0.0
      %3392 = vmatprep.subr.mxu0 0.0
      %3393 = vmatpush2.msra.mxu0 0.0
      %3394 = vmatprep.subr.mxu0 0.0
      %3395 = vmatpush2.msra.mxu0 0.0
      %3396 = vmatprep.subr.mxu0 0.0
      %3397 = vmatpush2.msra.mxu0 0.0
      %3398 = vmatprep.subr.mxu0 0.0
      %3399 = vmatpush2.msra.mxu0 0.0
      %3400 = vmatprep.subr.mxu0 0.0
      %3401 = vmatpush2.msra.mxu0 0.0
      %3402 = vmatprep.subr.mxu0 0.0
      %3403 = vmatpush2.msra.mxu0 0.0
      %3404 = vmatprep.subr.mxu0 0.0
      %3405 = vmatpush2.msra.mxu0 0.0
      %3406 = vmatprep.subr.mxu0 0.0
      %3407 = vmatpush2.msra.mxu0 0.0
      %3408 = vmatprep.subr.mxu0 0.0
      %3409 = vmatpush2.msra.mxu0 0.0
      %3410 = vmatprep.subr.mxu0 0.0
      %3411 = vmatpush2.msra.mxu0 0.0
      %3412 = vmatprep.subr.mxu0 0.0
      %3413 = vmatpush2.msra.mxu0 0.0
      %3414 = vmatprep.subr.mxu0 0.0
      %3415 = vmatpush2.msra.mxu0 0.0
      %3416 = vmatprep.subr.mxu0 0.0
      %3417 = vmatpush2.msra.mxu0 0.0
      %3418 = vmatprep.subr.mxu0 0.0
      %3419 = vmatpush2.msra.mxu0 0.0
      %3420 = vmatprep.mubr.f32.mxu0 0.0
      %3421 = vmatmul.mubr.f32.gmra.mxu0 %v1091
      %v3422 = vpop.f32.mrf.mxu0
      %v3423 = vadd.f32 %v3353, %v3422
      %v3424 = vpop.f32.mrf.mxu0
      %3425 = vdwg.mxu0
      %v3426 = vsel %vm1385, %v3282, 0.0
      %v3427 = vsel %vm1385, %v3284, 0.0
      %v3428 = vadd.f32 %v3426, %v3427
      %v3429 = vsel %vm1389, %v3423, 0.0
      %v3430 = vadd.f32 %v3428, %v3429
      %3431 = vadd.xlane.f32.xlu0 %v3430
      %v3432 = vpop.xlane.xlu0 %3431
      %v3433 = vrot.slane %v3432, 4
      %v3434 = vadd.f32 %v3432, %v3433
      %v3435 = vrot.slane %v3434, 2
      %v3436 = vadd.f32 %v3434, %v3435
      %v3437 = vrot.slane %v3436, 1
      %v3438 = vadd.f32 %v3436, %v3437
      %s3439 = vtos %v3438
      %s3440 = smul.f32 %s3439, 1.1185557e-05
      %s3441 = scalar_lea.vmem %s3, 2
      %v3442 = vld [vmem:[%s3441] ss:$4 sm:$0xff]
      %v3443 = vstv %s3440
      %v3444 = vmul.f32 %v3443, %v3442
      %v3445 = vadd.f32 %v2425, %v3444
      %v3447 = vlaneseq
      %v3448 = vshrl.u32 %v3447, 7
      %v3449 = vsub.s32 0, %v3448
      %v3450 = vrot.slane %v3445, %v3449
      %v3451 = vlaneseq
      %v3452 = vshrl.u32 %v3451, 7
      %v3453 = vsub.s32 1, %v3452
      %v3454 = vrot.slane %v3445, %v3453
      %v3455 = vlaneseq
      %v3456 = vshrl.u32 %v3455, 7
      %v3457 = vsub.s32 2, %v3456
      %v3458 = vrot.slane %v3445, %v3457
      %v3459 = vlaneseq
      %v3460 = vshrl.u32 %v3459, 7
      %v3461 = vsub.s32 3, %v3460
      %v3462 = vrot.slane %v3445, %v3461
      %v3463 = vlaneseq
      %v3464 = vshrl.u32 %v3463, 7
      %v3465 = vsub.s32 4, %v3464
      %v3466 = vrot.slane %v3445, %v3465
      %v3467 = vlaneseq
      %v3468 = vshrl.u32 %v3467, 7
      %v3469 = vsub.s32 5, %v3468
      %v3470 = vrot.slane %v3445, %v3469
      %v3471 = vlaneseq
      %v3472 = vshrl.u32 %v3471, 7
      %v3473 = vsub.s32 6, %v3472
      %v3474 = vrot.slane %v3445, %v3473
      %v3475 = vlaneseq
      %v3476 = vshrl.u32 %v3475, 7
      %v3477 = vsub.s32 7, %v3476
      %v3478 = vrot.slane %v3445, %v3477
      %v3487 = vsel %vm1385, %v3450, -inf
      %v3488 = vsel %vm1385, %v3454, -inf
      %v3489 = vsel %vm1385, %v3458, -inf
      %v3490 = vsel %vm1385, %v3462, -inf
      %v3491 = vsel %vm1385, %v3466, -inf
      %v3492 = vmax.f32 %v3487, %v3491
      %v3493 = vsel %vm1385, %v3470, -inf
      %v3494 = vmax.f32 %v3488, %v3493
      %v3495 = vsel %vm1385, %v3474, -inf
      %v3496 = vmax.f32 %v3489, %v3495
      %vm3497 = vcmask 843776
      %v3498 = vsel %vm3497, %v3478, -inf
      %v3499 = vmax.f32 %v3490, %v3498
      %v3500 = vmax.f32 %v3492, %v3494
      %v3501 = vmax.f32 %v3496, %v3499
      %v3502 = vmax.f32 %v3500, %v3501
      %3503 = vmax.xlane.f32.xlu0 %v3502
      %v3504 = vpop.xlane.xlu0 %3503
      %v3506 = vlaneseq
      %v3507 = vshrl.u32 %v3506, 7
      %v3508 = vsub.s32 0, %v3507
      %v3509 = vrot.slane %v3504, %v3508
      %v3511 = vsub.f32 %v3445, %v3509
      %v3512 = vmul.f32 %v3511, 1.442695
      %v3513 = vpow.pop %v3512
      %v3515 = vlaneseq
      %v3516 = vshrl.u32 %v3515, 7
      %v3517 = vsub.s32 0, %v3516
      %v3518 = vrot.slane %v3513, %v3517
      %v3519 = vlaneseq
      %v3520 = vshrl.u32 %v3519, 7
      %v3521 = vsub.s32 1, %v3520
      %v3522 = vrot.slane %v3513, %v3521
      %v3523 = vlaneseq
      %v3524 = vshrl.u32 %v3523, 7
      %v3525 = vsub.s32 2, %v3524
      %v3526 = vrot.slane %v3513, %v3525
      %v3527 = vlaneseq
      %v3528 = vshrl.u32 %v3527, 7
      %v3529 = vsub.s32 3, %v3528
      %v3530 = vrot.slane %v3513, %v3529
      %v3531 = vlaneseq
      %v3532 = vshrl.u32 %v3531, 7
      %v3533 = vsub.s32 4, %v3532
      %v3534 = vrot.slane %v3513, %v3533
      %v3535 = vlaneseq
      %v3536 = vshrl.u32 %v3535, 7
      %v3537 = vsub.s32 5, %v3536
      %v3538 = vrot.slane %v3513, %v3537
      %v3539 = vlaneseq
      %v3540 = vshrl.u32 %v3539, 7
      %v3541 = vsub.s32 6, %v3540
      %v3542 = vrot.slane %v3513, %v3541
      %v3543 = vlaneseq
      %v3544 = vshrl.u32 %v3543, 7
      %v3545 = vsub.s32 7, %v3544
      %v3546 = vrot.slane %v3513, %v3545
      %v3555 = vsel %vm1385, %v3518, 0.0
      %v3556 = vsel %vm1385, %v3522, 0.0
      %v3557 = vadd.f32 %v3555, %v3556
      %v3558 = vsel %vm1385, %v3526, 0.0
      %v3559 = vadd.f32 %v3557, %v3558
      %v3560 = vsel %vm1385, %v3530, 0.0
      %v3561 = vadd.f32 %v3559, %v3560
      %v3562 = vsel %vm1385, %v3534, 0.0
      %v3563 = vadd.f32 %v3561, %v3562
      %v3564 = vsel %vm1385, %v3538, 0.0
      %v3565 = vadd.f32 %v3563, %v3564
      %v3566 = vsel %vm1385, %v3542, 0.0
      %v3567 = vadd.f32 %v3565, %v3566
      %v3568 = vsel %vm3497, %v3546, 0.0
      %v3569 = vadd.f32 %v3567, %v3568
      %3570 = vadd.xlane.f32.xlu0 %v3569
      %v3571 = vpop.xlane.xlu0 %3570
      %v3573 = vlaneseq
      %v3574 = vshrl.u32 %v3573, 7
      %v3575 = vsub.s32 0, %v3574
      %v3576 = vrot.slane %v3571, %v3575
      %v3578 = vrcp.pop %v3576
      %v3579 = vmul.f32 %v3513, %v3578
      %vm3580 = vcmp.gt.f32.partialorder %v3579, 0.0
      %v3581 = vsub.f32 0.0, %v3579
      %v3582 = vlog2.pop %v3579
      %v3583 = vmul.f32 %v3582, 0.6931472
      %v3584 = vmul.f32 %v3581, %v3583
      %v3585 = vsel %vm3580, %v3584, 0.0
      %v3587 = vlaneseq
      %v3588 = vshrl.u32 %v3587, 7
      %v3589 = vsub.s32 0, %v3588
      %v3590 = vrot.slane %v3585, %v3589
      %v3591 = vlaneseq
      %v3592 = vshrl.u32 %v3591, 7
      %v3593 = vsub.s32 1, %v3592
      %v3594 = vrot.slane %v3585, %v3593
      %v3595 = vlaneseq
      %v3596 = vshrl.u32 %v3595, 7
      %v3597 = vsub.s32 2, %v3596
      %v3598 = vrot.slane %v3585, %v3597
      %v3599 = vlaneseq
      %v3600 = vshrl.u32 %v3599, 7
      %v3601 = vsub.s32 3, %v3600
      %v3602 = vrot.slane %v3585, %v3601
      %v3603 = vlaneseq
      %v3604 = vshrl.u32 %v3603, 7
      %v3605 = vsub.s32 4, %v3604
      %v3606 = vrot.slane %v3585, %v3605
      %v3607 = vlaneseq
      %v3608 = vshrl.u32 %v3607, 7
      %v3609 = vsub.s32 5, %v3608
      %v3610 = vrot.slane %v3585, %v3609
      %v3611 = vlaneseq
      %v3612 = vshrl.u32 %v3611, 7
      %v3613 = vsub.s32 6, %v3612
      %v3614 = vrot.slane %v3585, %v3613
      %v3615 = vlaneseq
      %v3616 = vshrl.u32 %v3615, 7
      %v3617 = vsub.s32 7, %v3616
      %v3618 = vrot.slane %v3585, %v3617
      %v3627 = vsel %vm1385, %v3590, 0.0
      %v3628 = vsel %vm1385, %v3594, 0.0
      %v3629 = vadd.f32 %v3627, %v3628
      %v3630 = vsel %vm1385, %v3598, 0.0
      %v3631 = vadd.f32 %v3629, %v3630
      %v3632 = vsel %vm1385, %v3602, 0.0
      %v3633 = vadd.f32 %v3631, %v3632
      %v3634 = vsel %vm1385, %v3606, 0.0
      %v3635 = vadd.f32 %v3633, %v3634
      %v3636 = vsel %vm1385, %v3610, 0.0
      %v3637 = vadd.f32 %v3635, %v3636
      %v3638 = vsel %vm1385, %v3614, 0.0
      %v3639 = vadd.f32 %v3637, %v3638
      %v3640 = vsel %vm3497, %v3618, 0.0
      %v3641 = vadd.f32 %v3639, %v3640
      %3642 = vadd.xlane.f32.xlu0 %v3641
      %v3643 = vpop.xlane.xlu0 %3642
      %v3644 = vrot.slane %v3643, 4
      %v3645 = vadd.f32 %v3643, %v3644
      %v3646 = vrot.slane %v3645, 2
      %v3647 = vadd.f32 %v3645, %v3646
      %v3648 = vrot.slane %v3647, 1
      %v3649 = vadd.f32 %v3647, %v3648
      %s3650 = vtos %v3649
      %v3651 = vstv %s3650
      %3652 = vst [vmem:[%s220] sm:$0x1] %v3651
      %p3653 = scmp.lt.s32.totalorder %s16, 1
      %s3654 = scalar_select %p3653, %s16, 1
      %s3655 = scalar_lea.vmem %s5, %s3654
      // Predicated region
      $region41: #{inception_score_forward.1} parent=39 // pred_check
        %p3656 = pneg %p144
      $region42: #{inception_score_forward.1} parent=39 // pred_check_branch
        %3658 = sbr.rel (%p3656) target = $region44
      $region43: #{inception_score_forward.1} parent=39 // pred_region
        _
      $region44: #{inception_score_forward.1} parent=39 // pred_fallthru
        _
    $region40: #{inception_score_forward.1} parent=5 // pred_fallthru
      _
    %p3659 = scmp.le.s32.totalorder 2, %s11
    // Predicated region
    $region45: #{inception_score_forward.1} parent=5 // pred_check
      %p3660 = pneg %p3659
    $region46: #{inception_score_forward.1} parent=5 // pred_check_branch
      %3662 = sbr.rel (%p3660) target = $region48
    $region47: #{inception_score_forward.1} parent=5 // pred_region
      %s3663 = ssub.s32 %s11, 2
      // Predicated region
      $region49: #{inception_score_forward.1} parent=47 // pred_check
        %p3664 = pneg %p150
      $region50: #{inception_score_forward.1} parent=47 // pred_check_branch
        %3666 = sbr.rel (%p3664) target = $region52
      $region51: #{inception_score_forward.1} parent=47 // pred_region
        %p3667 = scmp.lt.s32.totalorder %s17, 1
        %s3668 = scalar_select %p3667, %s17, 1
        %s3669 = scalar_lea.vmem %s5, %s3668
      $region52: #{inception_score_forward.1} parent=47 // pred_fallthru
        _
    $region48: #{inception_score_forward.1} parent=5 // pred_fallthru
      _
  $region6: #{inception_score_forward.1} parent=0 // loop_footer
    %s15 = sadd.s32 1, %s11
  $region7: #{inception_score_forward.1} parent=0 // loop_footer_branch
    %10 = sbr.rel target = $region3
  $region8: #{inception_score_forward.1} parent=0 // loop_exit
    _

</llo_original>
